<compile_context>
chip_gen: v5e
topology: v5e:2x2
jax: 0.10.0
libtpu: 0.0.40
codegen_flags: <defaults>
</compile_context>

<pallas_src>
import functools

import jax
import jax.numpy as jnp
from jax.experimental import pallas as pl
from jax.experimental.pallas import tpu as pltpu


_MOSAIC_PARAMS = pltpu.CompilerParams(
    dimension_semantics=("parallel", "parallel"),
    vmem_limit_bytes=64 * 1024 * 1024,
)


# ----------------------------------------------------------------------------
# Fused per-repeat Pallas kernel
# ----------------------------------------------------------------------------

def _repeat_kernel(*refs, K, stride, dilation, tT, tIn, separable, relu,
                   fuse_res):
    """One fused QuartzNet repeat at grid point (batch b, time-tile t).

    Ref order (flags select which are present):
      x_ref                       (1, Tp, Cin)  full padded time for batch b
      [dww_ref (K, Cin), dwb_ref (1, Cin)]                      if separable
      w_ref    (K*Cin, Cout) or (Cin, Cout), bf16
      s_ref, t_ref                (1, Cout)     folded BN scale / shift
      [xres_ref (1, tT, Cr), rw_ref (Cr, Cout), rs_ref, rt_ref] if fuse_res
      o_ref                       (1, tT, Cout)
    """
    it = iter(refs)
    x_ref = next(it)
    if separable:
        dww_ref = next(it)
        dwb_ref = next(it)
    w_ref = next(it)
    s_ref = next(it)
    t_ref = next(it)
    if fuse_res:
        xres_ref = next(it)
        rw_ref = next(it)
        rs_ref = next(it)
        rt_ref = next(it)
    o_ref = next(it)

    # One dynamic (sublane-aligned when possible) window load per grid step;
    # all per-tap slices below are static slices of this value.
    base = pl.program_id(1) * (tT * stride)
    if (tT * stride) % 8 == 0:
        base = pl.multiple_of(base, 8)
    xwin = x_ref[0, pl.ds(base, tIn), :]                  # (tIn, Cin)

    def tap(k):
        start = k * dilation                              # static
        if stride == 1:
            return xwin[start:start + tT, :]
        # stride > 1: contiguous slice, then pick every stride-th row via
        # a reshape (no strided sublane gathers).
        xs = xwin[start:start + tT * stride, :]
        return xs.reshape(tT, stride, xs.shape[-1])[:, 0, :]

    if separable:
        dw_w = dww_ref[...]                               # (K, Cin) f32
        acc = jnp.zeros((tT, dw_w.shape[-1]), jnp.float32)
        for k in range(K):                                # depthwise: VPU MAC
            acc = acc + tap(k).astype(jnp.float32) * dw_w[k:k + 1, :]
        hidden = (acc + dwb_ref[...]).astype(jnp.bfloat16)          # (tT, Cin)
    else:
        # Dense conv: stack the K shifted slices along the contraction dim so
        # the whole repeat is a single MXU matmul.
        hidden = jnp.concatenate([tap(k) for k in range(K)],
                                 axis=-1).astype(jnp.bfloat16)      # (tT, K*Cin)

    y = jnp.dot(hidden, w_ref[...], preferred_element_type=jnp.float32)
    y = y * s_ref[...] + t_ref[...]                       # folded BN (+ bias)

    if fuse_res:                                          # residual 1x1 conv+BN
        res = jnp.dot(xres_ref[0].astype(jnp.bfloat16), rw_ref[...],
                      preferred_element_type=jnp.float32)
        y = y + res * rs_ref[...] + rt_ref[...]
    if relu:
        y = jnp.maximum(y, 0.0)
    o_ref[0] = y.astype(o_ref.dtype)


# ----------------------------------------------------------------------------
# pallas_call wrapper
# ----------------------------------------------------------------------------

def _pick_time_tile(Tout, max_ch, cap=None):
    """Largest multiple of 8 that divides Tout while keeping a (tT, max_ch)
    f32 working tile around <= 512 KiB (bounds vreg/VMEM pressure, incl. v7x's
    64 MiB VMEM); falls back to the full Tout."""
    budget_rows = max(8, (512 * 1024) // (4 * max(max_ch, 128)))
    tT = min(Tout, budget_rows)
    if cap is not None:
        tT = min(tT, cap)
    tT -= tT % 8
    while tT >= 8 and Tout % tT:
        tT -= 8
    return tT if tT >= 8 else Tout


def conv_repeat(x, layer, *, K, stride, dilation, padding, separable, relu,
                res=None, time_tile_cap=None):
    """One QuartzNet repeat on NTC input x: (N, T, Cin) -> (N, Tout, Cout).

    If `res = (x_in, res_w, res_scale, res_shift)` is given, the block residual
    branch (1x1 conv + folded BN), the add, and the block ReLU are fused into
    the kernel epilogue.
    """
    N, T, Cin = x.shape
    Tout = (T + 2 * padding - dilation * (K - 1) - 1) // stride + 1

    if separable:
        dww = layer["dw_w"].astype(jnp.float32)                     # (K, Cin)
        dwb = layer["dw_b"].reshape(1, Cin).astype(jnp.float32)
        w = layer["pw_w"].reshape(Cin, -1).astype(jnp.bfloat16)     # (Cin, Cout)
        scale, shift = layer["pw_scale"], layer["pw_shift"]
    else:
        w = layer["w"].reshape(K * Cin, -1).astype(jnp.bfloat16)    # (K*Cin, Cout)
        scale, shift = layer["scale"], layer["shift"]
    Cout = w.shape[-1]
    s2 = scale.reshape(1, Cout).astype(jnp.float32)
    t2 = shift.reshape(1, Cout).astype(jnp.float32)

    tT = _pick_time_tile(Tout, max(Cin, Cout), time_tile_cap)
    Tt = Tout // tT
    tIn = tT * stride + dilation * (K - 1)     # input rows needed per out tile

    Tp = T + 2 * padding
    right_extra = max(0, (Tt - 1) * tT * stride + tIn - Tp)
    if padding or right_extra:
        x = jnp.pad(x, ((0, 0), (padding, padding + right_extra), (0, 0)))
        Tp += right_extra

    inputs = [x]
    in_specs = [pl.BlockSpec((1, Tp, Cin), lambda b, t: (b, 0, 0))]
    if separable:
        inputs += [dww, dwb]
        in_specs += [pl.BlockSpec((K, Cin), lambda b, t: (0, 0)),
                     pl.BlockSpec((1, Cin), lambda b, t: (0, 0))]
    inputs += [w, s2, t2]
    in_specs += [pl.BlockSpec(w.shape, lambda b, t: (0, 0)),
                 pl.BlockSpec((1, Cout), lambda b, t: (0, 0)),
                 pl.BlockSpec((1, Cout), lambda b, t: (0, 0))]

    fuse_res = res is not None
    if fuse_res:
        x_in, rw, rs, rt = res
        Cr = x_in.shape[-1]
        assert stride == 1 and x_in.shape[1] == Tout, (
            "residual add needs matching time lengths (stride must be 1)")
        inputs += [x_in,
                   rw.reshape(Cr, Cout).astype(jnp.bfloat16),
                   rs.reshape(1, Cout).astype(jnp.float32),
                   rt.reshape(1, Cout).astype(jnp.float32)]
        in_specs += [pl.BlockSpec((1, tT, Cr), lambda b, t: (b, t, 0)),
                     pl.BlockSpec((Cr, Cout), lambda b, t: (0, 0)),
                     pl.BlockSpec((1, Cout), lambda b, t: (0, 0)),
                     pl.BlockSpec((1, Cout), lambda b, t: (0, 0))]

    kern = functools.partial(_repeat_kernel, K=K, stride=stride,
                             dilation=dilation, tT=tT, tIn=tIn,
                             separable=separable, relu=relu, fuse_res=fuse_res)
    return pl.pallas_call(
        kern,
        out_shape=jax.ShapeDtypeStruct((N, Tout, Cout), jnp.float32),
        grid=(N, Tt),
        in_specs=in_specs,
        out_specs=pl.BlockSpec((1, tT, Cout), lambda b, t: (b, t, 0)),
        compiler_params=_MOSAIC_PARAMS,
    )(*inputs)


# ----------------------------------------------------------------------------
# Deterministic parameter initialization (shapes match nn.Module __init__)
# ----------------------------------------------------------------------------

def _init_bn(key, C):
    k1, k2, k3, k4 = jax.random.split(key, 4)
    gamma = 1.0 + 0.1 * jax.random.normal(k1, (C,), jnp.float32)
    beta = 0.1 * jax.random.normal(k2, (C,), jnp.float32)
    mean = 0.1 * jax.random.normal(k3, (C,), jnp.float32)
    var = jax.random.uniform(k4, (C,), jnp.float32, 0.5, 1.5)
    return gamma, beta, mean, var


def _fold_bn(gamma, beta, mean, var, conv_bias, eps=1e-5):
    scale = gamma / jnp.sqrt(var + eps)
    shift = beta - mean * scale + conv_bias * scale
    return scale, shift


def init_block(key, feat_in, cfg):
    filters, K = cfg["filters"], cfg["kernel_size"]
    layers = []
    cin = feat_in
    keys = jax.random.split(key, cfg["repeat"] + 1)
    for idx in range(cfg["repeat"]):
        lk = jax.random.split(keys[idx], 8)
        layer = {}
        if cfg["separable"]:
            # torch depthwise weight (cin,1,K) -> (K,cin); pointwise (filters,cin,1) -> (1,cin,filters)
            layer["dw_w"] = 0.2 * jax.random.normal(lk[0], (K, cin), jnp.float32)
            layer["dw_b"] = 0.1 * jax.random.normal(lk[1], (cin,), jnp.float32)
            pw_w = 0.2 * jax.random.normal(lk[2], (1, cin, filters), jnp.float32)
            pw_b = 0.1 * jax.random.normal(lk[3], (filters,), jnp.float32)
            scale, shift = _fold_bn(*_init_bn(lk[4], filters), pw_b)
            layer["pw_w"], layer["pw_scale"], layer["pw_shift"] = pw_w, scale, shift
        else:
            # torch conv weight (filters, cin, K) -> (K, cin, filters)
            w = 0.2 * jax.random.normal(lk[0], (K, cin, filters), jnp.float32)
            b = 0.1 * jax.random.normal(lk[1], (filters,), jnp.float32)
            scale, shift = _fold_bn(*_init_bn(lk[2], filters), b)
            layer["w"], layer["scale"], layer["shift"] = w, scale, shift
        layers.append(layer)
        cin = filters
    blk = {"cfg": cfg, "layers": layers}
    if cfg["residual"]:
        rk = jax.random.split(keys[-1], 3)
        rw = 0.2 * jax.random.normal(rk[0], (1, feat_in, filters), jnp.float32)
        rb = 0.1 * jax.random.normal(rk[1], (filters,), jnp.float32)
        scale, shift = _fold_bn(*_init_bn(rk[2], filters), rb)
        blk["res_w"], blk["res_scale"], blk["res_shift"] = rw, scale, shift
    return blk


# ----------------------------------------------------------------------------
# Forward pass (mirrors QuartzNetBlock.forward / QuartzNet.forward, eval mode)
# ----------------------------------------------------------------------------

def block_forward(blk, x, time_tile_cap=None):
    cfg = blk["cfg"]
    K, stride, dil = cfg["kernel_size"], cfg["stride"], cfg["dilation"]
    pad = dil * K // 2 - 1 if dil > 1 else K // 2
    x_in = x
    last_idx = cfg["repeat"] - 1
    for idx, layer in enumerate(blk["layers"]):
        if idx == last_idx:
            # Block epilogue fused in-kernel: optional residual (1x1 conv + BN)
            # add, then the block's out-ReLU (Dropout = identity in eval).
            res = ((x_in, blk["res_w"], blk["res_scale"], blk["res_shift"])
                   if cfg["residual"] else None)
            x = conv_repeat(x, layer, K=K, stride=stride, dilation=dil,
                            padding=pad, separable=cfg["separable"],
                            relu=True, res=res, time_tile_cap=time_tile_cap)
        else:
            # Intermediate ReLU (+ Dropout=identity) only for residual blocks,
            # as in the reference module.
            x = conv_repeat(x, layer, K=K, stride=stride, dilation=dil,
                            padding=pad, separable=cfg["separable"],
                            relu=cfg["residual"], time_tile_cap=time_tile_cap)
    return x


def quartznet_forward(block_params, stride_val, features, features_length,
                      time_tile_cap=None):
    # features: (N, C, T) as in PyTorch -> NTC for the kernels
    x = jnp.transpose(features, (0, 2, 1)).astype(jnp.float32)
    for blk in block_params:
        x = block_forward(blk, x, time_tile_cap)
    encoded = jnp.transpose(x, (0, 2, 1))  # back to (N, C, T)
    # torch.div(rounding_mode='trunc'); lengths are non-negative so floor==trunc
    encoded_len = (features_length - 1) // stride_val + 1
    return encoded, encoded_len


# ----------------------------------------------------------------------------
# Main
# ----------------------------------------------------------------------------

if __name__ == "__main__":
    key = jax.random.PRNGKey(0)
    kp, kx = jax.random.split(key)

    feat_in = 16
    blocks_conf = [
        dict(filters=32, repeat=2, kernel_size=5, stride=1, dilation=1,
             residual=True, separable=False, dropout=0.2),
        dict(filters=32, repeat=2, kernel_size=3, stride=1, dilation=2,
             residual=True, separable=True, dropout=0.2),
        dict(filters=64, repeat=1, kernel_size=3, stride=1, dilation=1,
             residual=False, separable=True, dropout=0.2),
    ]

    bkeys = jax.random.split(kp, len(blocks_conf))
    block_params = []
    cin = feat_in
    stride_val = 1
    for bk, cfg in zip(bkeys, blocks_conf):
        block_params.append(init_block(bk, cin, cfg))
        stride_val *= cfg["stride"] ** cfg["repeat"]
        cin = cfg["filters"]

    N, T = 2, 32
    features = jax.random.normal(kx, (N, feat_in, T), dtype=jnp.float32)  # NCT
    features_length = jnp.array([T, T - 5], dtype=jnp.int32)

    # time_tile_cap=16 -> two time tiles per batch element, exercising the
    # (batch, time) parallel grid even at this toy sequence length.
    fwd = jax.jit(functools.partial(quartznet_forward, block_params, stride_val,
                                    time_tile_cap=16))
    encoded, encoded_len = fwd(features, features_length)
    jax.block_until_ready(encoded)
    jax.block_until_ready(encoded_len)

    assert encoded.shape == (N, blocks_conf[-1]["filters"], T), encoded.shape
    assert encoded_len.shape == (N,), encoded_len.shape
    assert bool(jnp.all(jnp.isfinite(encoded)))

    print("KERNEL_OK")
</pallas_src>

<mosaic_0001>
module attributes {stable_mosaic.version = 11 : i64} {
  func.func @_repeat_kernel(%arg0: i32, %arg1: i32, %arg2: memref<1x36x16xf32, #tpu.memory_space<vmem>>, %arg3: memref<80x32xbf16, #tpu.memory_space<vmem>>, %arg4: memref<1x32xf32, #tpu.memory_space<vmem>>, %arg5: memref<1x32xf32, #tpu.memory_space<vmem>>, %arg6: memref<1x16x32xf32, #tpu.memory_space<vmem>>) attributes {dimension_semantics = [#tpu.dimension_semantics<parallel>, #tpu.dimension_semantics<parallel>], iteration_bounds = array<i64: 2, 2>, scalar_prefetch = 0 : i64, scratch_operands = 0 : i64, tpu.core_type = #tpu.core_type<tc>, window_params = [{transform_indices = @transform_0, window_bounds = array<i64: 1, 36, 16>}, {pipeline_mode = #tpu.pipeline_mode<synchronous>, transform_indices = @transform_1, window_bounds = array<i64: 80, 32>}, {pipeline_mode = #tpu.pipeline_mode<synchronous>, transform_indices = @transform_2, window_bounds = array<i64: 1, 32>}, {pipeline_mode = #tpu.pipeline_mode<synchronous>, transform_indices = @transform_3, window_bounds = array<i64: 1, 32>}, {transform_indices = @transform_4, window_bounds = array<i64: 1, 16, 32>}]} {
    %c16_i32 = arith.constant 16 : i32
    %0 = arith.muli %arg1, %c16_i32 : i32
    %1 = tpu.assume_multiple %0, 8 : i32
    %c0 = arith.constant 0 : index
    %2 = arith.index_cast %1 : i32 to index
    %c0_0 = arith.constant 0 : index
    %3 = vector.load %arg2[%c0, %2, %c0_0] : memref<1x36x16xf32, #tpu.memory_space<vmem>>, vector<1x20x16xf32>
    %4 = vector.shape_cast %3 : vector<1x20x16xf32> to vector<20x16xf32>
    %5 = vector.extract_strided_slice %4 {offsets = [0, 0], sizes = [16, 16], strides = [1, 1]} : vector<20x16xf32> to vector<16x16xf32>
    %6 = vector.extract_strided_slice %4 {offsets = [1, 0], sizes = [16, 16], strides = [1, 1]} : vector<20x16xf32> to vector<16x16xf32>
    %7 = vector.extract_strided_slice %4 {offsets = [2, 0], sizes = [16, 16], strides = [1, 1]} : vector<20x16xf32> to vector<16x16xf32>
    %8 = vector.extract_strided_slice %4 {offsets = [3, 0], sizes = [16, 16], strides = [1, 1]} : vector<20x16xf32> to vector<16x16xf32>
    %9 = vector.extract_strided_slice %4 {offsets = [4, 0], sizes = [16, 16], strides = [1, 1]} : vector<20x16xf32> to vector<16x16xf32>
    %10 = tpu.concatenate %5, %6, %7, %8, %9 in 1 : vector<16x16xf32>, vector<16x16xf32>, vector<16x16xf32>, vector<16x16xf32>, vector<16x16xf32> -> vector<16x80xf32>
    %11 = arith.truncf %10 : vector<16x80xf32> to vector<16x80xbf16>
    %c0_1 = arith.constant 0 : index
    %c0_2 = arith.constant 0 : index
    %12 = vector.load %arg3[%c0_1, %c0_2] : memref<80x32xbf16, #tpu.memory_space<vmem>>, vector<80x32xbf16>
    %cst = arith.constant dense<0.000000e+00> : vector<16x32xf32>
    %13 = tpu.matmul %11, %12, %cst {dimension_numbers = #tpu.dot_dimension_numbers<[1], [0], [0], [1], [0, 0, 1, 1], [], []>} : vector<16x80xbf16>, vector<80x32xbf16>, vector<16x32xf32> -> vector<16x32xf32>
    %c0_3 = arith.constant 0 : index
    %c0_4 = arith.constant 0 : index
    %14 = vector.load %arg4[%c0_3, %c0_4] : memref<1x32xf32, #tpu.memory_space<vmem>>, vector<1x32xf32>
    %15 = vector.broadcast %14 : vector<1x32xf32> to vector<16x32xf32>
    %16 = arith.mulf %13, %15 : vector<16x32xf32>
    %c0_5 = arith.constant 0 : index
    %c0_6 = arith.constant 0 : index
    %17 = vector.load %arg5[%c0_5, %c0_6] : memref<1x32xf32, #tpu.memory_space<vmem>>, vector<1x32xf32>
    %18 = vector.broadcast %17 : vector<1x32xf32> to vector<16x32xf32>
    %19 = arith.addf %16, %18 : vector<16x32xf32>
    %cst_7 = arith.constant 0.000000e+00 : f32
    %20 = vector.broadcast %cst_7 : f32 to vector<16x32xf32>
    %21 = arith.maximumf %19, %20 : vector<16x32xf32>
    %c0_8 = arith.constant 0 : index
    %c0_9 = arith.constant 0 : index
    %c0_10 = arith.constant 0 : index
    %22 = vector.load %arg6[%c0_8, %c0_9, %c0_10] : memref<1x16x32xf32, #tpu.memory_space<vmem>>, vector<1x16x32xf32>
    %23 = vector.shape_cast %22 : vector<1x16x32xf32> to vector<16x32xf32>
    %24 = vector.shape_cast %21 : vector<16x32xf32> to vector<1x16x32xf32>
    tpu.vector_store %arg6[%c0_8, %c0_9, %c0_10], %24 {strides = array<i32>} : memref<1x16x32xf32, #tpu.memory_space<vmem>>, vector<1x16x32xf32>,
    return
  }
  func.func @transform_0(%arg0: i32, %arg1: i32) -> (i32, i32, i32) {
    %c0_i32 = arith.constant 0 : i32
    %c0_i32_0 = arith.constant 0 : i32
    %c0_i32_1 = arith.constant 0 : i32
    return %arg0, %c0_i32, %c0_i32_0 : i32, i32, i32
  }
  func.func @transform_1(%arg0: i32, %arg1: i32) -> (i32, i32) {
    %c0_i32 = arith.constant 0 : i32
    %c0_i32_0 = arith.constant 0 : i32
    %c0_i32_1 = arith.constant 0 : i32
    return %c0_i32, %c0_i32_0 : i32, i32
  }
  func.func @transform_2(%arg0: i32, %arg1: i32) -> (i32, i32) {
    %c0_i32 = arith.constant 0 : i32
    %c0_i32_0 = arith.constant 0 : i32
    %c0_i32_1 = arith.constant 0 : i32
    return %c0_i32, %c0_i32_0 : i32, i32
  }
  func.func @transform_3(%arg0: i32, %arg1: i32) -> (i32, i32) {
    %c0_i32 = arith.constant 0 : i32
    %c0_i32_0 = arith.constant 0 : i32
    %c0_i32_1 = arith.constant 0 : i32
    return %c0_i32, %c0_i32_0 : i32, i32
  }
  func.func @transform_4(%arg0: i32, %arg1: i32) -> (i32, i32, i32) {
    %c0_i32 = arith.constant 0 : i32
    %c0_i32_0 = arith.constant 0 : i32
    return %arg0, %arg1, %c0_i32 : i32, i32, i32
  }
}

module attributes {stable_mosaic.version = 11 : i64} {
  func.func @_repeat_kernel(%arg0: i32, %arg1: i32, %arg2: memref<1x36x32xf32, #tpu.memory_space<vmem>>, %arg3: memref<160x32xbf16, #tpu.memory_space<vmem>>, %arg4: memref<1x32xf32, #tpu.memory_space<vmem>>, %arg5: memref<1x32xf32, #tpu.memory_space<vmem>>, %arg6: memref<1x16x16xf32, #tpu.memory_space<vmem>>, %arg7: memref<16x32xbf16, #tpu.memory_space<vmem>>, %arg8: memref<1x32xf32, #tpu.memory_space<vmem>>, %arg9: memref<1x32xf32, #tpu.memory_space<vmem>>, %arg10: memref<1x16x32xf32, #tpu.memory_space<vmem>>) attributes {dimension_semantics = [#tpu.dimension_semantics<parallel>, #tpu.dimension_semantics<parallel>], iteration_bounds = array<i64: 2, 2>, scalar_prefetch = 0 : i64, scratch_operands = 0 : i64, tpu.core_type = #tpu.core_type<tc>, window_params = [{transform_indices = @transform_0, window_bounds = array<i64: 1, 36, 32>}, {pipeline_mode = #tpu.pipeline_mode<synchronous>, transform_indices = @transform_1, window_bounds = array<i64: 160, 32>}, {pipeline_mode = #tpu.pipeline_mode<synchronous>, transform_indices = @transform_2, window_bounds = array<i64: 1, 32>}, {pipeline_mode = #tpu.pipeline_mode<synchronous>, transform_indices = @transform_3, window_bounds = array<i64: 1, 32>}, {transform_indices = @transform_4, window_bounds = array<i64: 1, 16, 16>}, {pipeline_mode = #tpu.pipeline_mode<synchronous>, transform_indices = @transform_5, window_bounds = array<i64: 16, 32>}, {pipeline_mode = #tpu.pipeline_mode<synchronous>, transform_indices = @transform_6, window_bounds = array<i64: 1, 32>}, {pipeline_mode = #tpu.pipeline_mode<synchronous>, transform_indices = @transform_7, window_bounds = array<i64: 1, 32>}, {transform_indices = @transform_8, window_bounds = array<i64: 1, 16, 32>}]} {
    %c16_i32 = arith.constant 16 : i32
    %0 = arith.muli %arg1, %c16_i32 : i32
    %1 = tpu.assume_multiple %0, 8 : i32
    %c0 = arith.constant 0 : index
    %2 = arith.index_cast %1 : i32 to index
    %c0_0 = arith.constant 0 : index
    %3 = vector.load %arg2[%c0, %2, %c0_0] : memref<1x36x32xf32, #tpu.memory_space<vmem>>, vector<1x20x32xf32>
    %4 = vector.shape_cast %3 : vector<1x20x32xf32> to vector<20x32xf32>
    %5 = vector.extract_strided_slice %4 {offsets = [0, 0], sizes = [16, 32], strides = [1, 1]} : vector<20x32xf32> to vector<16x32xf32>
    %6 = vector.extract_strided_slice %4 {offsets = [1, 0], sizes = [16, 32], strides = [1, 1]} : vector<20x32xf32> to vector<16x32xf32>
    %7 = vector.extract_strided_slice %4 {offsets = [2, 0], sizes = [16, 32], strides = [1, 1]} : vector<20x32xf32> to vector<16x32xf32>
    %8 = vector.extract_strided_slice %4 {offsets = [3, 0], sizes = [16, 32], strides = [1, 1]} : vector<20x32xf32> to vector<16x32xf32>
    %9 = vector.extract_strided_slice %4 {offsets = [4, 0], sizes = [16, 32], strides = [1, 1]} : vector<20x32xf32> to vector<16x32xf32>
    %10 = tpu.concatenate %5, %6, %7, %8, %9 in 1 : vector<16x32xf32>, vector<16x32xf32>, vector<16x32xf32>, vector<16x32xf32>, vector<16x32xf32> -> vector<16x160xf32>
    %11 = arith.truncf %10 : vector<16x160xf32> to vector<16x160xbf16>
    %c0_1 = arith.constant 0 : index
    %c0_2 = arith.constant 0 : index
    %12 = vector.load %arg3[%c0_1, %c0_2] : memref<160x32xbf16, #tpu.memory_space<vmem>>, vector<160x32xbf16>
    %cst = arith.constant dense<0.000000e+00> : vector<16x32xf32>
    %13 = tpu.matmul %11, %12, %cst {dimension_numbers = #tpu.dot_dimension_numbers<[1], [0], [0], [1], [0, 0, 1, 1], [], []>} : vector<16x160xbf16>, vector<160x32xbf16>, vector<16x32xf32> -> vector<16x32xf32>
    %c0_3 = arith.constant 0 : index
    %c0_4 = arith.constant 0 : index
    %14 = vector.load %arg4[%c0_3, %c0_4] : memref<1x32xf32, #tpu.memory_space<vmem>>, vector<1x32xf32>
    %15 = vector.broadcast %14 : vector<1x32xf32> to vector<16x32xf32>
    %16 = arith.mulf %13, %15 : vector<16x32xf32>
    %c0_5 = arith.constant 0 : index
    %c0_6 = arith.constant 0 : index
    %17 = vector.load %arg5[%c0_5, %c0_6] : memref<1x32xf32, #tpu.memory_space<vmem>>, vector<1x32xf32>
    %18 = vector.broadcast %17 : vector<1x32xf32> to vector<16x32xf32>
    %19 = arith.addf %16, %18 : vector<16x32xf32>
    %c0_7 = arith.constant 0 : index
    %c0_8 = arith.constant 0 : index
    %c0_9 = arith.constant 0 : index
    %20 = vector.load %arg6[%c0_7, %c0_8, %c0_9] : memref<1x16x16xf32, #tpu.memory_space<vmem>>, vector<1x16x16xf32>
    %21 = vector.shape_cast %20 : vector<1x16x16xf32> to vector<16x16xf32>
    %22 = arith.truncf %21 : vector<16x16xf32> to vector<16x16xbf16>
    %c0_10 = arith.constant 0 : index
    %c0_11 = arith.constant 0 : index
    %23 = vector.load %arg7[%c0_10, %c0_11] : memref<16x32xbf16, #tpu.memory_space<vmem>>, vector<16x32xbf16>
    %cst_12 = arith.constant dense<0.000000e+00> : vector<16x32xf32>
    %24 = tpu.matmul %22, %23, %cst_12 {dimension_numbers = #tpu.dot_dimension_numbers<[1], [0], [0], [1], [0, 0, 1, 1], [], []>} : vector<16x16xbf16>, vector<16x32xbf16>, vector<16x32xf32> -> vector<16x32xf32>
    %c0_13 = arith.constant 0 : index
    %c0_14 = arith.constant 0 : index
    %25 = vector.load %arg8[%c0_13, %c0_14] : memref<1x32xf32, #tpu.memory_space<vmem>>, vector<1x32xf32>
    %26 = vector.broadcast %25 : vector<1x32xf32> to vector<16x32xf32>
    %27 = arith.mulf %24, %26 : vector<16x32xf32>
    %28 = arith.addf %19, %27 : vector<16x32xf32>
    %c0_15 = arith.constant 0 : index
    %c0_16 = arith.constant 0 : index
    %29 = vector.load %arg9[%c0_15, %c0_16] : memref<1x32xf32, #tpu.memory_space<vmem>>, vector<1x32xf32>
    %30 = vector.broadcast %29 : vector<1x32xf32> to vector<16x32xf32>
    %31 = arith.addf %28, %30 : vector<16x32xf32>
    %cst_17 = arith.constant 0.000000e+00 : f32
    %32 = vector.broadcast %cst_17 : f32 to vector<16x32xf32>
    %33 = arith.maximumf %31, %32 : vector<16x32xf32>
    %c0_18 = arith.constant 0 : index
    %c0_19 = arith.constant 0 : index
    %c0_20 = arith.constant 0 : index
    %34 = vector.load %arg10[%c0_18, %c0_19, %c0_20] : memref<1x16x32xf32, #tpu.memory_space<vmem>>, vector<1x16x32xf32>
    %35 = vector.shape_cast %34 : vector<1x16x32xf32> to vector<16x32xf32>
    %36 = vector.shape_cast %33 : vector<16x32xf32> to vector<1x16x32xf32>
    tpu.vector_store %arg10[%c0_18, %c0_19, %c0_20], %36 {strides = array<i32>} : memref<1x16x32xf32, #tpu.memory_space<vmem>>, vector<1x16x32xf32>,
    return
  }
  func.func @transform_0(%arg0: i32, %arg1: i32) -> (i32, i32, i32) {
    %c0_i32 = arith.constant 0 : i32
    %c0_i32_0 = arith.constant 0 : i32
    %c0_i32_1 = arith.constant 0 : i32
    return %arg0, %c0_i32, %c0_i32_0 : i32, i32, i32
  }
  func.func @transform_1(%arg0: i32, %arg1: i32) -> (i32, i32) {
    %c0_i32 = arith.constant 0 : i32
    %c0_i32_0 = arith.constant 0 : i32
    %c0_i32_1 = arith.constant 0 : i32
    return %c0_i32, %c0_i32_0 : i32, i32
  }
  func.func @transform_2(%arg0: i32, %arg1: i32) -> (i32, i32) {
    %c0_i32 = arith.constant 0 : i32
    %c0_i32_0 = arith.constant 0 : i32
    %c0_i32_1 = arith.constant 0 : i32
    return %c0_i32, %c0_i32_0 : i32, i32
  }
  func.func @transform_3(%arg0: i32, %arg1: i32) -> (i32, i32) {
    %c0_i32 = arith.constant 0 : i32
    %c0_i32_0 = arith.constant 0 : i32
    %c0_i32_1 = arith.constant 0 : i32
    return %c0_i32, %c0_i32_0 : i32, i32
  }
  func.func @transform_4(%arg0: i32, %arg1: i32) -> (i32, i32, i32) {
    %c0_i32 = arith.constant 0 : i32
    %c0_i32_0 = arith.constant 0 : i32
    return %arg0, %arg1, %c0_i32 : i32, i32, i32
  }
  func.func @transform_5(%arg0: i32, %arg1: i32) -> (i32, i32) {
    %c0_i32 = arith.constant 0 : i32
    %c0_i32_0 = arith.constant 0 : i32
    %c0_i32_1 = arith.constant 0 : i32
    return %c0_i32, %c0_i32_0 : i32, i32
  }
  func.func @transform_6(%arg0: i32, %arg1: i32) -> (i32, i32) {
    %c0_i32 = arith.constant 0 : i32
    %c0_i32_0 = arith.constant 0 : i32
    %c0_i32_1 = arith.constant 0 : i32
    return %c0_i32, %c0_i32_0 : i32, i32
  }
  func.func @transform_7(%arg0: i32, %arg1: i32) -> (i32, i32) {
    %c0_i32 = arith.constant 0 : i32
    %c0_i32_0 = arith.constant 0 : i32
    %c0_i32_1 = arith.constant 0 : i32
    return %c0_i32, %c0_i32_0 : i32, i32
  }
  func.func @transform_8(%arg0: i32, %arg1: i32) -> (i32, i32, i32) {
    %c0_i32 = arith.constant 0 : i32
    %c0_i32_0 = arith.constant 0 : i32
    return %arg0, %arg1, %c0_i32 : i32, i32, i32
  }
}

module attributes {stable_mosaic.version = 11 : i64} {
  func.func @_repeat_kernel(%arg0: i32, %arg1: i32, %arg2: memref<1x36x32xf32, #tpu.memory_space<vmem>>, %arg3: memref<3x32xf32, #tpu.memory_space<vmem>>, %arg4: memref<1x32xf32, #tpu.memory_space<vmem>>, %arg5: memref<32x32xbf16, #tpu.memory_space<vmem>>, %arg6: memref<1x32xf32, #tpu.memory_space<vmem>>, %arg7: memref<1x32xf32, #tpu.memory_space<vmem>>, %arg8: memref<1x16x32xf32, #tpu.memory_space<vmem>>) attributes {dimension_semantics = [#tpu.dimension_semantics<parallel>, #tpu.dimension_semantics<parallel>], iteration_bounds = array<i64: 2, 2>, scalar_prefetch = 0 : i64, scratch_operands = 0 : i64, tpu.core_type = #tpu.core_type<tc>, window_params = [{transform_indices = @transform_0, window_bounds = array<i64: 1, 36, 32>}, {pipeline_mode = #tpu.pipeline_mode<synchronous>, transform_indices = @transform_1, window_bounds = array<i64: 3, 32>}, {pipeline_mode = #tpu.pipeline_mode<synchronous>, transform_indices = @transform_2, window_bounds = array<i64: 1, 32>}, {pipeline_mode = #tpu.pipeline_mode<synchronous>, transform_indices = @transform_3, window_bounds = array<i64: 32, 32>}, {pipeline_mode = #tpu.pipeline_mode<synchronous>, transform_indices = @transform_4, window_bounds = array<i64: 1, 32>}, {pipeline_mode = #tpu.pipeline_mode<synchronous>, transform_indices = @transform_5, window_bounds = array<i64: 1, 32>}, {transform_indices = @transform_6, window_bounds = array<i64: 1, 16, 32>}]} {
    %c16_i32 = arith.constant 16 : i32
    %0 = arith.muli %arg1, %c16_i32 : i32
    %1 = tpu.assume_multiple %0, 8 : i32
    %c0 = arith.constant 0 : index
    %2 = arith.index_cast %1 : i32 to index
    %c0_0 = arith.constant 0 : index
    %3 = vector.load %arg2[%c0, %2, %c0_0] : memref<1x36x32xf32, #tpu.memory_space<vmem>>, vector<1x20x32xf32>
    %4 = vector.shape_cast %3 : vector<1x20x32xf32> to vector<20x32xf32>
    %c0_1 = arith.constant 0 : index
    %c0_2 = arith.constant 0 : index
    %5 = vector.load %arg3[%c0_1, %c0_2] : memref<3x32xf32, #tpu.memory_space<vmem>>, vector<3x32xf32>
    %cst = arith.constant 0.000000e+00 : f32
    %6 = vector.broadcast %cst : f32 to vector<16x32xf32>
    %7 = vector.extract_strided_slice %4 {offsets = [0, 0], sizes = [16, 32], strides = [1, 1]} : vector<20x32xf32> to vector<16x32xf32>
    %8 = vector.extract_strided_slice %5 {offsets = [0, 0], sizes = [1, 32], strides = [1, 1]} : vector<3x32xf32> to vector<1x32xf32>
    %9 = vector.broadcast %8 : vector<1x32xf32> to vector<16x32xf32>
    %10 = arith.mulf %7, %9 : vector<16x32xf32>
    %11 = arith.addf %6, %10 : vector<16x32xf32>
    %12 = vector.extract_strided_slice %4 {offsets = [2, 0], sizes = [16, 32], strides = [1, 1]} : vector<20x32xf32> to vector<16x32xf32>
    %13 = vector.extract_strided_slice %5 {offsets = [1, 0], sizes = [1, 32], strides = [1, 1]} : vector<3x32xf32> to vector<1x32xf32>
    %14 = vector.broadcast %13 : vector<1x32xf32> to vector<16x32xf32>
    %15 = arith.mulf %12, %14 : vector<16x32xf32>
    %16 = arith.addf %11, %15 : vector<16x32xf32>
    %17 = vector.extract_strided_slice %4 {offsets = [4, 0], sizes = [16, 32], strides = [1, 1]} : vector<20x32xf32> to vector<16x32xf32>
    %18 = vector.extract_strided_slice %5 {offsets = [2, 0], sizes = [1, 32], strides = [1, 1]} : vector<3x32xf32> to vector<1x32xf32>
    %19 = vector.broadcast %18 : vector<1x32xf32> to vector<16x32xf32>
    %20 = arith.mulf %17, %19 : vector<16x32xf32>
    %21 = arith.addf %16, %20 : vector<16x32xf32>
    %c0_3 = arith.constant 0 : index
    %c0_4 = arith.constant 0 : index
    %22 = vector.load %arg4[%c0_3, %c0_4] : memref<1x32xf32, #tpu.memory_space<vmem>>, vector<1x32xf32>
    %23 = vector.broadcast %22 : vector<1x32xf32> to vector<16x32xf32>
    %24 = arith.addf %21, %23 : vector<16x32xf32>
    %25 = arith.truncf %24 : vector<16x32xf32> to vector<16x32xbf16>
    %c0_5 = arith.constant 0 : index
    %c0_6 = arith.constant 0 : index
    %26 = vector.load %arg5[%c0_5, %c0_6] : memref<32x32xbf16, #tpu.memory_space<vmem>>, vector<32x32xbf16>
    %cst_7 = arith.constant dense<0.000000e+00> : vector<16x32xf32>
    %27 = tpu.matmul %25, %26, %cst_7 {dimension_numbers = #tpu.dot_dimension_numbers<[1], [0], [0], [1], [0, 0, 1, 1], [], []>} : vector<16x32xbf16>, vector<32x32xbf16>, vector<16x32xf32> -> vector<16x32xf32>
    %c0_8 = arith.constant 0 : index
    %c0_9 = arith.constant 0 : index
    %28 = vector.load %arg6[%c0_8, %c0_9] : memref<1x32xf32, #tpu.memory_space<vmem>>, vector<1x32xf32>
    %29 = vector.broadcast %28 : vector<1x32xf32> to vector<16x32xf32>
    %30 = arith.mulf %27, %29 : vector<16x32xf32>
    %c0_10 = arith.constant 0 : index
    %c0_11 = arith.constant 0 : index
    %31 = vector.load %arg7[%c0_10, %c0_11] : memref<1x32xf32, #tpu.memory_space<vmem>>, vector<1x32xf32>
    %32 = vector.broadcast %31 : vector<1x32xf32> to vector<16x32xf32>
    %33 = arith.addf %30, %32 : vector<16x32xf32>
    %cst_12 = arith.constant 0.000000e+00 : f32
    %34 = vector.broadcast %cst_12 : f32 to vector<16x32xf32>
    %35 = arith.maximumf %33, %34 : vector<16x32xf32>
    %c0_13 = arith.constant 0 : index
    %c0_14 = arith.constant 0 : index
    %c0_15 = arith.constant 0 : index
    %36 = vector.load %arg8[%c0_13, %c0_14, %c0_15] : memref<1x16x32xf32, #tpu.memory_space<vmem>>, vector<1x16x32xf32>
    %37 = vector.shape_cast %36 : vector<1x16x32xf32> to vector<16x32xf32>
    %38 = vector.shape_cast %35 : vector<16x32xf32> to vector<1x16x32xf32>
    tpu.vector_store %arg8[%c0_13, %c0_14, %c0_15], %38 {strides = array<i32>} : memref<1x16x32xf32, #tpu.memory_space<vmem>>, vector<1x16x32xf32>,
    return
  }
  func.func @transform_0(%arg0: i32, %arg1: i32) -> (i32, i32, i32) {
    %c0_i32 = arith.constant 0 : i32
    %c0_i32_0 = arith.constant 0 : i32
    %c0_i32_1 = arith.constant 0 : i32
    return %arg0, %c0_i32, %c0_i32_0 : i32, i32, i32
  }
  func.func @transform_1(%arg0: i32, %arg1: i32) -> (i32, i32) {
    %c0_i32 = arith.constant 0 : i32
    %c0_i32_0 = arith.constant 0 : i32
    %c0_i32_1 = arith.constant 0 : i32
    return %c0_i32, %c0_i32_0 : i32, i32
  }
  func.func @transform_2(%arg0: i32, %arg1: i32) -> (i32, i32) {
    %c0_i32 = arith.constant 0 : i32
    %c0_i32_0 = arith.constant 0 : i32
    %c0_i32_1 = arith.constant 0 : i32
    return %c0_i32, %c0_i32_0 : i32, i32
  }
  func.func @transform_3(%arg0: i32, %arg1: i32) -> (i32, i32) {
    %c0_i32 = arith.constant 0 : i32
    %c0_i32_0 = arith.constant 0 : i32
    %c0_i32_1 = arith.constant 0 : i32
    return %c0_i32, %c0_i32_0 : i32, i32
  }
  func.func @transform_4(%arg0: i32, %arg1: i32) -> (i32, i32) {
    %c0_i32 = arith.constant 0 : i32
    %c0_i32_0 = arith.constant 0 : i32
    %c0_i32_1 = arith.constant 0 : i32
    return %c0_i32, %c0_i32_0 : i32, i32
  }
  func.func @transform_5(%arg0: i32, %arg1: i32) -> (i32, i32) {
    %c0_i32 = arith.constant 0 : i32
    %c0_i32_0 = arith.constant 0 : i32
    %c0_i32_1 = arith.constant 0 : i32
    return %c0_i32, %c0_i32_0 : i32, i32
  }
  func.func @transform_6(%arg0: i32, %arg1: i32) -> (i32, i32, i32) {
    %c0_i32 = arith.constant 0 : i32
    %c0_i32_0 = arith.constant 0 : i32
    return %arg0, %arg1, %c0_i32 : i32, i32, i32
  }
}

module attributes {stable_mosaic.version = 11 : i64} {
  func.func @_repeat_kernel(%arg0: i32, %arg1: i32, %arg2: memref<1x36x32xf32, #tpu.memory_space<vmem>>, %arg3: memref<3x32xf32, #tpu.memory_space<vmem>>, %arg4: memref<1x32xf32, #tpu.memory_space<vmem>>, %arg5: memref<32x32xbf16, #tpu.memory_space<vmem>>, %arg6: memref<1x32xf32, #tpu.memory_space<vmem>>, %arg7: memref<1x32xf32, #tpu.memory_space<vmem>>, %arg8: memref<1x16x32xf32, #tpu.memory_space<vmem>>, %arg9: memref<32x32xbf16, #tpu.memory_space<vmem>>, %arg10: memref<1x32xf32, #tpu.memory_space<vmem>>, %arg11: memref<1x32xf32, #tpu.memory_space<vmem>>, %arg12: memref<1x16x32xf32, #tpu.memory_space<vmem>>) attributes {dimension_semantics = [#tpu.dimension_semantics<parallel>, #tpu.dimension_semantics<parallel>], iteration_bounds = array<i64: 2, 2>, scalar_prefetch = 0 : i64, scratch_operands = 0 : i64, tpu.core_type = #tpu.core_type<tc>, window_params = [{transform_indices = @transform_0, window_bounds = array<i64: 1, 36, 32>}, {pipeline_mode = #tpu.pipeline_mode<synchronous>, transform_indices = @transform_1, window_bounds = array<i64: 3, 32>}, {pipeline_mode = #tpu.pipeline_mode<synchronous>, transform_indices = @transform_2, window_bounds = array<i64: 1, 32>}, {pipeline_mode = #tpu.pipeline_mode<synchronous>, transform_indices = @transform_3, window_bounds = array<i64: 32, 32>}, {pipeline_mode = #tpu.pipeline_mode<synchronous>, transform_indices = @transform_4, window_bounds = array<i64: 1, 32>}, {pipeline_mode = #tpu.pipeline_mode<synchronous>, transform_indices = @transform_5, window_bounds = array<i64: 1, 32>}, {transform_indices = @transform_6, window_bounds = array<i64: 1, 16, 32>}, {pipeline_mode = #tpu.pipeline_mode<synchronous>, transform_indices = @transform_7, window_bounds = array<i64: 32, 32>}, {pipeline_mode = #tpu.pipeline_mode<synchronous>, transform_indices = @transform_8, window_bounds = array<i64: 1, 32>}, {pipeline_mode = #tpu.pipeline_mode<synchronous>, transform_indices = @transform_9, window_bounds = array<i64: 1, 32>}, {transform_indices = @transform_10, window_bounds = array<i64: 1, 16, 32>}]} {
    %c16_i32 = arith.constant 16 : i32
    %0 = arith.muli %arg1, %c16_i32 : i32
    %1 = tpu.assume_multiple %0, 8 : i32
    %c0 = arith.constant 0 : index
    %2 = arith.index_cast %1 : i32 to index
    %c0_0 = arith.constant 0 : index
    %3 = vector.load %arg2[%c0, %2, %c0_0] : memref<1x36x32xf32, #tpu.memory_space<vmem>>, vector<1x20x32xf32>
    %4 = vector.shape_cast %3 : vector<1x20x32xf32> to vector<20x32xf32>
    %c0_1 = arith.constant 0 : index
    %c0_2 = arith.constant 0 : index
    %5 = vector.load %arg3[%c0_1, %c0_2] : memref<3x32xf32, #tpu.memory_space<vmem>>, vector<3x32xf32>
    %cst = arith.constant 0.000000e+00 : f32
    %6 = vector.broadcast %cst : f32 to vector<16x32xf32>
    %7 = vector.extract_strided_slice %4 {offsets = [0, 0], sizes = [16, 32], strides = [1, 1]} : vector<20x32xf32> to vector<16x32xf32>
    %8 = vector.extract_strided_slice %5 {offsets = [0, 0], sizes = [1, 32], strides = [1, 1]} : vector<3x32xf32> to vector<1x32xf32>
    %9 = vector.broadcast %8 : vector<1x32xf32> to vector<16x32xf32>
    %10 = arith.mulf %7, %9 : vector<16x32xf32>
    %11 = arith.addf %6, %10 : vector<16x32xf32>
    %12 = vector.extract_strided_slice %4 {offsets = [2, 0], sizes = [16, 32], strides = [1, 1]} : vector<20x32xf32> to vector<16x32xf32>
    %13 = vector.extract_strided_slice %5 {offsets = [1, 0], sizes = [1, 32], strides = [1, 1]} : vector<3x32xf32> to vector<1x32xf32>
    %14 = vector.broadcast %13 : vector<1x32xf32> to vector<16x32xf32>
    %15 = arith.mulf %12, %14 : vector<16x32xf32>
    %16 = arith.addf %11, %15 : vector<16x32xf32>
    %17 = vector.extract_strided_slice %4 {offsets = [4, 0], sizes = [16, 32], strides = [1, 1]} : vector<20x32xf32> to vector<16x32xf32>
    %18 = vector.extract_strided_slice %5 {offsets = [2, 0], sizes = [1, 32], strides = [1, 1]} : vector<3x32xf32> to vector<1x32xf32>
    %19 = vector.broadcast %18 : vector<1x32xf32> to vector<16x32xf32>
    %20 = arith.mulf %17, %19 : vector<16x32xf32>
    %21 = arith.addf %16, %20 : vector<16x32xf32>
    %c0_3 = arith.constant 0 : index
    %c0_4 = arith.constant 0 : index
    %22 = vector.load %arg4[%c0_3, %c0_4] : memref<1x32xf32, #tpu.memory_space<vmem>>, vector<1x32xf32>
    %23 = vector.broadcast %22 : vector<1x32xf32> to vector<16x32xf32>
    %24 = arith.addf %21, %23 : vector<16x32xf32>
    %25 = arith.truncf %24 : vector<16x32xf32> to vector<16x32xbf16>
    %c0_5 = arith.constant 0 : index
    %c0_6 = arith.constant 0 : index
    %26 = vector.load %arg5[%c0_5, %c0_6] : memref<32x32xbf16, #tpu.memory_space<vmem>>, vector<32x32xbf16>
    %cst_7 = arith.constant dense<0.000000e+00> : vector<16x32xf32>
    %27 = tpu.matmul %25, %26, %cst_7 {dimension_numbers = #tpu.dot_dimension_numbers<[1], [0], [0], [1], [0, 0, 1, 1], [], []>} : vector<16x32xbf16>, vector<32x32xbf16>, vector<16x32xf32> -> vector<16x32xf32>
    %c0_8 = arith.constant 0 : index
    %c0_9 = arith.constant 0 : index
    %28 = vector.load %arg6[%c0_8, %c0_9] : memref<1x32xf32, #tpu.memory_space<vmem>>, vector<1x32xf32>
    %29 = vector.broadcast %28 : vector<1x32xf32> to vector<16x32xf32>
    %30 = arith.mulf %27, %29 : vector<16x32xf32>
    %c0_10 = arith.constant 0 : index
    %c0_11 = arith.constant 0 : index
    %31 = vector.load %arg7[%c0_10, %c0_11] : memref<1x32xf32, #tpu.memory_space<vmem>>, vector<1x32xf32>
    %32 = vector.broadcast %31 : vector<1x32xf32> to vector<16x32xf32>
    %33 = arith.addf %30, %32 : vector<16x32xf32>
    %c0_12 = arith.constant 0 : index
    %c0_13 = arith.constant 0 : index
    %c0_14 = arith.constant 0 : index
    %34 = vector.load %arg8[%c0_12, %c0_13, %c0_14] : memref<1x16x32xf32, #tpu.memory_space<vmem>>, vector<1x16x32xf32>
    %35 = vector.shape_cast %34 : vector<1x16x32xf32> to vector<16x32xf32>
    %36 = arith.truncf %35 : vector<16x32xf32> to vector<16x32xbf16>
    %c0_15 = arith.constant 0 : index
    %c0_16 = arith.constant 0 : index
    %37 = vector.load %arg9[%c0_15, %c0_16] : memref<32x32xbf16, #tpu.memory_space<vmem>>, vector<32x32xbf16>
    %cst_17 = arith.constant dense<0.000000e+00> : vector<16x32xf32>
    %38 = tpu.matmul %36, %37, %cst_17 {dimension_numbers = #tpu.dot_dimension_numbers<[1], [0], [0], [1], [0, 0, 1, 1], [], []>} : vector<16x32xbf16>, vector<32x32xbf16>, vector<16x32xf32> -> vector<16x32xf32>
    %c0_18 = arith.constant 0 : index
    %c0_19 = arith.constant 0 : index
    %39 = vector.load %arg10[%c0_18, %c0_19] : memref<1x32xf32, #tpu.memory_space<vmem>>, vector<1x32xf32>
    %40 = vector.broadcast %39 : vector<1x32xf32> to vector<16x32xf32>
    %41 = arith.mulf %38, %40 : vector<16x32xf32>
    %42 = arith.addf %33, %41 : vector<16x32xf32>
    %c0_20 = arith.constant 0 : index
    %c0_21 = arith.constant 0 : index
    %43 = vector.load %arg11[%c0_20, %c0_21] : memref<1x32xf32, #tpu.memory_space<vmem>>, vector<1x32xf32>
    %44 = vector.broadcast %43 : vector<1x32xf32> to vector<16x32xf32>
    %45 = arith.addf %42, %44 : vector<16x32xf32>
    %cst_22 = arith.constant 0.000000e+00 : f32
    %46 = vector.broadcast %cst_22 : f32 to vector<16x32xf32>
    %47 = arith.maximumf %45, %46 : vector<16x32xf32>
    %c0_23 = arith.constant 0 : index
    %c0_24 = arith.constant 0 : index
    %c0_25 = arith.constant 0 : index
    %48 = vector.load %arg12[%c0_23, %c0_24, %c0_25] : memref<1x16x32xf32, #tpu.memory_space<vmem>>, vector<1x16x32xf32>
    %49 = vector.shape_cast %48 : vector<1x16x32xf32> to vector<16x32xf32>
    %50 = vector.shape_cast %47 : vector<16x32xf32> to vector<1x16x32xf32>
    tpu.vector_store %arg12[%c0_23, %c0_24, %c0_25], %50 {strides = array<i32>} : memref<1x16x32xf32, #tpu.memory_space<vmem>>, vector<1x16x32xf32>,
    return
  }
  func.func @transform_0(%arg0: i32, %arg1: i32) -> (i32, i32, i32) {
    %c0_i32 = arith.constant 0 : i32
    %c0_i32_0 = arith.constant 0 : i32
    %c0_i32_1 = arith.constant 0 : i32
    return %arg0, %c0_i32, %c0_i32_0 : i32, i32, i32
  }
  func.func @transform_1(%arg0: i32, %arg1: i32) -> (i32, i32) {
    %c0_i32 = arith.constant 0 : i32
    %c0_i32_0 = arith.constant 0 : i32
    %c0_i32_1 = arith.constant 0 : i32
    return %c0_i32, %c0_i32_0 : i32, i32
  }
  func.func @transform_2(%arg0: i32, %arg1: i32) -> (i32, i32) {
    %c0_i32 = arith.constant 0 : i32
    %c0_i32_0 = arith.constant 0 : i32
    %c0_i32_1 = arith.constant 0 : i32
    return %c0_i32, %c0_i32_0 : i32, i32
  }
  func.func @transform_3(%arg0: i32, %arg1: i32) -> (i32, i32) {
    %c0_i32 = arith.constant 0 : i32
    %c0_i32_0 = arith.constant 0 : i32
    %c0_i32_1 = arith.constant 0 : i32
    return %c0_i32, %c0_i32_0 : i32, i32
  }
  func.func @transform_4(%arg0: i32, %arg1: i32) -> (i32, i32) {
    %c0_i32 = arith.constant 0 : i32
    %c0_i32_0 = arith.constant 0 : i32
    %c0_i32_1 = arith.constant 0 : i32
    return %c0_i32, %c0_i32_0 : i32, i32
  }
  func.func @transform_5(%arg0: i32, %arg1: i32) -> (i32, i32) {
    %c0_i32 = arith.constant 0 : i32
    %c0_i32_0 = arith.constant 0 : i32
    %c0_i32_1 = arith.constant 0 : i32
    return %c0_i32, %c0_i32_0 : i32, i32
  }
  func.func @transform_6(%arg0: i32, %arg1: i32) -> (i32, i32, i32) {
    %c0_i32 = arith.constant 0 : i32
    %c0_i32_0 = arith.constant 0 : i32
    return %arg0, %arg1, %c0_i32 : i32, i32, i32
  }
  func.func @transform_7(%arg0: i32, %arg1: i32) -> (i32, i32) {
    %c0_i32 = arith.constant 0 : i32
    %c0_i32_0 = arith.constant 0 : i32
    %c0_i32_1 = arith.constant 0 : i32
    return %c0_i32, %c0_i32_0 : i32, i32
  }
  func.func @transform_8(%arg0: i32, %arg1: i32) -> (i32, i32) {
    %c0_i32 = arith.constant 0 : i32
    %c0_i32_0 = arith.constant 0 : i32
    %c0_i32_1 = arith.constant 0 : i32
    return %c0_i32, %c0_i32_0 : i32, i32
  }
  func.func @transform_9(%arg0: i32, %arg1: i32) -> (i32, i32) {
    %c0_i32 = arith.constant 0 : i32
    %c0_i32_0 = arith.constant 0 : i32
    %c0_i32_1 = arith.constant 0 : i32
    return %c0_i32, %c0_i32_0 : i32, i32
  }
  func.func @transform_10(%arg0: i32, %arg1: i32) -> (i32, i32, i32) {
    %c0_i32 = arith.constant 0 : i32
    %c0_i32_0 = arith.constant 0 : i32
    return %arg0, %arg1, %c0_i32 : i32, i32, i32
  }
}

module attributes {stable_mosaic.version = 11 : i64} {
  func.func @_repeat_kernel(%arg0: i32, %arg1: i32, %arg2: memref<1x34x32xf32, #tpu.memory_space<vmem>>, %arg3: memref<3x32xf32, #tpu.memory_space<vmem>>, %arg4: memref<1x32xf32, #tpu.memory_space<vmem>>, %arg5: memref<32x64xbf16, #tpu.memory_space<vmem>>, %arg6: memref<1x64xf32, #tpu.memory_space<vmem>>, %arg7: memref<1x64xf32, #tpu.memory_space<vmem>>, %arg8: memref<1x16x64xf32, #tpu.memory_space<vmem>>) attributes {dimension_semantics = [#tpu.dimension_semantics<parallel>, #tpu.dimension_semantics<parallel>], iteration_bounds = array<i64: 2, 2>, scalar_prefetch = 0 : i64, scratch_operands = 0 : i64, tpu.core_type = #tpu.core_type<tc>, window_params = [{transform_indices = @transform_0, window_bounds = array<i64: 1, 34, 32>}, {pipeline_mode = #tpu.pipeline_mode<synchronous>, transform_indices = @transform_1, window_bounds = array<i64: 3, 32>}, {pipeline_mode = #tpu.pipeline_mode<synchronous>, transform_indices = @transform_2, window_bounds = array<i64: 1, 32>}, {pipeline_mode = #tpu.pipeline_mode<synchronous>, transform_indices = @transform_3, window_bounds = array<i64: 32, 64>}, {pipeline_mode = #tpu.pipeline_mode<synchronous>, transform_indices = @transform_4, window_bounds = array<i64: 1, 64>}, {pipeline_mode = #tpu.pipeline_mode<synchronous>, transform_indices = @transform_5, window_bounds = array<i64: 1, 64>}, {transform_indices = @transform_6, window_bounds = array<i64: 1, 16, 64>}]} {
    %c16_i32 = arith.constant 16 : i32
    %0 = arith.muli %arg1, %c16_i32 : i32
    %1 = tpu.assume_multiple %0, 8 : i32
    %c0 = arith.constant 0 : index
    %2 = arith.index_cast %1 : i32 to index
    %c0_0 = arith.constant 0 : index
    %3 = vector.load %arg2[%c0, %2, %c0_0] : memref<1x34x32xf32, #tpu.memory_space<vmem>>, vector<1x18x32xf32>
    %4 = vector.shape_cast %3 : vector<1x18x32xf32> to vector<18x32xf32>
    %c0_1 = arith.constant 0 : index
    %c0_2 = arith.constant 0 : index
    %5 = vector.load %arg3[%c0_1, %c0_2] : memref<3x32xf32, #tpu.memory_space<vmem>>, vector<3x32xf32>
    %cst = arith.constant 0.000000e+00 : f32
    %6 = vector.broadcast %cst : f32 to vector<16x32xf32>
    %7 = vector.extract_strided_slice %4 {offsets = [0, 0], sizes = [16, 32], strides = [1, 1]} : vector<18x32xf32> to vector<16x32xf32>
    %8 = vector.extract_strided_slice %5 {offsets = [0, 0], sizes = [1, 32], strides = [1, 1]} : vector<3x32xf32> to vector<1x32xf32>
    %9 = vector.broadcast %8 : vector<1x32xf32> to vector<16x32xf32>
    %10 = arith.mulf %7, %9 : vector<16x32xf32>
    %11 = arith.addf %6, %10 : vector<16x32xf32>
    %12 = vector.extract_strided_slice %4 {offsets = [1, 0], sizes = [16, 32], strides = [1, 1]} : vector<18x32xf32> to vector<16x32xf32>
    %13 = vector.extract_strided_slice %5 {offsets = [1, 0], sizes = [1, 32], strides = [1, 1]} : vector<3x32xf32> to vector<1x32xf32>
    %14 = vector.broadcast %13 : vector<1x32xf32> to vector<16x32xf32>
    %15 = arith.mulf %12, %14 : vector<16x32xf32>
    %16 = arith.addf %11, %15 : vector<16x32xf32>
    %17 = vector.extract_strided_slice %4 {offsets = [2, 0], sizes = [16, 32], strides = [1, 1]} : vector<18x32xf32> to vector<16x32xf32>
    %18 = vector.extract_strided_slice %5 {offsets = [2, 0], sizes = [1, 32], strides = [1, 1]} : vector<3x32xf32> to vector<1x32xf32>
    %19 = vector.broadcast %18 : vector<1x32xf32> to vector<16x32xf32>
    %20 = arith.mulf %17, %19 : vector<16x32xf32>
    %21 = arith.addf %16, %20 : vector<16x32xf32>
    %c0_3 = arith.constant 0 : index
    %c0_4 = arith.constant 0 : index
    %22 = vector.load %arg4[%c0_3, %c0_4] : memref<1x32xf32, #tpu.memory_space<vmem>>, vector<1x32xf32>
    %23 = vector.broadcast %22 : vector<1x32xf32> to vector<16x32xf32>
    %24 = arith.addf %21, %23 : vector<16x32xf32>
    %25 = arith.truncf %24 : vector<16x32xf32> to vector<16x32xbf16>
    %c0_5 = arith.constant 0 : index
    %c0_6 = arith.constant 0 : index
    %26 = vector.load %arg5[%c0_5, %c0_6] : memref<32x64xbf16, #tpu.memory_space<vmem>>, vector<32x64xbf16>
    %cst_7 = arith.constant dense<0.000000e+00> : vector<16x64xf32>
    %27 = tpu.matmul %25, %26, %cst_7 {dimension_numbers = #tpu.dot_dimension_numbers<[1], [0], [0], [1], [0, 0, 1, 1], [], []>} : vector<16x32xbf16>, vector<32x64xbf16>, vector<16x64xf32> -> vector<16x64xf32>
    %c0_8 = arith.constant 0 : index
    %c0_9 = arith.constant 0 : index
    %28 = vector.load %arg6[%c0_8, %c0_9] : memref<1x64xf32, #tpu.memory_space<vmem>>, vector<1x64xf32>
    %29 = vector.broadcast %28 : vector<1x64xf32> to vector<16x64xf32>
    %30 = arith.mulf %27, %29 : vector<16x64xf32>
    %c0_10 = arith.constant 0 : index
    %c0_11 = arith.constant 0 : index
    %31 = vector.load %arg7[%c0_10, %c0_11] : memref<1x64xf32, #tpu.memory_space<vmem>>, vector<1x64xf32>
    %32 = vector.broadcast %31 : vector<1x64xf32> to vector<16x64xf32>
    %33 = arith.addf %30, %32 : vector<16x64xf32>
    %cst_12 = arith.constant 0.000000e+00 : f32
    %34 = vector.broadcast %cst_12 : f32 to vector<16x64xf32>
    %35 = arith.maximumf %33, %34 : vector<16x64xf32>
    %c0_13 = arith.constant 0 : index
    %c0_14 = arith.constant 0 : index
    %c0_15 = arith.constant 0 : index
    %36 = vector.load %arg8[%c0_13, %c0_14, %c0_15] : memref<1x16x64xf32, #tpu.memory_space<vmem>>, vector<1x16x64xf32>
    %37 = vector.shape_cast %36 : vector<1x16x64xf32> to vector<16x64xf32>
    %38 = vector.shape_cast %35 : vector<16x64xf32> to vector<1x16x64xf32>
    tpu.vector_store %arg8[%c0_13, %c0_14, %c0_15], %38 {strides = array<i32>} : memref<1x16x64xf32, #tpu.memory_space<vmem>>, vector<1x16x64xf32>,
    return
  }
  func.func @transform_0(%arg0: i32, %arg1: i32) -> (i32, i32, i32) {
    %c0_i32 = arith.constant 0 : i32
    %c0_i32_0 = arith.constant 0 : i32
    %c0_i32_1 = arith.constant 0 : i32
    return %arg0, %c0_i32, %c0_i32_0 : i32, i32, i32
  }
  func.func @transform_1(%arg0: i32, %arg1: i32) -> (i32, i32) {
    %c0_i32 = arith.constant 0 : i32
    %c0_i32_0 = arith.constant 0 : i32
    %c0_i32_1 = arith.constant 0 : i32
    return %c0_i32, %c0_i32_0 : i32, i32
  }
  func.func @transform_2(%arg0: i32, %arg1: i32) -> (i32, i32) {
    %c0_i32 = arith.constant 0 : i32
    %c0_i32_0 = arith.constant 0 : i32
    %c0_i32_1 = arith.constant 0 : i32
    return %c0_i32, %c0_i32_0 : i32, i32
  }
  func.func @transform_3(%arg0: i32, %arg1: i32) -> (i32, i32) {
    %c0_i32 = arith.constant 0 : i32
    %c0_i32_0 = arith.constant 0 : i32
    %c0_i32_1 = arith.constant 0 : i32
    return %c0_i32, %c0_i32_0 : i32, i32
  }
  func.func @transform_4(%arg0: i32, %arg1: i32) -> (i32, i32) {
    %c0_i32 = arith.constant 0 : i32
    %c0_i32_0 = arith.constant 0 : i32
    %c0_i32_1 = arith.constant 0 : i32
    return %c0_i32, %c0_i32_0 : i32, i32
  }
  func.func @transform_5(%arg0: i32, %arg1: i32) -> (i32, i32) {
    %c0_i32 = arith.constant 0 : i32
    %c0_i32_0 = arith.constant 0 : i32
    %c0_i32_1 = arith.constant 0 : i32
    return %c0_i32, %c0_i32_0 : i32, i32
  }
  func.func @transform_6(%arg0: i32, %arg1: i32) -> (i32, i32, i32) {
    %c0_i32 = arith.constant 0 : i32
    %c0_i32_0 = arith.constant 0 : i32
    return %arg0, %arg1, %c0_i32 : i32, i32, i32
  }
}

</mosaic_0001>

<llo_original>
// kernel: quartznet_forward.5
$region0: #{quartznet_forward.5}
  #allocation0 [shape = 'u32[]', space=smem, size = 0x4, offset = 0x4, fixed_abs, tag = 'smem constant byte address 0x4 - core index']
  #allocation1 [shape = 'u32[72,128]{1,0:T(1,128)}', space=vmem, size = 0x9000, scoped, tag = 'internal scratch']
  %s0 = inlined_call_operand.vmem [shape: f32[2,36,16], index: 0, kind: input, shape index: {}]
  %s1 = inlined_call_operand.vmem [shape: bf16[80,32], index: 1, kind: input, shape index: {}]
  %s2 = inlined_call_operand.vmem [shape: f32[1,32], index: 2, kind: input, shape index: {}]
  %s3 = inlined_call_operand.vmem [shape: f32[1,32], index: 3, kind: input, shape index: {}]
  %s4 = inlined_call_operand.vmem [shape: f32[2,32,32], index: 4, kind: output, shape index: {}]
  %s5 = sld [smem:[#allocation0]]
  $region49: #{quartznet_forward.5} parent=0
    _
  %s7 = ssub.s32 1, %s5
  %s8 = scalar_select 0, %s7, %s5
  loop: start=0, step=1, limit=6
  $region2: #{quartznet_forward.5} parent=0 // loop_pre_header
    _
  $region3: #{quartznet_forward.5} parent=0 // loop_header
    %s10 = sphi 0, %s14
    %p11 = scmp.ge.s32.totalorder %s10, 6
    %s17 = sphi 0, %s29
    %s18 = sphi 0, %s25
    %s19 = sphi 0, %s17
    %s20 = sphi 0, %s18
    %s21 = sphi 0, %s19
    %s22 = sphi 0, %s20
    %s32 = sphi 0, %s34
    %s35 = sphi 0, %s32
    %s36 = sphi 0, %s35
    %s52 = sphi 0, %s36
    %s56 = sphi 0, %s56
    %s58 = sphi 0, %s56
    %s59 = sphi 0, %s58
    %s73 = sphi 0, %s59
    %s77 = sphi 0, %s77
    %s79 = sphi 0, %s77
    %s80 = sphi 0, %s79
    %s94 = sphi 0, %s80
    %s98 = sphi 0, %s98
    %s100 = sphi 0, %s98
    %s101 = sphi 0, %s100
    %s115 = sphi 0, %s101
    %s123 = sphi 0, %s125
    %s126 = sphi 0, %s123
    %s127 = sphi 0, %s126
    %s143 = sphi 0, %s127
  $region4: #{quartznet_forward.5} parent=0 // loop_header_branch
    %13 = sbr.rel (%p11) target = $region8
  $region5: #{quartznet_forward.5} parent=0 // loop_body
    %s15 = ssub.s32 %s10, 1
    %s16 = ssub.s32 %s10, 2
    %s23 = sadd.s32 1, %s18
    %p24 = scmp.ge.s32.totalorder %s23, 2
    %s25 = scalar_select %p24, 0, %s23
    %s26 = sadd.s32 1, %s17
    %s27 = scalar_select %p24, %s26, %s17
    %p28 = scmp.ge.s32.totalorder %s27, 2
    %s29 = scalar_select %p28, 0, %s27
    %s30 = ssub.s32 %s17, %s29
    %p31 = scmp.eq.s32.totalorder %s30, 0
    %s33 = sadd.s32 %s32, 1
    %s34 = scalar_select %p31, %s32, %s33
    %p37 = pneg %p31
    %p38 = scmp.eq.s32.totalorder %s10, 3
    %p39 = por %p37, %p38
    %p40 = scmp.ne.s32.totalorder %s32, %s35
    %p41 = scmp.eq.s32.totalorder %s10, 0
    %p42 = por %p40, %p41
    %p43 = scmp.ne.s32.totalorder %s32, %s35
    %p44 = scmp.eq.s32.totalorder %s15, 3
    %p45 = por %p43, %p44
    %p46 = scmp.ne.s32.totalorder %s35, %s36
    %p47 = scmp.eq.s32.totalorder %s15, 0
    %p48 = por %p46, %p47
    %p49 = scmp.ne.s32.totalorder %s35, %s36
    %p50 = scmp.eq.s32.totalorder %s16, 3
    %p51 = por %p49, %p50
    %p53 = scmp.ne.s32.totalorder %s36, %s52
    %p54 = scmp.eq.s32.totalorder %s16, 0
    %p55 = por %p53, %p54
    %s57 = sadd.s32 %s56, 1
    %p60 = scmp.eq.s32.totalorder %s10, 3
    %p61 = scmp.ne.s32.totalorder %s56, %s58
    %p62 = scmp.eq.s32.totalorder %s10, 0
    %p63 = por %p61, %p62
    %p64 = scmp.ne.s32.totalorder %s56, %s58
    %p65 = scmp.eq.s32.totalorder %s15, 3
    %p66 = por %p64, %p65
    %p67 = scmp.ne.s32.totalorder %s58, %s59
    %p68 = scmp.eq.s32.totalorder %s15, 0
    %p69 = por %p67, %p68
    %p70 = scmp.ne.s32.totalorder %s58, %s59
    %p71 = scmp.eq.s32.totalorder %s16, 3
    %p72 = por %p70, %p71
    %p74 = scmp.ne.s32.totalorder %s59, %s73
    %p75 = scmp.eq.s32.totalorder %s16, 0
    %p76 = por %p74, %p75
    %s78 = sadd.s32 %s77, 1
    %p81 = scmp.eq.s32.totalorder %s10, 3
    %p82 = scmp.ne.s32.totalorder %s77, %s79
    %p83 = scmp.eq.s32.totalorder %s10, 0
    %p84 = por %p82, %p83
    %p85 = scmp.ne.s32.totalorder %s77, %s79
    %p86 = scmp.eq.s32.totalorder %s15, 3
    %p87 = por %p85, %p86
    %p88 = scmp.ne.s32.totalorder %s79, %s80
    %p89 = scmp.eq.s32.totalorder %s15, 0
    %p90 = por %p88, %p89
    %p91 = scmp.ne.s32.totalorder %s79, %s80
    %p92 = scmp.eq.s32.totalorder %s16, 3
    %p93 = por %p91, %p92
    %p95 = scmp.ne.s32.totalorder %s80, %s94
    %p96 = scmp.eq.s32.totalorder %s16, 0
    %p97 = por %p95, %p96
    %s99 = sadd.s32 %s98, 1
    %p102 = scmp.eq.s32.totalorder %s10, 3
    %p103 = scmp.ne.s32.totalorder %s98, %s100
    %p104 = scmp.eq.s32.totalorder %s10, 0
    %p105 = por %p103, %p104
    %p106 = scmp.ne.s32.totalorder %s98, %s100
    %p107 = scmp.eq.s32.totalorder %s15, 3
    %p108 = por %p106, %p107
    %p109 = scmp.ne.s32.totalorder %s100, %s101
    %p110 = scmp.eq.s32.totalorder %s15, 0
    %p111 = por %p109, %p110
    %p112 = scmp.ne.s32.totalorder %s100, %s101
    %p113 = scmp.eq.s32.totalorder %s16, 3
    %p114 = por %p112, %p113
    %p116 = scmp.ne.s32.totalorder %s101, %s115
    %p117 = scmp.eq.s32.totalorder %s16, 0
    %p118 = por %p116, %p117
    %s119 = ssub.s32 %s17, %s29
    %s120 = ssub.s32 %s18, %s25
    %s121 = sor.u32 %s119, %s120
    %p122 = scmp.eq.s32.totalorder %s121, 0
    %s124 = sadd.s32 %s123, 1
    %s125 = scalar_select %p122, %s123, %s124
    %p128 = pneg %p122
    %p129 = scmp.eq.s32.totalorder %s10, 3
    %p130 = por %p128, %p129
    %p131 = scmp.ne.s32.totalorder %s123, %s126
    %p132 = scmp.eq.s32.totalorder %s10, 0
    %p133 = por %p131, %p132
    %p134 = scmp.ne.s32.totalorder %s123, %s126
    %p135 = scmp.eq.s32.totalorder %s15, 3
    %p136 = por %p134, %p135
    %p137 = scmp.ne.s32.totalorder %s126, %s127
    %p138 = scmp.eq.s32.totalorder %s15, 0
    %p139 = por %p137, %p138
    %p140 = scmp.ne.s32.totalorder %s126, %s127
    %p141 = scmp.eq.s32.totalorder %s16, 3
    %p142 = por %p140, %p141
    %p144 = scmp.ne.s32.totalorder %s127, %s143
    %p145 = scmp.eq.s32.totalorder %s16, 0
    %p146 = por %p144, %p145
    %p147 = scmp.le.s32.totalorder 1, %s10
    %p148 = scmp.lt.s32.totalorder %s10, 5
    %p149 = pnand %p147, %p148
    %p150 = pneg %p149
    // Predicated region
    $region9: #{quartznet_forward.5} parent=5 // pred_check
      _
    $region10: #{quartznet_forward.5} parent=5 // pred_check_branch
      %152 = sbr.rel (%p149) target = $region12
    $region11: #{quartznet_forward.5} parent=5 // pred_region
      %s153 = ssub.s32 %s10, 1
      // Predicated region
      $region13: #{quartznet_forward.5} parent=11 // pred_check
        %p154 = pneg %p69
      $region14: #{quartznet_forward.5} parent=11 // pred_check_branch
        %156 = sbr.rel (%p154) target = $region16
      $region15: #{quartznet_forward.5} parent=11 // pred_region
        _
      $region16: #{quartznet_forward.5} parent=11 // pred_fallthru
        _
      // Predicated region
      $region17: #{quartznet_forward.5} parent=11 // pred_check
        %p157 = pneg %p90
      $region18: #{quartznet_forward.5} parent=11 // pred_check_branch
        %159 = sbr.rel (%p157) target = $region20
      $region19: #{quartznet_forward.5} parent=11 // pred_region
        _
      $region20: #{quartznet_forward.5} parent=11 // pred_fallthru
        _
      // Predicated region
      $region21: #{quartznet_forward.5} parent=11 // pred_check
        %p160 = pneg %p111
      $region22: #{quartznet_forward.5} parent=11 // pred_check_branch
        %162 = sbr.rel (%p160) target = $region24
      $region23: #{quartznet_forward.5} parent=11 // pred_region
        _
      $region24: #{quartznet_forward.5} parent=11 // pred_fallthru
        _
    $region12: #{quartznet_forward.5} parent=5 // pred_fallthru
      _
    %p163 = scmp.lt.s32.totalorder %s10, 4
    // Predicated region
    $region25: #{quartznet_forward.5} parent=5 // pred_check
      %p164 = pneg %p163
    $region26: #{quartznet_forward.5} parent=5 // pred_check_branch
      %166 = sbr.rel (%p164) target = $region28
    $region27: #{quartznet_forward.5} parent=5 // pred_region
      // Predicated region
      $region29: #{quartznet_forward.5} parent=27 // pred_check
        %p167 = pneg %p42
      $region30: #{quartznet_forward.5} parent=27 // pred_check_branch
        %169 = sbr.rel (%p167) target = $region32
      $region31: #{quartznet_forward.5} parent=27 // pred_region
        %p170 = scmp.lt.s32.totalorder %s17, 1
        %s171 = scalar_select %p170, %s17, 1
        %s172 = smul.addr %s171, 5
        %s173 = smul.addr %s172, 8
        %s174 = scalar_lea.vmem %s0, %s173
      $region32: #{quartznet_forward.5} parent=27 // pred_fallthru
        _
    $region28: #{quartznet_forward.5} parent=5 // pred_fallthru
      _
    %p175 = scmp.le.s32.totalorder 1, %s10
    %p176 = scmp.lt.s32.totalorder %s10, 5
    %p177 = pnand %p175, %p176
    %p178 = pneg %p177
    // Predicated region
    $region33: #{quartznet_forward.5} parent=5 // pred_check
      _
    $region34: #{quartznet_forward.5} parent=5 // pred_check_branch
      %180 = sbr.rel (%p177) target = $region36
    $region35: #{quartznet_forward.5} parent=5 // pred_region
      %s181 = ssub.s32 %s10, 1
      %p182 = scmp.lt.s32.totalorder %s19, 1
      %s183 = scalar_select %p182, %s19, 1
      %s184 = smul.addr %s183, 5
      %s185 = smul.addr %s184, 8
      %s186 = scalar_lea.vmem %s0, %s185
      %p187 = pneg %p48
      %p188 = pneg %p45
      %p189 = pneg %p69
      %p190 = pneg %p66
      %p191 = pneg %p90
      %p192 = pneg %p87
      %p193 = pneg %p111
      %p194 = pneg %p108
      %p195 = pneg %p139
      %p196 = pneg %p136
      %s197 = smul.u32 2, %s20
      %p198 = scmp.lt.s32.totalorder %s19, 1
      %s199 = scalar_select %p198, %s19, 1
      %p200 = scmp.lt.s32.totalorder %s197, 3
      %s201 = scalar_select %p200, %s197, 3
      %s202 = smul.addr %s199, 4
      %s203 = sadd.s32 %s201, %s202
      %s204 = smul.addr %s203, 8
      %s205 = scalar_lea.vmem %s4, %s204
      %p206 = scmp.lt.s32.totalorder %s19, 1
      %s207 = scalar_select %p206, %s19, 1
      %s208 = smul.addr %s207, 5
      %s209 = smul.addr %s208, 8
      %s210 = scalar_lea.vmem %s0, %s209
      %s211 = smul.u32 2, %s20
      %p212 = scmp.lt.s32.totalorder %s19, 1
      %s213 = scalar_select %p212, %s19, 1
      %p214 = scmp.lt.s32.totalorder %s211, 3
      %s215 = scalar_select %p214, %s211, 3
      %s216 = smul.addr %s213, 4
      %s217 = sadd.s32 %s215, %s216
      %s218 = smul.addr %s217, 8
      %s219 = scalar_lea.vmem %s4, %s218
      %s220 = smul.u32 2, %s20
      %s222 = smul.u32 %s20, 16
      %s223 = scalar_lea.vmem %s210, %s222
      %v224 = vld [vmem:[%s223] sm:$0xff]
      %v225 = vld [vmem:[%s223 + $0x8] sm:$0xff]
      %v226 = vld [vmem:[%s223 + $0x10] sm:$0xf]
      %vm230 = vcmask 1046528
      %v231 = vrot.slane %v224, 1
      %v232 = vrot.slane %v225, 1
      %v233 = vsel %vm230, %v231, %v232
      %v234 = vrot.slane %v226, 1
      %v235 = vsel %vm230, %v232, %v234
      %236 = vrot.lane.b32.xlu0 %v233, 16
      %v237 = vpop.permute.xlu0 %236
      %238 = vrot.lane.b32.xlu0 %v235, 16
      %v239 = vpop.permute.xlu0 %238
      %vm242 = vcmask 1045504
      %v243 = vrot.slane %v224, 2
      %v244 = vrot.slane %v225, 2
      %v245 = vsel %vm242, %v243, %v244
      %v246 = vrot.slane %v226, 2
      %v247 = vsel %vm242, %v244, %v246
      %248 = vrot.lane.b32.xlu0 %v245, 32
      %v249 = vpop.permute.xlu0 %248
      %250 = vrot.lane.b32.xlu0 %v247, 32
      %v251 = vpop.permute.xlu0 %250
      %vm254 = vcmask 1044480
      %v255 = vrot.slane %v224, 3
      %v256 = vrot.slane %v225, 3
      %v257 = vsel %vm254, %v255, %v256
      %v258 = vrot.slane %v226, 3
      %v259 = vsel %vm254, %v256, %v258
      %260 = vrot.lane.b32.xlu0 %v257, 48
      %v261 = vpop.permute.xlu0 %260
      %262 = vrot.lane.b32.xlu0 %v259, 48
      %v263 = vpop.permute.xlu0 %262
      %vm266 = vcmask 1043456
      %v267 = vrot.slane %v224, 4
      %v268 = vrot.slane %v225, 4
      %v269 = vsel %vm266, %v267, %v268
      %v270 = vrot.slane %v226, 4
      %v271 = vsel %vm266, %v268, %v270
      %272 = vrot.lane.b32.xlu0 %v269, 64
      %v273 = vpop.permute.xlu0 %272
      %274 = vrot.lane.b32.xlu0 %v271, 64
      %v275 = vpop.permute.xlu0 %274
      %vm278 = vcmask 130048
      %v279 = vsel %vm278, %v224, %v237
      %v280 = vsel %vm278, %v225, %v239
      %vm281 = vcmask 261120
      %v282 = vsel %vm281, %v279, %v249
      %v283 = vsel %vm281, %v280, %v251
      %vm284 = vcmask 392192
      %v285 = vsel %vm284, %v282, %v261
      %v286 = vsel %vm284, %v283, %v263
      %vm287 = vcmask 523264
      %v288 = vsel %vm287, %v285, %v273
      %v289 = vsel %vm287, %v286, %v275
      %v290 = vpack.c.bf16 %v289, %v288
      %v291 = vld [vmem:[%s1] sm:$0xf]
      %v292 = vld [vmem:[%s1 + $0x4] sm:$0xf]
      %v293 = vld [vmem:[%s1 + $0x8] sm:$0xf]
      %v294 = vld [vmem:[%s1 + $0xc] sm:$0xf]
      %v295 = vld [vmem:[%s1 + $0x10] sm:$0xf]
      %v296 = vld [vmem:[%s1 + $0x14] sm:$0xf]
      %v297 = vld [vmem:[%s1 + $0x18] sm:$0xf]
      %v298 = vld [vmem:[%s1 + $0x1c] sm:$0xf]
      %v299 = vld [vmem:[%s1 + $0x20] sm:$0xf]
      %v300 = vld [vmem:[%s1 + $0x24] sm:$0xf]
      %v311 = vunpack.c.l.b16 %v291
      %v312 = vunpack.c.l.b16 %v292
      %v313 = vunpack.c.l.b16 %v293
      %v314 = vunpack.c.l.b16 %v294
      %v315 = vunpack.c.l.b16 %v295
      %v316 = vunpack.c.l.b16 %v296
      %v317 = vunpack.c.l.b16 %v297
      %v318 = vunpack.c.l.b16 %v298
      %v319 = vunpack.c.l.b16 %v299
      %v320 = vunpack.c.l.b16 %v300
      %v321 = vpack.c.b16 %v312, %v311
      %v322 = vpack.c.b16 %v314, %v313
      %v323 = vpack.c.b16 %v316, %v315
      %v324 = vpack.c.b16 %v318, %v317
      %v325 = vpack.c.b16 %v320, %v319
      %vm331 = vcmask 654336
      %v333 = vsel %vm331, %v290, 0
      %335 = vmatpush.bf16.msra.mxu0 0
      %336 = vmatpush.bf16.msra.mxu0 0
      %337 = vmatpush.bf16.msra.mxu0 0
      %338 = vmatpush.bf16.msra.mxu0 %v325
      %339 = vmatpush.bf16.msra.mxu0 %v324
      %340 = vmatpush.bf16.msra.mxu0 %v323
      %341 = vmatpush.bf16.msra.mxu0 %v322
      %342 = vmatpush.bf16.msra.mxu0 %v321
      %343 = vmatmul.bf16.gmra.mxu0 %v333
      %v344 = vpop.f32.mrf.mxu0
      %v345 = vadd.f32 0.0, %v344
      %v346 = vpop.f32.mrf.mxu0
      %v347 = vadd.f32 0.0, %v346
      %348 = vdwg.mxu0
      %v349 = vld [vmem:[%s2] sm:$0x1]
      %v351 = vperm.slane %v349, 0
      %v353 = vmul.f32 %v345, %v351
      %v354 = vmul.f32 %v347, %v351
      %v355 = vld [vmem:[%s3] sm:$0x1]
      %v357 = vperm.slane %v355, 0
      %v359 = vadd.f32 %v353, %v357
      %v360 = vadd.f32 %v354, %v357
      %v361 = vmax.f32 %v359, 0.0
      %v362 = vmax.f32 %v360, 0.0
      %363 = vst.msk [vmem:[%s219] sm:$0xff] %vm281, %v361
      %364 = vst.msk [vmem:[%s219 + $0x8] sm:$0xff] %vm281, %v362
      %s365 = smul.u32 2, %s20
      %p366 = scmp.lt.s32.totalorder %s19, 1
      %s367 = scalar_select %p366, %s19, 1
      %p368 = scmp.lt.s32.totalorder %s365, 3
      %s369 = scalar_select %p368, %s365, 3
      %s370 = smul.addr %s367, 4
      %s371 = sadd.s32 %s369, %s370
      %s372 = smul.addr %s371, 8
      %s373 = scalar_lea.vmem %s4, %s372
      // Predicated region
      $region37: #{quartznet_forward.5} parent=35 // pred_check
        %p374 = pneg %p136
      $region38: #{quartznet_forward.5} parent=35 // pred_check_branch
        %376 = sbr.rel (%p374) target = $region40
      $region39: #{quartznet_forward.5} parent=35 // pred_region
        %s377 = smul.u32 2, %s20
      $region40: #{quartznet_forward.5} parent=35 // pred_fallthru
        _
    $region36: #{quartznet_forward.5} parent=5 // pred_fallthru
      _
    %p378 = scmp.le.s32.totalorder 2, %s10
    // Predicated region
    $region41: #{quartznet_forward.5} parent=5 // pred_check
      %p379 = pneg %p378
    $region42: #{quartznet_forward.5} parent=5 // pred_check_branch
      %381 = sbr.rel (%p379) target = $region44
    $region43: #{quartznet_forward.5} parent=5 // pred_region
      %s382 = ssub.s32 %s10, 2
      // Predicated region
      $region45: #{quartznet_forward.5} parent=43 // pred_check
        %p383 = pneg %p142
      $region46: #{quartznet_forward.5} parent=43 // pred_check_branch
        %385 = sbr.rel (%p383) target = $region48
      $region47: #{quartznet_forward.5} parent=43 // pred_region
        %s386 = smul.u32 2, %s22
        %p387 = scmp.lt.s32.totalorder %s21, 1
        %s388 = scalar_select %p387, %s21, 1
        %p389 = scmp.lt.s32.totalorder %s386, 3
        %s390 = scalar_select %p389, %s386, 3
        %s391 = smul.addr %s388, 4
        %s392 = sadd.s32 %s390, %s391
        %s393 = smul.addr %s392, 8
        %s394 = scalar_lea.vmem %s4, %s393
      $region48: #{quartznet_forward.5} parent=43 // pred_fallthru
        _
    $region44: #{quartznet_forward.5} parent=5 // pred_fallthru
      _
  $region6: #{quartznet_forward.5} parent=0 // loop_footer
    %s14 = sadd.s32 1, %s10
  $region7: #{quartznet_forward.5} parent=0 // loop_footer_branch
    %9 = sbr.rel target = $region3
  $region8: #{quartznet_forward.5} parent=0 // loop_exit
    _

// kernel: quartznet_forward.6
$region0: #{quartznet_forward.6}
  #allocation0 [shape = 'u32[]', space=smem, size = 0x4, offset = 0x4, fixed_abs, tag = 'smem constant byte address 0x4 - core index']
  #allocation1 [shape = 'u32[72,128]{1,0:T(1,128)}', space=vmem, size = 0x9000, scoped, tag = 'internal scratch']
  %s0 = inlined_call_operand.vmem [shape: f32[2,36,32], index: 0, kind: input, shape index: {}]
  %s1 = inlined_call_operand.vmem [shape: bf16[160,32], index: 1, kind: input, shape index: {}]
  %s2 = inlined_call_operand.vmem [shape: f32[1,32], index: 2, kind: input, shape index: {}]
  %s3 = inlined_call_operand.vmem [shape: f32[1,32], index: 3, kind: input, shape index: {}]
  %s4 = inlined_call_operand.vmem [shape: f32[2,32,16], index: 4, kind: input, shape index: {}]
  %s5 = inlined_call_operand.vmem [shape: bf16[16,32], index: 5, kind: input, shape index: {}]
  %s6 = inlined_call_operand.vmem [shape: f32[1,32], index: 6, kind: input, shape index: {}]
  %s7 = inlined_call_operand.vmem [shape: f32[1,32], index: 7, kind: input, shape index: {}]
  %s8 = inlined_call_operand.vmem [shape: f32[2,32,32], index: 8, kind: output, shape index: {}]
  %s9 = sld [smem:[#allocation0]]
  $region65: #{quartznet_forward.6} parent=0
    _
  %s11 = ssub.s32 1, %s9
  %s12 = scalar_select 0, %s11, %s9
  loop: start=0, step=1, limit=6
  $region2: #{quartznet_forward.6} parent=0 // loop_pre_header
    _
  $region3: #{quartznet_forward.6} parent=0 // loop_header
    %s14 = sphi 0, %s18
    %p15 = scmp.ge.s32.totalorder %s14, 6
    %s21 = sphi 0, %s33
    %s22 = sphi 0, %s29
    %s23 = sphi 0, %s21
    %s24 = sphi 0, %s22
    %s25 = sphi 0, %s23
    %s26 = sphi 0, %s24
    %s36 = sphi 0, %s38
    %s39 = sphi 0, %s36
    %s40 = sphi 0, %s39
    %s56 = sphi 0, %s40
    %s60 = sphi 0, %s60
    %s62 = sphi 0, %s60
    %s63 = sphi 0, %s62
    %s77 = sphi 0, %s63
    %s81 = sphi 0, %s81
    %s83 = sphi 0, %s81
    %s84 = sphi 0, %s83
    %s98 = sphi 0, %s84
    %s102 = sphi 0, %s102
    %s104 = sphi 0, %s102
    %s105 = sphi 0, %s104
    %s119 = sphi 0, %s105
    %s127 = sphi 0, %s129
    %s130 = sphi 0, %s127
    %s131 = sphi 0, %s130
    %s147 = sphi 0, %s131
    %s151 = sphi 0, %s151
    %s153 = sphi 0, %s151
    %s154 = sphi 0, %s153
    %s168 = sphi 0, %s154
    %s172 = sphi 0, %s172
    %s174 = sphi 0, %s172
    %s175 = sphi 0, %s174
    %s189 = sphi 0, %s175
    %s193 = sphi 0, %s193
    %s195 = sphi 0, %s193
    %s196 = sphi 0, %s195
    %s210 = sphi 0, %s196
    %s218 = sphi 0, %s220
    %s221 = sphi 0, %s218
    %s222 = sphi 0, %s221
    %s238 = sphi 0, %s222
  $region4: #{quartznet_forward.6} parent=0 // loop_header_branch
    %17 = sbr.rel (%p15) target = $region8
  $region5: #{quartznet_forward.6} parent=0 // loop_body
    %s19 = ssub.s32 %s14, 1
    %s20 = ssub.s32 %s14, 2
    %s27 = sadd.s32 1, %s22
    %p28 = scmp.ge.s32.totalorder %s27, 2
    %s29 = scalar_select %p28, 0, %s27
    %s30 = sadd.s32 1, %s21
    %s31 = scalar_select %p28, %s30, %s21
    %p32 = scmp.ge.s32.totalorder %s31, 2
    %s33 = scalar_select %p32, 0, %s31
    %s34 = ssub.s32 %s21, %s33
    %p35 = scmp.eq.s32.totalorder %s34, 0
    %s37 = sadd.s32 %s36, 1
    %s38 = scalar_select %p35, %s36, %s37
    %p41 = pneg %p35
    %p42 = scmp.eq.s32.totalorder %s14, 3
    %p43 = por %p41, %p42
    %p44 = scmp.ne.s32.totalorder %s36, %s39
    %p45 = scmp.eq.s32.totalorder %s14, 0
    %p46 = por %p44, %p45
    %p47 = scmp.ne.s32.totalorder %s36, %s39
    %p48 = scmp.eq.s32.totalorder %s19, 3
    %p49 = por %p47, %p48
    %p50 = scmp.ne.s32.totalorder %s39, %s40
    %p51 = scmp.eq.s32.totalorder %s19, 0
    %p52 = por %p50, %p51
    %p53 = scmp.ne.s32.totalorder %s39, %s40
    %p54 = scmp.eq.s32.totalorder %s20, 3
    %p55 = por %p53, %p54
    %p57 = scmp.ne.s32.totalorder %s40, %s56
    %p58 = scmp.eq.s32.totalorder %s20, 0
    %p59 = por %p57, %p58
    %s61 = sadd.s32 %s60, 1
    %p64 = scmp.eq.s32.totalorder %s14, 3
    %p65 = scmp.ne.s32.totalorder %s60, %s62
    %p66 = scmp.eq.s32.totalorder %s14, 0
    %p67 = por %p65, %p66
    %p68 = scmp.ne.s32.totalorder %s60, %s62
    %p69 = scmp.eq.s32.totalorder %s19, 3
    %p70 = por %p68, %p69
    %p71 = scmp.ne.s32.totalorder %s62, %s63
    %p72 = scmp.eq.s32.totalorder %s19, 0
    %p73 = por %p71, %p72
    %p74 = scmp.ne.s32.totalorder %s62, %s63
    %p75 = scmp.eq.s32.totalorder %s20, 3
    %p76 = por %p74, %p75
    %p78 = scmp.ne.s32.totalorder %s63, %s77
    %p79 = scmp.eq.s32.totalorder %s20, 0
    %p80 = por %p78, %p79
    %s82 = sadd.s32 %s81, 1
    %p85 = scmp.eq.s32.totalorder %s14, 3
    %p86 = scmp.ne.s32.totalorder %s81, %s83
    %p87 = scmp.eq.s32.totalorder %s14, 0
    %p88 = por %p86, %p87
    %p89 = scmp.ne.s32.totalorder %s81, %s83
    %p90 = scmp.eq.s32.totalorder %s19, 3
    %p91 = por %p89, %p90
    %p92 = scmp.ne.s32.totalorder %s83, %s84
    %p93 = scmp.eq.s32.totalorder %s19, 0
    %p94 = por %p92, %p93
    %p95 = scmp.ne.s32.totalorder %s83, %s84
    %p96 = scmp.eq.s32.totalorder %s20, 3
    %p97 = por %p95, %p96
    %p99 = scmp.ne.s32.totalorder %s84, %s98
    %p100 = scmp.eq.s32.totalorder %s20, 0
    %p101 = por %p99, %p100
    %s103 = sadd.s32 %s102, 1
    %p106 = scmp.eq.s32.totalorder %s14, 3
    %p107 = scmp.ne.s32.totalorder %s102, %s104
    %p108 = scmp.eq.s32.totalorder %s14, 0
    %p109 = por %p107, %p108
    %p110 = scmp.ne.s32.totalorder %s102, %s104
    %p111 = scmp.eq.s32.totalorder %s19, 3
    %p112 = por %p110, %p111
    %p113 = scmp.ne.s32.totalorder %s104, %s105
    %p114 = scmp.eq.s32.totalorder %s19, 0
    %p115 = por %p113, %p114
    %p116 = scmp.ne.s32.totalorder %s104, %s105
    %p117 = scmp.eq.s32.totalorder %s20, 3
    %p118 = por %p116, %p117
    %p120 = scmp.ne.s32.totalorder %s105, %s119
    %p121 = scmp.eq.s32.totalorder %s20, 0
    %p122 = por %p120, %p121
    %s123 = ssub.s32 %s21, %s33
    %s124 = ssub.s32 %s22, %s29
    %s125 = sor.u32 %s123, %s124
    %p126 = scmp.eq.s32.totalorder %s125, 0
    %s128 = sadd.s32 %s127, 1
    %s129 = scalar_select %p126, %s127, %s128
    %p132 = pneg %p126
    %p133 = scmp.eq.s32.totalorder %s14, 3
    %p134 = por %p132, %p133
    %p135 = scmp.ne.s32.totalorder %s127, %s130
    %p136 = scmp.eq.s32.totalorder %s14, 0
    %p137 = por %p135, %p136
    %p138 = scmp.ne.s32.totalorder %s127, %s130
    %p139 = scmp.eq.s32.totalorder %s19, 3
    %p140 = por %p138, %p139
    %p141 = scmp.ne.s32.totalorder %s130, %s131
    %p142 = scmp.eq.s32.totalorder %s19, 0
    %p143 = por %p141, %p142
    %p144 = scmp.ne.s32.totalorder %s130, %s131
    %p145 = scmp.eq.s32.totalorder %s20, 3
    %p146 = por %p144, %p145
    %p148 = scmp.ne.s32.totalorder %s131, %s147
    %p149 = scmp.eq.s32.totalorder %s20, 0
    %p150 = por %p148, %p149
    %s152 = sadd.s32 %s151, 1
    %p155 = scmp.eq.s32.totalorder %s14, 3
    %p156 = scmp.ne.s32.totalorder %s151, %s153
    %p157 = scmp.eq.s32.totalorder %s14, 0
    %p158 = por %p156, %p157
    %p159 = scmp.ne.s32.totalorder %s151, %s153
    %p160 = scmp.eq.s32.totalorder %s19, 3
    %p161 = por %p159, %p160
    %p162 = scmp.ne.s32.totalorder %s153, %s154
    %p163 = scmp.eq.s32.totalorder %s19, 0
    %p164 = por %p162, %p163
    %p165 = scmp.ne.s32.totalorder %s153, %s154
    %p166 = scmp.eq.s32.totalorder %s20, 3
    %p167 = por %p165, %p166
    %p169 = scmp.ne.s32.totalorder %s154, %s168
    %p170 = scmp.eq.s32.totalorder %s20, 0
    %p171 = por %p169, %p170
    %s173 = sadd.s32 %s172, 1
    %p176 = scmp.eq.s32.totalorder %s14, 3
    %p177 = scmp.ne.s32.totalorder %s172, %s174
    %p178 = scmp.eq.s32.totalorder %s14, 0
    %p179 = por %p177, %p178
    %p180 = scmp.ne.s32.totalorder %s172, %s174
    %p181 = scmp.eq.s32.totalorder %s19, 3
    %p182 = por %p180, %p181
    %p183 = scmp.ne.s32.totalorder %s174, %s175
    %p184 = scmp.eq.s32.totalorder %s19, 0
    %p185 = por %p183, %p184
    %p186 = scmp.ne.s32.totalorder %s174, %s175
    %p187 = scmp.eq.s32.totalorder %s20, 3
    %p188 = por %p186, %p187
    %p190 = scmp.ne.s32.totalorder %s175, %s189
    %p191 = scmp.eq.s32.totalorder %s20, 0
    %p192 = por %p190, %p191
    %s194 = sadd.s32 %s193, 1
    %p197 = scmp.eq.s32.totalorder %s14, 3
    %p198 = scmp.ne.s32.totalorder %s193, %s195
    %p199 = scmp.eq.s32.totalorder %s14, 0
    %p200 = por %p198, %p199
    %p201 = scmp.ne.s32.totalorder %s193, %s195
    %p202 = scmp.eq.s32.totalorder %s19, 3
    %p203 = por %p201, %p202
    %p204 = scmp.ne.s32.totalorder %s195, %s196
    %p205 = scmp.eq.s32.totalorder %s19, 0
    %p206 = por %p204, %p205
    %p207 = scmp.ne.s32.totalorder %s195, %s196
    %p208 = scmp.eq.s32.totalorder %s20, 3
    %p209 = por %p207, %p208
    %p211 = scmp.ne.s32.totalorder %s196, %s210
    %p212 = scmp.eq.s32.totalorder %s20, 0
    %p213 = por %p211, %p212
    %s214 = ssub.s32 %s21, %s33
    %s215 = ssub.s32 %s22, %s29
    %s216 = sor.u32 %s214, %s215
    %p217 = scmp.eq.s32.totalorder %s216, 0
    %s219 = sadd.s32 %s218, 1
    %s220 = scalar_select %p217, %s218, %s219
    %p223 = pneg %p217
    %p224 = scmp.eq.s32.totalorder %s14, 3
    %p225 = por %p223, %p224
    %p226 = scmp.ne.s32.totalorder %s218, %s221
    %p227 = scmp.eq.s32.totalorder %s14, 0
    %p228 = por %p226, %p227
    %p229 = scmp.ne.s32.totalorder %s218, %s221
    %p230 = scmp.eq.s32.totalorder %s19, 3
    %p231 = por %p229, %p230
    %p232 = scmp.ne.s32.totalorder %s221, %s222
    %p233 = scmp.eq.s32.totalorder %s19, 0
    %p234 = por %p232, %p233
    %p235 = scmp.ne.s32.totalorder %s221, %s222
    %p236 = scmp.eq.s32.totalorder %s20, 3
    %p237 = por %p235, %p236
    %p239 = scmp.ne.s32.totalorder %s222, %s238
    %p240 = scmp.eq.s32.totalorder %s20, 0
    %p241 = por %p239, %p240
    %p242 = scmp.le.s32.totalorder 1, %s14
    %p243 = scmp.lt.s32.totalorder %s14, 5
    %p244 = pnand %p242, %p243
    %p245 = pneg %p244
    // Predicated region
    $region9: #{quartznet_forward.6} parent=5 // pred_check
      _
    $region10: #{quartznet_forward.6} parent=5 // pred_check_branch
      %247 = sbr.rel (%p244) target = $region12
    $region11: #{quartznet_forward.6} parent=5 // pred_region
      %s248 = ssub.s32 %s14, 1
      // Predicated region
      $region13: #{quartznet_forward.6} parent=11 // pred_check
        %p249 = pneg %p73
      $region14: #{quartznet_forward.6} parent=11 // pred_check_branch
        %251 = sbr.rel (%p249) target = $region16
      $region15: #{quartznet_forward.6} parent=11 // pred_region
        _
      $region16: #{quartznet_forward.6} parent=11 // pred_fallthru
        _
      // Predicated region
      $region17: #{quartznet_forward.6} parent=11 // pred_check
        %p252 = pneg %p94
      $region18: #{quartznet_forward.6} parent=11 // pred_check_branch
        %254 = sbr.rel (%p252) target = $region20
      $region19: #{quartznet_forward.6} parent=11 // pred_region
        _
      $region20: #{quartznet_forward.6} parent=11 // pred_fallthru
        _
      // Predicated region
      $region21: #{quartznet_forward.6} parent=11 // pred_check
        %p255 = pneg %p115
      $region22: #{quartznet_forward.6} parent=11 // pred_check_branch
        %257 = sbr.rel (%p255) target = $region24
      $region23: #{quartznet_forward.6} parent=11 // pred_region
        _
      $region24: #{quartznet_forward.6} parent=11 // pred_fallthru
        _
      // Predicated region
      $region25: #{quartznet_forward.6} parent=11 // pred_check
        %p258 = pneg %p164
      $region26: #{quartznet_forward.6} parent=11 // pred_check_branch
        %260 = sbr.rel (%p258) target = $region28
      $region27: #{quartznet_forward.6} parent=11 // pred_region
        _
      $region28: #{quartznet_forward.6} parent=11 // pred_fallthru
        _
      // Predicated region
      $region29: #{quartznet_forward.6} parent=11 // pred_check
        %p261 = pneg %p185
      $region30: #{quartznet_forward.6} parent=11 // pred_check_branch
        %263 = sbr.rel (%p261) target = $region32
      $region31: #{quartznet_forward.6} parent=11 // pred_region
        _
      $region32: #{quartznet_forward.6} parent=11 // pred_fallthru
        _
      // Predicated region
      $region33: #{quartznet_forward.6} parent=11 // pred_check
        %p264 = pneg %p206
      $region34: #{quartznet_forward.6} parent=11 // pred_check_branch
        %266 = sbr.rel (%p264) target = $region36
      $region35: #{quartznet_forward.6} parent=11 // pred_region
        _
      $region36: #{quartznet_forward.6} parent=11 // pred_fallthru
        _
    $region12: #{quartznet_forward.6} parent=5 // pred_fallthru
      _
    %p267 = scmp.lt.s32.totalorder %s14, 4
    // Predicated region
    $region37: #{quartznet_forward.6} parent=5 // pred_check
      %p268 = pneg %p267
    $region38: #{quartznet_forward.6} parent=5 // pred_check_branch
      %270 = sbr.rel (%p268) target = $region40
    $region39: #{quartznet_forward.6} parent=5 // pred_region
      // Predicated region
      $region41: #{quartznet_forward.6} parent=39 // pred_check
        %p271 = pneg %p46
      $region42: #{quartznet_forward.6} parent=39 // pred_check_branch
        %273 = sbr.rel (%p271) target = $region44
      $region43: #{quartznet_forward.6} parent=39 // pred_region
        %p274 = scmp.lt.s32.totalorder %s21, 1
        %s275 = scalar_select %p274, %s21, 1
        %s276 = smul.addr %s275, 5
        %s277 = smul.addr %s276, 8
        %s278 = scalar_lea.vmem %s0, %s277
      $region44: #{quartznet_forward.6} parent=39 // pred_fallthru
        _
      // Predicated region
      $region45: #{quartznet_forward.6} parent=39 // pred_check
        %p279 = pneg %p137
      $region46: #{quartznet_forward.6} parent=39 // pred_check_branch
        %281 = sbr.rel (%p279) target = $region48
      $region47: #{quartznet_forward.6} parent=39 // pred_region
        %s282 = smul.u32 2, %s22
        %p283 = scmp.lt.s32.totalorder %s21, 1
        %s284 = scalar_select %p283, %s21, 1
        %p285 = scmp.lt.s32.totalorder %s282, 3
        %s286 = scalar_select %p285, %s282, 3
        %s287 = smul.addr %s284, 4
        %s288 = sadd.s32 %s286, %s287
        %s289 = smul.addr %s288, 8
        %s290 = scalar_lea.vmem %s4, %s289
        %s291 = smul.u32 2, %s22
      $region48: #{quartznet_forward.6} parent=39 // pred_fallthru
        _
    $region40: #{quartznet_forward.6} parent=5 // pred_fallthru
      _
    %p292 = scmp.le.s32.totalorder 1, %s14
    %p293 = scmp.lt.s32.totalorder %s14, 5
    %p294 = pnand %p292, %p293
    %p295 = pneg %p294
    // Predicated region
    $region49: #{quartznet_forward.6} parent=5 // pred_check
      _
    $region50: #{quartznet_forward.6} parent=5 // pred_check_branch
      %297 = sbr.rel (%p294) target = $region52
    $region51: #{quartznet_forward.6} parent=5 // pred_region
      %s298 = ssub.s32 %s14, 1
      %p299 = scmp.lt.s32.totalorder %s23, 1
      %s300 = scalar_select %p299, %s23, 1
      %s301 = smul.addr %s300, 5
      %s302 = smul.addr %s301, 8
      %s303 = scalar_lea.vmem %s0, %s302
      %p304 = pneg %p52
      %p305 = pneg %p49
      %p306 = pneg %p73
      %p307 = pneg %p70
      %p308 = pneg %p94
      %p309 = pneg %p91
      %p310 = pneg %p115
      %p311 = pneg %p112
      %s312 = smul.u32 2, %s24
      %p313 = scmp.lt.s32.totalorder %s23, 1
      %s314 = scalar_select %p313, %s23, 1
      %p315 = scmp.lt.s32.totalorder %s312, 3
      %s316 = scalar_select %p315, %s312, 3
      %s317 = smul.addr %s314, 4
      %s318 = sadd.s32 %s316, %s317
      %s319 = smul.addr %s318, 8
      %s320 = scalar_lea.vmem %s4, %s319
      %p321 = pneg %p143
      %p322 = pneg %p140
      %p323 = pneg %p164
      %p324 = pneg %p161
      %p325 = pneg %p185
      %p326 = pneg %p182
      %p327 = pneg %p206
      %p328 = pneg %p203
      %p329 = pneg %p234
      %p330 = pneg %p231
      %s331 = smul.u32 2, %s24
      %p332 = scmp.lt.s32.totalorder %s23, 1
      %s333 = scalar_select %p332, %s23, 1
      %p334 = scmp.lt.s32.totalorder %s331, 3
      %s335 = scalar_select %p334, %s331, 3
      %s336 = smul.addr %s333, 4
      %s337 = sadd.s32 %s335, %s336
      %s338 = smul.addr %s337, 8
      %s339 = scalar_lea.vmem %s8, %s338
      %p340 = scmp.lt.s32.totalorder %s23, 1
      %s341 = scalar_select %p340, %s23, 1
      %s342 = smul.addr %s341, 5
      %s343 = smul.addr %s342, 8
      %s344 = scalar_lea.vmem %s0, %s343
      %s345 = smul.u32 2, %s24
      %p346 = scmp.lt.s32.totalorder %s23, 1
      %s347 = scalar_select %p346, %s23, 1
      %p348 = scmp.lt.s32.totalorder %s345, 3
      %s349 = scalar_select %p348, %s345, 3
      %s350 = smul.addr %s347, 4
      %s351 = sadd.s32 %s349, %s350
      %s352 = smul.addr %s351, 8
      %s353 = scalar_lea.vmem %s4, %s352
      %s354 = smul.u32 2, %s24
      %s355 = smul.u32 2, %s24
      %p356 = scmp.lt.s32.totalorder %s23, 1
      %s357 = scalar_select %p356, %s23, 1
      %p358 = scmp.lt.s32.totalorder %s355, 3
      %s359 = scalar_select %p358, %s355, 3
      %s360 = smul.addr %s357, 4
      %s361 = sadd.s32 %s359, %s360
      %s362 = smul.addr %s361, 8
      %s363 = scalar_lea.vmem %s8, %s362
      %s364 = smul.u32 2, %s24
      %s366 = smul.u32 %s24, 16
      %s367 = scalar_lea.vmem %s344, %s366
      %v368 = vld [vmem:[%s367] sm:$0xff]
      %v369 = vld [vmem:[%s367 + $0x8] sm:$0xff]
      %v370 = vld [vmem:[%s367 + $0x10] sm:$0xf]
      %vm374 = vcmask 1046528
      %v375 = vrot.slane %v368, 1
      %v376 = vrot.slane %v369, 1
      %v377 = vsel %vm374, %v375, %v376
      %v378 = vrot.slane %v370, 1
      %v379 = vsel %vm374, %v376, %v378
      %380 = vrot.lane.b32.xlu0 %v377, 32
      %v381 = vpop.permute.xlu0 %380
      %382 = vrot.lane.b32.xlu0 %v379, 32
      %v383 = vpop.permute.xlu0 %382
      %vm386 = vcmask 1045504
      %v387 = vrot.slane %v368, 2
      %v388 = vrot.slane %v369, 2
      %v389 = vsel %vm386, %v387, %v388
      %v390 = vrot.slane %v370, 2
      %v391 = vsel %vm386, %v388, %v390
      %392 = vrot.lane.b32.xlu0 %v389, 64
      %v393 = vpop.permute.xlu0 %392
      %394 = vrot.lane.b32.xlu0 %v391, 64
      %v395 = vpop.permute.xlu0 %394
      %vm398 = vcmask 1044480
      %v399 = vrot.slane %v368, 3
      %v400 = vrot.slane %v369, 3
      %v401 = vsel %vm398, %v399, %v400
      %v402 = vrot.slane %v370, 3
      %v403 = vsel %vm398, %v400, %v402
      %404 = vrot.lane.b32.xlu0 %v401, 96
      %v405 = vpop.permute.xlu0 %404
      %406 = vrot.lane.b32.xlu0 %v403, 96
      %v407 = vpop.permute.xlu0 %406
      %vm410 = vcmask 1043456
      %v411 = vrot.slane %v368, 4
      %v412 = vrot.slane %v369, 4
      %v413 = vsel %vm410, %v411, %v412
      %v414 = vrot.slane %v370, 4
      %v415 = vsel %vm410, %v412, %v414
      %vm418 = vcmask 261120
      %v419 = vsel %vm418, %v368, %v381
      %v420 = vsel %vm418, %v369, %v383
      %vm421 = vcmask 523264
      %v422 = vsel %vm421, %v419, %v393
      %v423 = vsel %vm421, %v420, %v395
      %vm424 = vcmask 785408
      %v425 = vsel %vm424, %v422, %v405
      %v426 = vsel %vm424, %v423, %v407
      %v427 = vpack.c.bf16 %v426, %v425
      %v428 = vpack.c.bf16 %v415, %v413
      %v429 = vld [vmem:[%s1] sm:$0xf]
      %v430 = vld [vmem:[%s1 + $0x4] sm:$0xf]
      %v431 = vld [vmem:[%s1 + $0x8] sm:$0xf]
      %v432 = vld [vmem:[%s1 + $0xc] sm:$0xf]
      %v433 = vld [vmem:[%s1 + $0x10] sm:$0xf]
      %v434 = vld [vmem:[%s1 + $0x14] sm:$0xf]
      %v435 = vld [vmem:[%s1 + $0x18] sm:$0xf]
      %v436 = vld [vmem:[%s1 + $0x1c] sm:$0xf]
      %v437 = vld [vmem:[%s1 + $0x20] sm:$0xf]
      %v438 = vld [vmem:[%s1 + $0x24] sm:$0xf]
      %v439 = vld [vmem:[%s1 + $0x28] sm:$0xf]
      %v440 = vld [vmem:[%s1 + $0x2c] sm:$0xf]
      %v441 = vld [vmem:[%s1 + $0x30] sm:$0xf]
      %v442 = vld [vmem:[%s1 + $0x34] sm:$0xf]
      %v443 = vld [vmem:[%s1 + $0x38] sm:$0xf]
      %v444 = vld [vmem:[%s1 + $0x3c] sm:$0xf]
      %v445 = vld [vmem:[%s1 + $0x40] sm:$0xf]
      %v446 = vld [vmem:[%s1 + $0x44] sm:$0xf]
      %v447 = vld [vmem:[%s1 + $0x48] sm:$0xf]
      %v448 = vld [vmem:[%s1 + $0x4c] sm:$0xf]
      %v469 = vunpack.c.l.b16 %v429
      %v470 = vunpack.c.l.b16 %v430
      %v471 = vunpack.c.l.b16 %v431
      %v472 = vunpack.c.l.b16 %v432
      %v473 = vunpack.c.l.b16 %v433
      %v474 = vunpack.c.l.b16 %v434
      %v475 = vunpack.c.l.b16 %v435
      %v476 = vunpack.c.l.b16 %v436
      %v477 = vunpack.c.l.b16 %v437
      %v478 = vunpack.c.l.b16 %v438
      %v479 = vunpack.c.l.b16 %v439
      %v480 = vunpack.c.l.b16 %v440
      %v481 = vunpack.c.l.b16 %v441
      %v482 = vunpack.c.l.b16 %v442
      %v483 = vunpack.c.l.b16 %v443
      %v484 = vunpack.c.l.b16 %v444
      %v485 = vunpack.c.l.b16 %v445
      %v486 = vunpack.c.l.b16 %v446
      %v487 = vunpack.c.l.b16 %v447
      %v488 = vunpack.c.l.b16 %v448
      %v489 = vpack.c.b16 %v470, %v469
      %v490 = vpack.c.b16 %v472, %v471
      %v491 = vpack.c.b16 %v474, %v473
      %v492 = vpack.c.b16 %v476, %v475
      %v493 = vpack.c.b16 %v478, %v477
      %v494 = vpack.c.b16 %v480, %v479
      %v495 = vpack.c.b16 %v482, %v481
      %v496 = vpack.c.b16 %v484, %v483
      %v497 = vpack.c.b16 %v486, %v485
      %v498 = vpack.c.b16 %v488, %v487
      %v510 = vsel %vm418, %v428, 0
      %512 = vmatpush.bf16.msra.mxu0 %v496
      %513 = vmatpush.bf16.msra.mxu0 %v495
      %514 = vmatpush.bf16.msra.mxu0 %v494
      %515 = vmatpush.bf16.msra.mxu0 %v493
      %516 = vmatpush.bf16.msra.mxu0 %v492
      %517 = vmatpush.bf16.msra.mxu0 %v491
      %518 = vmatpush.bf16.msra.mxu0 %v490
      %519 = vmatpush.bf16.msra.mxu0 %v489
      %520 = vmatmul.bf16.gmra.mxu0 %v427
      %v521 = vpop.f32.mrf.mxu0
      %v522 = vadd.f32 0.0, %v521
      %v523 = vpop.f32.mrf.mxu0
      %v524 = vadd.f32 0.0, %v523
      %525 = vdwg.mxu0
      %526 = vmatpush.bf16.msra.mxu0 0
      %527 = vmatpush.bf16.msra.mxu0 0
      %528 = vmatpush.bf16.msra.mxu0 0
      %529 = vmatpush.bf16.msra.mxu0 0
      %530 = vmatpush.bf16.msra.mxu0 0
      %531 = vmatpush.bf16.msra.mxu0 0
      %532 = vmatpush.bf16.msra.mxu0 %v498
      %533 = vmatpush.bf16.msra.mxu0 %v497
      %534 = vmatmul.bf16.gmra.mxu0 %v510
      %v535 = vpop.f32.mrf.mxu0
      %v536 = vadd.f32 %v522, %v535
      %v537 = vpop.f32.mrf.mxu0
      %v538 = vadd.f32 %v524, %v537
      %539 = vdwg.mxu0
      %v540 = vld [vmem:[%s2] sm:$0x1]
      %v542 = vperm.slane %v540, 0
      %v544 = vmul.f32 %v536, %v542
      %v545 = vmul.f32 %v538, %v542
      %v546 = vld [vmem:[%s3] sm:$0x1]
      %v548 = vperm.slane %v546, 0
      %v550 = vadd.f32 %v544, %v548
      %v551 = vadd.f32 %v545, %v548
      %v552 = vld [vmem:[%s353] sm:$0xff]
      %v553 = vld [vmem:[%s353 + $0x8] sm:$0xff]
      %v554 = vpack.c.bf16 %v553, %v552
      %v555 = vld [vmem:[%s5] sm:$0xf]
      %v556 = vld [vmem:[%s5 + $0x4] sm:$0xf]
      %v559 = vunpack.c.l.b16 %v555
      %v560 = vunpack.c.l.b16 %v556
      %v561 = vpack.c.b16 %v560, %v559
      %vm563 = vcmask 130048
      %v565 = vsel %vm563, %v554, 0
      %567 = vmatpush.bf16.msra.mxu0 0
      %568 = vmatpush.bf16.msra.mxu0 0
      %569 = vmatpush.bf16.msra.mxu0 0
      %570 = vmatpush.bf16.msra.mxu0 0
      %571 = vmatpush.bf16.msra.mxu0 0
      %572 = vmatpush.bf16.msra.mxu0 0
      %573 = vmatpush.bf16.msra.mxu0 0
      %574 = vmatpush.bf16.msra.mxu0 %v561
      %575 = vmatmul.bf16.gmra.mxu0 %v565
      %v576 = vpop.f32.mrf.mxu0
      %v577 = vadd.f32 0.0, %v576
      %v578 = vpop.f32.mrf.mxu0
      %v579 = vadd.f32 0.0, %v578
      %580 = vdwg.mxu0
      %v581 = vld [vmem:[%s6] sm:$0x1]
      %v583 = vperm.slane %v581, 0
      %v585 = vmul.f32 %v577, %v583
      %v586 = vmul.f32 %v579, %v583
      %v587 = vadd.f32 %v550, %v585
      %v588 = vadd.f32 %v551, %v586
      %v589 = vld [vmem:[%s7] sm:$0x1]
      %v591 = vperm.slane %v589, 0
      %v593 = vadd.f32 %v587, %v591
      %v594 = vadd.f32 %v588, %v591
      %v595 = vmax.f32 %v593, 0.0
      %v596 = vmax.f32 %v594, 0.0
      %597 = vst.msk [vmem:[%s363] sm:$0xff] %vm418, %v595
      %598 = vst.msk [vmem:[%s363 + $0x8] sm:$0xff] %vm418, %v596
      %s599 = smul.u32 2, %s24
      %p600 = scmp.lt.s32.totalorder %s23, 1
      %s601 = scalar_select %p600, %s23, 1
      %p602 = scmp.lt.s32.totalorder %s599, 3
      %s603 = scalar_select %p602, %s599, 3
      %s604 = smul.addr %s601, 4
      %s605 = sadd.s32 %s603, %s604
      %s606 = smul.addr %s605, 8
      %s607 = scalar_lea.vmem %s8, %s606
      // Predicated region
      $region53: #{quartznet_forward.6} parent=51 // pred_check
        %p608 = pneg %p231
      $region54: #{quartznet_forward.6} parent=51 // pred_check_branch
        %610 = sbr.rel (%p608) target = $region56
      $region55: #{quartznet_forward.6} parent=51 // pred_region
        %s611 = smul.u32 2, %s24
      $region56: #{quartznet_forward.6} parent=51 // pred_fallthru
        _
    $region52: #{quartznet_forward.6} parent=5 // pred_fallthru
      _
    %p612 = scmp.le.s32.totalorder 2, %s14
    // Predicated region
    $region57: #{quartznet_forward.6} parent=5 // pred_check
      %p613 = pneg %p612
    $region58: #{quartznet_forward.6} parent=5 // pred_check_branch
      %615 = sbr.rel (%p613) target = $region60
    $region59: #{quartznet_forward.6} parent=5 // pred_region
      %s616 = ssub.s32 %s14, 2
      // Predicated region
      $region61: #{quartznet_forward.6} parent=59 // pred_check
        %p617 = pneg %p237
      $region62: #{quartznet_forward.6} parent=59 // pred_check_branch
        %619 = sbr.rel (%p617) target = $region64
      $region63: #{quartznet_forward.6} parent=59 // pred_region
        %s620 = smul.u32 2, %s26
        %p621 = scmp.lt.s32.totalorder %s25, 1
        %s622 = scalar_select %p621, %s25, 1
        %p623 = scmp.lt.s32.totalorder %s620, 3
        %s624 = scalar_select %p623, %s620, 3
        %s625 = smul.addr %s622, 4
        %s626 = sadd.s32 %s624, %s625
        %s627 = smul.addr %s626, 8
        %s628 = scalar_lea.vmem %s8, %s627
      $region64: #{quartznet_forward.6} parent=59 // pred_fallthru
        _
    $region60: #{quartznet_forward.6} parent=5 // pred_fallthru
      _
  $region6: #{quartznet_forward.6} parent=0 // loop_footer
    %s18 = sadd.s32 1, %s14
  $region7: #{quartznet_forward.6} parent=0 // loop_footer_branch
    %13 = sbr.rel target = $region3
  $region8: #{quartznet_forward.6} parent=0 // loop_exit
    _

// kernel: quartznet_forward.7
$region0: #{quartznet_forward.7}
  #allocation0 [shape = 'u32[]', space=smem, size = 0x4, offset = 0x4, fixed_abs, tag = 'smem constant byte address 0x4 - core index']
  #allocation1 [shape = 'u32[72,128]{1,0:T(1,128)}', space=vmem, size = 0x9000, scoped, tag = 'internal scratch']
  %s0 = inlined_call_operand.vmem [shape: f32[2,36,32], index: 0, kind: input, shape index: {}]
  %s1 = inlined_call_operand.vmem [shape: f32[3,32], index: 1, kind: input, shape index: {}]
  %s2 = inlined_call_operand.vmem [shape: f32[1,32], index: 2, kind: input, shape index: {}]
  %s3 = inlined_call_operand.vmem [shape: bf16[32,32], index: 3, kind: input, shape index: {}]
  %s4 = inlined_call_operand.vmem [shape: f32[1,32], index: 4, kind: input, shape index: {}]
  %s5 = inlined_call_operand.vmem [shape: f32[1,32], index: 5, kind: input, shape index: {}]
  %s6 = inlined_call_operand.vmem [shape: f32[2,32,32], index: 6, kind: output, shape index: {}]
  %s7 = sld [smem:[#allocation0]]
  $region57: #{quartznet_forward.7} parent=0
    _
  %s9 = ssub.s32 1, %s7
  %s10 = scalar_select 0, %s9, %s7
  loop: start=0, step=1, limit=6
  $region2: #{quartznet_forward.7} parent=0 // loop_pre_header
    _
  $region3: #{quartznet_forward.7} parent=0 // loop_header
    %s12 = sphi 0, %s16
    %p13 = scmp.ge.s32.totalorder %s12, 6
    %s19 = sphi 0, %s31
    %s20 = sphi 0, %s27
    %s21 = sphi 0, %s19
    %s22 = sphi 0, %s20
    %s23 = sphi 0, %s21
    %s24 = sphi 0, %s22
    %s34 = sphi 0, %s36
    %s37 = sphi 0, %s34
    %s38 = sphi 0, %s37
    %s54 = sphi 0, %s38
    %s58 = sphi 0, %s58
    %s60 = sphi 0, %s58
    %s61 = sphi 0, %s60
    %s75 = sphi 0, %s61
    %s79 = sphi 0, %s79
    %s81 = sphi 0, %s79
    %s82 = sphi 0, %s81
    %s96 = sphi 0, %s82
    %s100 = sphi 0, %s100
    %s102 = sphi 0, %s100
    %s103 = sphi 0, %s102
    %s117 = sphi 0, %s103
    %s121 = sphi 0, %s121
    %s123 = sphi 0, %s121
    %s124 = sphi 0, %s123
    %s138 = sphi 0, %s124
    %s142 = sphi 0, %s142
    %s144 = sphi 0, %s142
    %s145 = sphi 0, %s144
    %s159 = sphi 0, %s145
    %s167 = sphi 0, %s169
    %s170 = sphi 0, %s167
    %s171 = sphi 0, %s170
    %s187 = sphi 0, %s171
  $region4: #{quartznet_forward.7} parent=0 // loop_header_branch
    %15 = sbr.rel (%p13) target = $region8
  $region5: #{quartznet_forward.7} parent=0 // loop_body
    %s17 = ssub.s32 %s12, 1
    %s18 = ssub.s32 %s12, 2
    %s25 = sadd.s32 1, %s20
    %p26 = scmp.ge.s32.totalorder %s25, 2
    %s27 = scalar_select %p26, 0, %s25
    %s28 = sadd.s32 1, %s19
    %s29 = scalar_select %p26, %s28, %s19
    %p30 = scmp.ge.s32.totalorder %s29, 2
    %s31 = scalar_select %p30, 0, %s29
    %s32 = ssub.s32 %s19, %s31
    %p33 = scmp.eq.s32.totalorder %s32, 0
    %s35 = sadd.s32 %s34, 1
    %s36 = scalar_select %p33, %s34, %s35
    %p39 = pneg %p33
    %p40 = scmp.eq.s32.totalorder %s12, 3
    %p41 = por %p39, %p40
    %p42 = scmp.ne.s32.totalorder %s34, %s37
    %p43 = scmp.eq.s32.totalorder %s12, 0
    %p44 = por %p42, %p43
    %p45 = scmp.ne.s32.totalorder %s34, %s37
    %p46 = scmp.eq.s32.totalorder %s17, 3
    %p47 = por %p45, %p46
    %p48 = scmp.ne.s32.totalorder %s37, %s38
    %p49 = scmp.eq.s32.totalorder %s17, 0
    %p50 = por %p48, %p49
    %p51 = scmp.ne.s32.totalorder %s37, %s38
    %p52 = scmp.eq.s32.totalorder %s18, 3
    %p53 = por %p51, %p52
    %p55 = scmp.ne.s32.totalorder %s38, %s54
    %p56 = scmp.eq.s32.totalorder %s18, 0
    %p57 = por %p55, %p56
    %s59 = sadd.s32 %s58, 1
    %p62 = scmp.eq.s32.totalorder %s12, 3
    %p63 = scmp.ne.s32.totalorder %s58, %s60
    %p64 = scmp.eq.s32.totalorder %s12, 0
    %p65 = por %p63, %p64
    %p66 = scmp.ne.s32.totalorder %s58, %s60
    %p67 = scmp.eq.s32.totalorder %s17, 3
    %p68 = por %p66, %p67
    %p69 = scmp.ne.s32.totalorder %s60, %s61
    %p70 = scmp.eq.s32.totalorder %s17, 0
    %p71 = por %p69, %p70
    %p72 = scmp.ne.s32.totalorder %s60, %s61
    %p73 = scmp.eq.s32.totalorder %s18, 3
    %p74 = por %p72, %p73
    %p76 = scmp.ne.s32.totalorder %s61, %s75
    %p77 = scmp.eq.s32.totalorder %s18, 0
    %p78 = por %p76, %p77
    %s80 = sadd.s32 %s79, 1
    %p83 = scmp.eq.s32.totalorder %s12, 3
    %p84 = scmp.ne.s32.totalorder %s79, %s81
    %p85 = scmp.eq.s32.totalorder %s12, 0
    %p86 = por %p84, %p85
    %p87 = scmp.ne.s32.totalorder %s79, %s81
    %p88 = scmp.eq.s32.totalorder %s17, 3
    %p89 = por %p87, %p88
    %p90 = scmp.ne.s32.totalorder %s81, %s82
    %p91 = scmp.eq.s32.totalorder %s17, 0
    %p92 = por %p90, %p91
    %p93 = scmp.ne.s32.totalorder %s81, %s82
    %p94 = scmp.eq.s32.totalorder %s18, 3
    %p95 = por %p93, %p94
    %p97 = scmp.ne.s32.totalorder %s82, %s96
    %p98 = scmp.eq.s32.totalorder %s18, 0
    %p99 = por %p97, %p98
    %s101 = sadd.s32 %s100, 1
    %p104 = scmp.eq.s32.totalorder %s12, 3
    %p105 = scmp.ne.s32.totalorder %s100, %s102
    %p106 = scmp.eq.s32.totalorder %s12, 0
    %p107 = por %p105, %p106
    %p108 = scmp.ne.s32.totalorder %s100, %s102
    %p109 = scmp.eq.s32.totalorder %s17, 3
    %p110 = por %p108, %p109
    %p111 = scmp.ne.s32.totalorder %s102, %s103
    %p112 = scmp.eq.s32.totalorder %s17, 0
    %p113 = por %p111, %p112
    %p114 = scmp.ne.s32.totalorder %s102, %s103
    %p115 = scmp.eq.s32.totalorder %s18, 3
    %p116 = por %p114, %p115
    %p118 = scmp.ne.s32.totalorder %s103, %s117
    %p119 = scmp.eq.s32.totalorder %s18, 0
    %p120 = por %p118, %p119
    %s122 = sadd.s32 %s121, 1
    %p125 = scmp.eq.s32.totalorder %s12, 3
    %p126 = scmp.ne.s32.totalorder %s121, %s123
    %p127 = scmp.eq.s32.totalorder %s12, 0
    %p128 = por %p126, %p127
    %p129 = scmp.ne.s32.totalorder %s121, %s123
    %p130 = scmp.eq.s32.totalorder %s17, 3
    %p131 = por %p129, %p130
    %p132 = scmp.ne.s32.totalorder %s123, %s124
    %p133 = scmp.eq.s32.totalorder %s17, 0
    %p134 = por %p132, %p133
    %p135 = scmp.ne.s32.totalorder %s123, %s124
    %p136 = scmp.eq.s32.totalorder %s18, 3
    %p137 = por %p135, %p136
    %p139 = scmp.ne.s32.totalorder %s124, %s138
    %p140 = scmp.eq.s32.totalorder %s18, 0
    %p141 = por %p139, %p140
    %s143 = sadd.s32 %s142, 1
    %p146 = scmp.eq.s32.totalorder %s12, 3
    %p147 = scmp.ne.s32.totalorder %s142, %s144
    %p148 = scmp.eq.s32.totalorder %s12, 0
    %p149 = por %p147, %p148
    %p150 = scmp.ne.s32.totalorder %s142, %s144
    %p151 = scmp.eq.s32.totalorder %s17, 3
    %p152 = por %p150, %p151
    %p153 = scmp.ne.s32.totalorder %s144, %s145
    %p154 = scmp.eq.s32.totalorder %s17, 0
    %p155 = por %p153, %p154
    %p156 = scmp.ne.s32.totalorder %s144, %s145
    %p157 = scmp.eq.s32.totalorder %s18, 3
    %p158 = por %p156, %p157
    %p160 = scmp.ne.s32.totalorder %s145, %s159
    %p161 = scmp.eq.s32.totalorder %s18, 0
    %p162 = por %p160, %p161
    %s163 = ssub.s32 %s19, %s31
    %s164 = ssub.s32 %s20, %s27
    %s165 = sor.u32 %s163, %s164
    %p166 = scmp.eq.s32.totalorder %s165, 0
    %s168 = sadd.s32 %s167, 1
    %s169 = scalar_select %p166, %s167, %s168
    %p172 = pneg %p166
    %p173 = scmp.eq.s32.totalorder %s12, 3
    %p174 = por %p172, %p173
    %p175 = scmp.ne.s32.totalorder %s167, %s170
    %p176 = scmp.eq.s32.totalorder %s12, 0
    %p177 = por %p175, %p176
    %p178 = scmp.ne.s32.totalorder %s167, %s170
    %p179 = scmp.eq.s32.totalorder %s17, 3
    %p180 = por %p178, %p179
    %p181 = scmp.ne.s32.totalorder %s170, %s171
    %p182 = scmp.eq.s32.totalorder %s17, 0
    %p183 = por %p181, %p182
    %p184 = scmp.ne.s32.totalorder %s170, %s171
    %p185 = scmp.eq.s32.totalorder %s18, 3
    %p186 = por %p184, %p185
    %p188 = scmp.ne.s32.totalorder %s171, %s187
    %p189 = scmp.eq.s32.totalorder %s18, 0
    %p190 = por %p188, %p189
    %p191 = scmp.le.s32.totalorder 1, %s12
    %p192 = scmp.lt.s32.totalorder %s12, 5
    %p193 = pnand %p191, %p192
    %p194 = pneg %p193
    // Predicated region
    $region9: #{quartznet_forward.7} parent=5 // pred_check
      _
    $region10: #{quartznet_forward.7} parent=5 // pred_check_branch
      %196 = sbr.rel (%p193) target = $region12
    $region11: #{quartznet_forward.7} parent=5 // pred_region
      %s197 = ssub.s32 %s12, 1
      // Predicated region
      $region13: #{quartznet_forward.7} parent=11 // pred_check
        %p198 = pneg %p71
      $region14: #{quartznet_forward.7} parent=11 // pred_check_branch
        %200 = sbr.rel (%p198) target = $region16
      $region15: #{quartznet_forward.7} parent=11 // pred_region
        _
      $region16: #{quartznet_forward.7} parent=11 // pred_fallthru
        _
      // Predicated region
      $region17: #{quartznet_forward.7} parent=11 // pred_check
        %p201 = pneg %p92
      $region18: #{quartznet_forward.7} parent=11 // pred_check_branch
        %203 = sbr.rel (%p201) target = $region20
      $region19: #{quartznet_forward.7} parent=11 // pred_region
        _
      $region20: #{quartznet_forward.7} parent=11 // pred_fallthru
        _
      // Predicated region
      $region21: #{quartznet_forward.7} parent=11 // pred_check
        %p204 = pneg %p113
      $region22: #{quartznet_forward.7} parent=11 // pred_check_branch
        %206 = sbr.rel (%p204) target = $region24
      $region23: #{quartznet_forward.7} parent=11 // pred_region
        _
      $region24: #{quartznet_forward.7} parent=11 // pred_fallthru
        _
      // Predicated region
      $region25: #{quartznet_forward.7} parent=11 // pred_check
        %p207 = pneg %p134
      $region26: #{quartznet_forward.7} parent=11 // pred_check_branch
        %209 = sbr.rel (%p207) target = $region28
      $region27: #{quartznet_forward.7} parent=11 // pred_region
        _
      $region28: #{quartznet_forward.7} parent=11 // pred_fallthru
        _
      // Predicated region
      $region29: #{quartznet_forward.7} parent=11 // pred_check
        %p210 = pneg %p155
      $region30: #{quartznet_forward.7} parent=11 // pred_check_branch
        %212 = sbr.rel (%p210) target = $region32
      $region31: #{quartznet_forward.7} parent=11 // pred_region
        _
      $region32: #{quartznet_forward.7} parent=11 // pred_fallthru
        _
    $region12: #{quartznet_forward.7} parent=5 // pred_fallthru
      _
    %p213 = scmp.lt.s32.totalorder %s12, 4
    // Predicated region
    $region33: #{quartznet_forward.7} parent=5 // pred_check
      %p214 = pneg %p213
    $region34: #{quartznet_forward.7} parent=5 // pred_check_branch
      %216 = sbr.rel (%p214) target = $region36
    $region35: #{quartznet_forward.7} parent=5 // pred_region
      // Predicated region
      $region37: #{quartznet_forward.7} parent=35 // pred_check
        %p217 = pneg %p44
      $region38: #{quartznet_forward.7} parent=35 // pred_check_branch
        %219 = sbr.rel (%p217) target = $region40
      $region39: #{quartznet_forward.7} parent=35 // pred_region
        %p220 = scmp.lt.s32.totalorder %s19, 1
        %s221 = scalar_select %p220, %s19, 1
        %s222 = smul.addr %s221, 5
        %s223 = smul.addr %s222, 8
        %s224 = scalar_lea.vmem %s0, %s223
      $region40: #{quartznet_forward.7} parent=35 // pred_fallthru
        _
    $region36: #{quartznet_forward.7} parent=5 // pred_fallthru
      _
    %p225 = scmp.le.s32.totalorder 1, %s12
    %p226 = scmp.lt.s32.totalorder %s12, 5
    %p227 = pnand %p225, %p226
    %p228 = pneg %p227
    // Predicated region
    $region41: #{quartznet_forward.7} parent=5 // pred_check
      _
    $region42: #{quartznet_forward.7} parent=5 // pred_check_branch
      %230 = sbr.rel (%p227) target = $region44
    $region43: #{quartznet_forward.7} parent=5 // pred_region
      %s231 = ssub.s32 %s12, 1
      %p232 = scmp.lt.s32.totalorder %s21, 1
      %s233 = scalar_select %p232, %s21, 1
      %s234 = smul.addr %s233, 5
      %s235 = smul.addr %s234, 8
      %s236 = scalar_lea.vmem %s0, %s235
      %p237 = pneg %p50
      %p238 = pneg %p47
      %p239 = pneg %p71
      %p240 = pneg %p68
      %p241 = pneg %p92
      %p242 = pneg %p89
      %p243 = pneg %p113
      %p244 = pneg %p110
      %p245 = pneg %p134
      %p246 = pneg %p131
      %p247 = pneg %p155
      %p248 = pneg %p152
      %p249 = pneg %p183
      %p250 = pneg %p180
      %s251 = smul.u32 2, %s22
      %p252 = scmp.lt.s32.totalorder %s21, 1
      %s253 = scalar_select %p252, %s21, 1
      %p254 = scmp.lt.s32.totalorder %s251, 3
      %s255 = scalar_select %p254, %s251, 3
      %s256 = smul.addr %s253, 4
      %s257 = sadd.s32 %s255, %s256
      %s258 = smul.addr %s257, 8
      %s259 = scalar_lea.vmem %s6, %s258
      %p260 = scmp.lt.s32.totalorder %s21, 1
      %s261 = scalar_select %p260, %s21, 1
      %s262 = smul.addr %s261, 5
      %s263 = smul.addr %s262, 8
      %s264 = scalar_lea.vmem %s0, %s263
      %s265 = smul.u32 2, %s22
      %p266 = scmp.lt.s32.totalorder %s21, 1
      %s267 = scalar_select %p266, %s21, 1
      %p268 = scmp.lt.s32.totalorder %s265, 3
      %s269 = scalar_select %p268, %s265, 3
      %s270 = smul.addr %s267, 4
      %s271 = sadd.s32 %s269, %s270
      %s272 = smul.addr %s271, 8
      %s273 = scalar_lea.vmem %s6, %s272
      %s274 = smul.u32 2, %s22
      %s276 = smul.u32 %s22, 16
      %s277 = scalar_lea.vmem %s264, %s276
      %v278 = vld [vmem:[%s277] sm:$0xff]
      %v279 = vld [vmem:[%s277 + $0x8] sm:$0xff]
      %v280 = vld [vmem:[%s277 + $0x10] sm:$0xf]
      %v281 = vld [vmem:[%s1] sm:$0x7]
      %v282 = vperm.slane %v281, 0
      %v283 = vmul.f32 %v278, %v282
      %v284 = vmul.f32 %v279, %v282
      %v285 = vadd.f32 %v283, 0.0
      %v286 = vadd.f32 %v284, 0.0
      %v287 = vperm.slane %v281, 1
      %v288 = vmul.f32 %v278, %v287
      %v289 = vmul.f32 %v279, %v287
      %v290 = vmul.f32 %v280, %v287
      %vm294 = vcmask 1045504
      %v295 = vrot.slane %v288, 2
      %v296 = vrot.slane %v289, 2
      %v297 = vsel %vm294, %v295, %v296
      %v298 = vrot.slane %v290, 2
      %v299 = vsel %vm294, %v296, %v298
      %v302 = vadd.f32 %v285, %v297
      %v303 = vadd.f32 %v286, %v299
      %v304 = vperm.slane %v281, 2
      %v305 = vmul.f32 %v278, %v304
      %v306 = vmul.f32 %v279, %v304
      %v307 = vmul.f32 %v280, %v304
      %vm311 = vcmask 1043456
      %v312 = vrot.slane %v305, 4
      %v313 = vrot.slane %v306, 4
      %v314 = vsel %vm311, %v312, %v313
      %v315 = vrot.slane %v307, 4
      %v316 = vsel %vm311, %v313, %v315
      %v319 = vadd.f32 %v302, %v314
      %v320 = vadd.f32 %v303, %v316
      %v321 = vld [vmem:[%s2] sm:$0x1]
      %v323 = vperm.slane %v321, 0
      %v325 = vadd.f32 %v319, %v323
      %v326 = vadd.f32 %v320, %v323
      %v327 = vpack.c.bf16 %v326, %v325
      %v328 = vld [vmem:[%s3] sm:$0xf]
      %v329 = vld [vmem:[%s3 + $0x4] sm:$0xf]
      %v330 = vld [vmem:[%s3 + $0x8] sm:$0xf]
      %v331 = vld [vmem:[%s3 + $0xc] sm:$0xf]
      %v336 = vunpack.c.l.b16 %v328
      %v337 = vunpack.c.l.b16 %v329
      %v338 = vunpack.c.l.b16 %v330
      %v339 = vunpack.c.l.b16 %v331
      %v340 = vpack.c.b16 %v337, %v336
      %v341 = vpack.c.b16 %v339, %v338
      %vm344 = vcmask 261120
      %v346 = vsel %vm344, %v327, 0
      %348 = vmatpush.bf16.msra.mxu0 0
      %349 = vmatpush.bf16.msra.mxu0 0
      %350 = vmatpush.bf16.msra.mxu0 0
      %351 = vmatpush.bf16.msra.mxu0 0
      %352 = vmatpush.bf16.msra.mxu0 0
      %353 = vmatpush.bf16.msra.mxu0 0
      %354 = vmatpush.bf16.msra.mxu0 %v341
      %355 = vmatpush.bf16.msra.mxu0 %v340
      %356 = vmatmul.bf16.gmra.mxu0 %v346
      %v357 = vpop.f32.mrf.mxu0
      %v358 = vadd.f32 0.0, %v357
      %v359 = vpop.f32.mrf.mxu0
      %v360 = vadd.f32 0.0, %v359
      %361 = vdwg.mxu0
      %v362 = vld [vmem:[%s4] sm:$0x1]
      %v364 = vperm.slane %v362, 0
      %v366 = vmul.f32 %v358, %v364
      %v367 = vmul.f32 %v360, %v364
      %v368 = vld [vmem:[%s5] sm:$0x1]
      %v370 = vperm.slane %v368, 0
      %v372 = vadd.f32 %v366, %v370
      %v373 = vadd.f32 %v367, %v370
      %v374 = vmax.f32 %v372, 0.0
      %v375 = vmax.f32 %v373, 0.0
      %376 = vst.msk [vmem:[%s273] sm:$0xff] %vm344, %v374
      %377 = vst.msk [vmem:[%s273 + $0x8] sm:$0xff] %vm344, %v375
      %s378 = smul.u32 2, %s22
      %p379 = scmp.lt.s32.totalorder %s21, 1
      %s380 = scalar_select %p379, %s21, 1
      %p381 = scmp.lt.s32.totalorder %s378, 3
      %s382 = scalar_select %p381, %s378, 3
      %s383 = smul.addr %s380, 4
      %s384 = sadd.s32 %s382, %s383
      %s385 = smul.addr %s384, 8
      %s386 = scalar_lea.vmem %s6, %s385
      // Predicated region
      $region45: #{quartznet_forward.7} parent=43 // pred_check
        %p387 = pneg %p180
      $region46: #{quartznet_forward.7} parent=43 // pred_check_branch
        %389 = sbr.rel (%p387) target = $region48
      $region47: #{quartznet_forward.7} parent=43 // pred_region
        %s390 = smul.u32 2, %s22
      $region48: #{quartznet_forward.7} parent=43 // pred_fallthru
        _
    $region44: #{quartznet_forward.7} parent=5 // pred_fallthru
      _
    %p391 = scmp.le.s32.totalorder 2, %s12
    // Predicated region
    $region49: #{quartznet_forward.7} parent=5 // pred_check
      %p392 = pneg %p391
    $region50: #{quartznet_forward.7} parent=5 // pred_check_branch
      %394 = sbr.rel (%p392) target = $region52
    $region51: #{quartznet_forward.7} parent=5 // pred_region
      %s395 = ssub.s32 %s12, 2
      // Predicated region
      $region53: #{quartznet_forward.7} parent=51 // pred_check
        %p396 = pneg %p186
      $region54: #{quartznet_forward.7} parent=51 // pred_check_branch
        %398 = sbr.rel (%p396) target = $region56
      $region55: #{quartznet_forward.7} parent=51 // pred_region
        %s399 = smul.u32 2, %s24
        %p400 = scmp.lt.s32.totalorder %s23, 1
        %s401 = scalar_select %p400, %s23, 1
        %p402 = scmp.lt.s32.totalorder %s399, 3
        %s403 = scalar_select %p402, %s399, 3
        %s404 = smul.addr %s401, 4
        %s405 = sadd.s32 %s403, %s404
        %s406 = smul.addr %s405, 8
        %s407 = scalar_lea.vmem %s6, %s406
      $region56: #{quartznet_forward.7} parent=51 // pred_fallthru
        _
    $region52: #{quartznet_forward.7} parent=5 // pred_fallthru
      _
  $region6: #{quartznet_forward.7} parent=0 // loop_footer
    %s16 = sadd.s32 1, %s12
  $region7: #{quartznet_forward.7} parent=0 // loop_footer_branch
    %11 = sbr.rel target = $region3
  $region8: #{quartznet_forward.7} parent=0 // loop_exit
    _

// kernel: quartznet_forward.8
$region0: #{quartznet_forward.8}
  #allocation0 [shape = 'u32[]', space=smem, size = 0x4, offset = 0x4, fixed_abs, tag = 'smem constant byte address 0x4 - core index']
  #allocation1 [shape = 'u32[72,128]{1,0:T(1,128)}', space=vmem, size = 0x9000, scoped, tag = 'internal scratch']
  %s0 = inlined_call_operand.vmem [shape: f32[2,36,32], index: 0, kind: input, shape index: {}]
  %s1 = inlined_call_operand.vmem [shape: f32[3,32], index: 1, kind: input, shape index: {}]
  %s2 = inlined_call_operand.vmem [shape: f32[1,32], index: 2, kind: input, shape index: {}]
  %s3 = inlined_call_operand.vmem [shape: bf16[32,32], index: 3, kind: input, shape index: {}]
  %s4 = inlined_call_operand.vmem [shape: f32[1,32], index: 4, kind: input, shape index: {}]
  %s5 = inlined_call_operand.vmem [shape: f32[1,32], index: 5, kind: input, shape index: {}]
  %s6 = inlined_call_operand.vmem [shape: f32[2,32,32], index: 6, kind: input, shape index: {}]
  %s7 = inlined_call_operand.vmem [shape: bf16[32,32], index: 7, kind: input, shape index: {}]
  %s8 = inlined_call_operand.vmem [shape: f32[1,32], index: 8, kind: input, shape index: {}]
  %s9 = inlined_call_operand.vmem [shape: f32[1,32], index: 9, kind: input, shape index: {}]
  %s10 = inlined_call_operand.vmem [shape: f32[2,32,32], index: 10, kind: output, shape index: {}]
  %s11 = sld [smem:[#allocation0]]
  $region73: #{quartznet_forward.8} parent=0
    _
  %s13 = ssub.s32 1, %s11
  %s14 = scalar_select 0, %s13, %s11
  loop: start=0, step=1, limit=6
  $region2: #{quartznet_forward.8} parent=0 // loop_pre_header
    _
  $region3: #{quartznet_forward.8} parent=0 // loop_header
    %s16 = sphi 0, %s20
    %p17 = scmp.ge.s32.totalorder %s16, 6
    %s23 = sphi 0, %s35
    %s24 = sphi 0, %s31
    %s25 = sphi 0, %s23
    %s26 = sphi 0, %s24
    %s27 = sphi 0, %s25
    %s28 = sphi 0, %s26
    %s38 = sphi 0, %s40
    %s41 = sphi 0, %s38
    %s42 = sphi 0, %s41
    %s58 = sphi 0, %s42
    %s62 = sphi 0, %s62
    %s64 = sphi 0, %s62
    %s65 = sphi 0, %s64
    %s79 = sphi 0, %s65
    %s83 = sphi 0, %s83
    %s85 = sphi 0, %s83
    %s86 = sphi 0, %s85
    %s100 = sphi 0, %s86
    %s104 = sphi 0, %s104
    %s106 = sphi 0, %s104
    %s107 = sphi 0, %s106
    %s121 = sphi 0, %s107
    %s125 = sphi 0, %s125
    %s127 = sphi 0, %s125
    %s128 = sphi 0, %s127
    %s142 = sphi 0, %s128
    %s146 = sphi 0, %s146
    %s148 = sphi 0, %s146
    %s149 = sphi 0, %s148
    %s163 = sphi 0, %s149
    %s171 = sphi 0, %s173
    %s174 = sphi 0, %s171
    %s175 = sphi 0, %s174
    %s191 = sphi 0, %s175
    %s195 = sphi 0, %s195
    %s197 = sphi 0, %s195
    %s198 = sphi 0, %s197
    %s212 = sphi 0, %s198
    %s216 = sphi 0, %s216
    %s218 = sphi 0, %s216
    %s219 = sphi 0, %s218
    %s233 = sphi 0, %s219
    %s237 = sphi 0, %s237
    %s239 = sphi 0, %s237
    %s240 = sphi 0, %s239
    %s254 = sphi 0, %s240
    %s262 = sphi 0, %s264
    %s265 = sphi 0, %s262
    %s266 = sphi 0, %s265
    %s282 = sphi 0, %s266
  $region4: #{quartznet_forward.8} parent=0 // loop_header_branch
    %19 = sbr.rel (%p17) target = $region8
  $region5: #{quartznet_forward.8} parent=0 // loop_body
    %s21 = ssub.s32 %s16, 1
    %s22 = ssub.s32 %s16, 2
    %s29 = sadd.s32 1, %s24
    %p30 = scmp.ge.s32.totalorder %s29, 2
    %s31 = scalar_select %p30, 0, %s29
    %s32 = sadd.s32 1, %s23
    %s33 = scalar_select %p30, %s32, %s23
    %p34 = scmp.ge.s32.totalorder %s33, 2
    %s35 = scalar_select %p34, 0, %s33
    %s36 = ssub.s32 %s23, %s35
    %p37 = scmp.eq.s32.totalorder %s36, 0
    %s39 = sadd.s32 %s38, 1
    %s40 = scalar_select %p37, %s38, %s39
    %p43 = pneg %p37
    %p44 = scmp.eq.s32.totalorder %s16, 3
    %p45 = por %p43, %p44
    %p46 = scmp.ne.s32.totalorder %s38, %s41
    %p47 = scmp.eq.s32.totalorder %s16, 0
    %p48 = por %p46, %p47
    %p49 = scmp.ne.s32.totalorder %s38, %s41
    %p50 = scmp.eq.s32.totalorder %s21, 3
    %p51 = por %p49, %p50
    %p52 = scmp.ne.s32.totalorder %s41, %s42
    %p53 = scmp.eq.s32.totalorder %s21, 0
    %p54 = por %p52, %p53
    %p55 = scmp.ne.s32.totalorder %s41, %s42
    %p56 = scmp.eq.s32.totalorder %s22, 3
    %p57 = por %p55, %p56
    %p59 = scmp.ne.s32.totalorder %s42, %s58
    %p60 = scmp.eq.s32.totalorder %s22, 0
    %p61 = por %p59, %p60
    %s63 = sadd.s32 %s62, 1
    %p66 = scmp.eq.s32.totalorder %s16, 3
    %p67 = scmp.ne.s32.totalorder %s62, %s64
    %p68 = scmp.eq.s32.totalorder %s16, 0
    %p69 = por %p67, %p68
    %p70 = scmp.ne.s32.totalorder %s62, %s64
    %p71 = scmp.eq.s32.totalorder %s21, 3
    %p72 = por %p70, %p71
    %p73 = scmp.ne.s32.totalorder %s64, %s65
    %p74 = scmp.eq.s32.totalorder %s21, 0
    %p75 = por %p73, %p74
    %p76 = scmp.ne.s32.totalorder %s64, %s65
    %p77 = scmp.eq.s32.totalorder %s22, 3
    %p78 = por %p76, %p77
    %p80 = scmp.ne.s32.totalorder %s65, %s79
    %p81 = scmp.eq.s32.totalorder %s22, 0
    %p82 = por %p80, %p81
    %s84 = sadd.s32 %s83, 1
    %p87 = scmp.eq.s32.totalorder %s16, 3
    %p88 = scmp.ne.s32.totalorder %s83, %s85
    %p89 = scmp.eq.s32.totalorder %s16, 0
    %p90 = por %p88, %p89
    %p91 = scmp.ne.s32.totalorder %s83, %s85
    %p92 = scmp.eq.s32.totalorder %s21, 3
    %p93 = por %p91, %p92
    %p94 = scmp.ne.s32.totalorder %s85, %s86
    %p95 = scmp.eq.s32.totalorder %s21, 0
    %p96 = por %p94, %p95
    %p97 = scmp.ne.s32.totalorder %s85, %s86
    %p98 = scmp.eq.s32.totalorder %s22, 3
    %p99 = por %p97, %p98
    %p101 = scmp.ne.s32.totalorder %s86, %s100
    %p102 = scmp.eq.s32.totalorder %s22, 0
    %p103 = por %p101, %p102
    %s105 = sadd.s32 %s104, 1
    %p108 = scmp.eq.s32.totalorder %s16, 3
    %p109 = scmp.ne.s32.totalorder %s104, %s106
    %p110 = scmp.eq.s32.totalorder %s16, 0
    %p111 = por %p109, %p110
    %p112 = scmp.ne.s32.totalorder %s104, %s106
    %p113 = scmp.eq.s32.totalorder %s21, 3
    %p114 = por %p112, %p113
    %p115 = scmp.ne.s32.totalorder %s106, %s107
    %p116 = scmp.eq.s32.totalorder %s21, 0
    %p117 = por %p115, %p116
    %p118 = scmp.ne.s32.totalorder %s106, %s107
    %p119 = scmp.eq.s32.totalorder %s22, 3
    %p120 = por %p118, %p119
    %p122 = scmp.ne.s32.totalorder %s107, %s121
    %p123 = scmp.eq.s32.totalorder %s22, 0
    %p124 = por %p122, %p123
    %s126 = sadd.s32 %s125, 1
    %p129 = scmp.eq.s32.totalorder %s16, 3
    %p130 = scmp.ne.s32.totalorder %s125, %s127
    %p131 = scmp.eq.s32.totalorder %s16, 0
    %p132 = por %p130, %p131
    %p133 = scmp.ne.s32.totalorder %s125, %s127
    %p134 = scmp.eq.s32.totalorder %s21, 3
    %p135 = por %p133, %p134
    %p136 = scmp.ne.s32.totalorder %s127, %s128
    %p137 = scmp.eq.s32.totalorder %s21, 0
    %p138 = por %p136, %p137
    %p139 = scmp.ne.s32.totalorder %s127, %s128
    %p140 = scmp.eq.s32.totalorder %s22, 3
    %p141 = por %p139, %p140
    %p143 = scmp.ne.s32.totalorder %s128, %s142
    %p144 = scmp.eq.s32.totalorder %s22, 0
    %p145 = por %p143, %p144
    %s147 = sadd.s32 %s146, 1
    %p150 = scmp.eq.s32.totalorder %s16, 3
    %p151 = scmp.ne.s32.totalorder %s146, %s148
    %p152 = scmp.eq.s32.totalorder %s16, 0
    %p153 = por %p151, %p152
    %p154 = scmp.ne.s32.totalorder %s146, %s148
    %p155 = scmp.eq.s32.totalorder %s21, 3
    %p156 = por %p154, %p155
    %p157 = scmp.ne.s32.totalorder %s148, %s149
    %p158 = scmp.eq.s32.totalorder %s21, 0
    %p159 = por %p157, %p158
    %p160 = scmp.ne.s32.totalorder %s148, %s149
    %p161 = scmp.eq.s32.totalorder %s22, 3
    %p162 = por %p160, %p161
    %p164 = scmp.ne.s32.totalorder %s149, %s163
    %p165 = scmp.eq.s32.totalorder %s22, 0
    %p166 = por %p164, %p165
    %s167 = ssub.s32 %s23, %s35
    %s168 = ssub.s32 %s24, %s31
    %s169 = sor.u32 %s167, %s168
    %p170 = scmp.eq.s32.totalorder %s169, 0
    %s172 = sadd.s32 %s171, 1
    %s173 = scalar_select %p170, %s171, %s172
    %p176 = pneg %p170
    %p177 = scmp.eq.s32.totalorder %s16, 3
    %p178 = por %p176, %p177
    %p179 = scmp.ne.s32.totalorder %s171, %s174
    %p180 = scmp.eq.s32.totalorder %s16, 0
    %p181 = por %p179, %p180
    %p182 = scmp.ne.s32.totalorder %s171, %s174
    %p183 = scmp.eq.s32.totalorder %s21, 3
    %p184 = por %p182, %p183
    %p185 = scmp.ne.s32.totalorder %s174, %s175
    %p186 = scmp.eq.s32.totalorder %s21, 0
    %p187 = por %p185, %p186
    %p188 = scmp.ne.s32.totalorder %s174, %s175
    %p189 = scmp.eq.s32.totalorder %s22, 3
    %p190 = por %p188, %p189
    %p192 = scmp.ne.s32.totalorder %s175, %s191
    %p193 = scmp.eq.s32.totalorder %s22, 0
    %p194 = por %p192, %p193
    %s196 = sadd.s32 %s195, 1
    %p199 = scmp.eq.s32.totalorder %s16, 3
    %p200 = scmp.ne.s32.totalorder %s195, %s197
    %p201 = scmp.eq.s32.totalorder %s16, 0
    %p202 = por %p200, %p201
    %p203 = scmp.ne.s32.totalorder %s195, %s197
    %p204 = scmp.eq.s32.totalorder %s21, 3
    %p205 = por %p203, %p204
    %p206 = scmp.ne.s32.totalorder %s197, %s198
    %p207 = scmp.eq.s32.totalorder %s21, 0
    %p208 = por %p206, %p207
    %p209 = scmp.ne.s32.totalorder %s197, %s198
    %p210 = scmp.eq.s32.totalorder %s22, 3
    %p211 = por %p209, %p210
    %p213 = scmp.ne.s32.totalorder %s198, %s212
    %p214 = scmp.eq.s32.totalorder %s22, 0
    %p215 = por %p213, %p214
    %s217 = sadd.s32 %s216, 1
    %p220 = scmp.eq.s32.totalorder %s16, 3
    %p221 = scmp.ne.s32.totalorder %s216, %s218
    %p222 = scmp.eq.s32.totalorder %s16, 0
    %p223 = por %p221, %p222
    %p224 = scmp.ne.s32.totalorder %s216, %s218
    %p225 = scmp.eq.s32.totalorder %s21, 3
    %p226 = por %p224, %p225
    %p227 = scmp.ne.s32.totalorder %s218, %s219
    %p228 = scmp.eq.s32.totalorder %s21, 0
    %p229 = por %p227, %p228
    %p230 = scmp.ne.s32.totalorder %s218, %s219
    %p231 = scmp.eq.s32.totalorder %s22, 3
    %p232 = por %p230, %p231
    %p234 = scmp.ne.s32.totalorder %s219, %s233
    %p235 = scmp.eq.s32.totalorder %s22, 0
    %p236 = por %p234, %p235
    %s238 = sadd.s32 %s237, 1
    %p241 = scmp.eq.s32.totalorder %s16, 3
    %p242 = scmp.ne.s32.totalorder %s237, %s239
    %p243 = scmp.eq.s32.totalorder %s16, 0
    %p244 = por %p242, %p243
    %p245 = scmp.ne.s32.totalorder %s237, %s239
    %p246 = scmp.eq.s32.totalorder %s21, 3
    %p247 = por %p245, %p246
    %p248 = scmp.ne.s32.totalorder %s239, %s240
    %p249 = scmp.eq.s32.totalorder %s21, 0
    %p250 = por %p248, %p249
    %p251 = scmp.ne.s32.totalorder %s239, %s240
    %p252 = scmp.eq.s32.totalorder %s22, 3
    %p253 = por %p251, %p252
    %p255 = scmp.ne.s32.totalorder %s240, %s254
    %p256 = scmp.eq.s32.totalorder %s22, 0
    %p257 = por %p255, %p256
    %s258 = ssub.s32 %s23, %s35
    %s259 = ssub.s32 %s24, %s31
    %s260 = sor.u32 %s258, %s259
    %p261 = scmp.eq.s32.totalorder %s260, 0
    %s263 = sadd.s32 %s262, 1
    %s264 = scalar_select %p261, %s262, %s263
    %p267 = pneg %p261
    %p268 = scmp.eq.s32.totalorder %s16, 3
    %p269 = por %p267, %p268
    %p270 = scmp.ne.s32.totalorder %s262, %s265
    %p271 = scmp.eq.s32.totalorder %s16, 0
    %p272 = por %p270, %p271
    %p273 = scmp.ne.s32.totalorder %s262, %s265
    %p274 = scmp.eq.s32.totalorder %s21, 3
    %p275 = por %p273, %p274
    %p276 = scmp.ne.s32.totalorder %s265, %s266
    %p277 = scmp.eq.s32.totalorder %s21, 0
    %p278 = por %p276, %p277
    %p279 = scmp.ne.s32.totalorder %s265, %s266
    %p280 = scmp.eq.s32.totalorder %s22, 3
    %p281 = por %p279, %p280
    %p283 = scmp.ne.s32.totalorder %s266, %s282
    %p284 = scmp.eq.s32.totalorder %s22, 0
    %p285 = por %p283, %p284
    %p286 = scmp.le.s32.totalorder 1, %s16
    %p287 = scmp.lt.s32.totalorder %s16, 5
    %p288 = pnand %p286, %p287
    %p289 = pneg %p288
    // Predicated region
    $region9: #{quartznet_forward.8} parent=5 // pred_check
      _
    $region10: #{quartznet_forward.8} parent=5 // pred_check_branch
      %291 = sbr.rel (%p288) target = $region12
    $region11: #{quartznet_forward.8} parent=5 // pred_region
      %s292 = ssub.s32 %s16, 1
      // Predicated region
      $region13: #{quartznet_forward.8} parent=11 // pred_check
        %p293 = pneg %p75
      $region14: #{quartznet_forward.8} parent=11 // pred_check_branch
        %295 = sbr.rel (%p293) target = $region16
      $region15: #{quartznet_forward.8} parent=11 // pred_region
        _
      $region16: #{quartznet_forward.8} parent=11 // pred_fallthru
        _
      // Predicated region
      $region17: #{quartznet_forward.8} parent=11 // pred_check
        %p296 = pneg %p96
      $region18: #{quartznet_forward.8} parent=11 // pred_check_branch
        %298 = sbr.rel (%p296) target = $region20
      $region19: #{quartznet_forward.8} parent=11 // pred_region
        _
      $region20: #{quartznet_forward.8} parent=11 // pred_fallthru
        _
      // Predicated region
      $region21: #{quartznet_forward.8} parent=11 // pred_check
        %p299 = pneg %p117
      $region22: #{quartznet_forward.8} parent=11 // pred_check_branch
        %301 = sbr.rel (%p299) target = $region24
      $region23: #{quartznet_forward.8} parent=11 // pred_region
        _
      $region24: #{quartznet_forward.8} parent=11 // pred_fallthru
        _
      // Predicated region
      $region25: #{quartznet_forward.8} parent=11 // pred_check
        %p302 = pneg %p138
      $region26: #{quartznet_forward.8} parent=11 // pred_check_branch
        %304 = sbr.rel (%p302) target = $region28
      $region27: #{quartznet_forward.8} parent=11 // pred_region
        _
      $region28: #{quartznet_forward.8} parent=11 // pred_fallthru
        _
      // Predicated region
      $region29: #{quartznet_forward.8} parent=11 // pred_check
        %p305 = pneg %p159
      $region30: #{quartznet_forward.8} parent=11 // pred_check_branch
        %307 = sbr.rel (%p305) target = $region32
      $region31: #{quartznet_forward.8} parent=11 // pred_region
        _
      $region32: #{quartznet_forward.8} parent=11 // pred_fallthru
        _
      // Predicated region
      $region33: #{quartznet_forward.8} parent=11 // pred_check
        %p308 = pneg %p208
      $region34: #{quartznet_forward.8} parent=11 // pred_check_branch
        %310 = sbr.rel (%p308) target = $region36
      $region35: #{quartznet_forward.8} parent=11 // pred_region
        _
      $region36: #{quartznet_forward.8} parent=11 // pred_fallthru
        _
      // Predicated region
      $region37: #{quartznet_forward.8} parent=11 // pred_check
        %p311 = pneg %p229
      $region38: #{quartznet_forward.8} parent=11 // pred_check_branch
        %313 = sbr.rel (%p311) target = $region40
      $region39: #{quartznet_forward.8} parent=11 // pred_region
        _
      $region40: #{quartznet_forward.8} parent=11 // pred_fallthru
        _
      // Predicated region
      $region41: #{quartznet_forward.8} parent=11 // pred_check
        %p314 = pneg %p250
      $region42: #{quartznet_forward.8} parent=11 // pred_check_branch
        %316 = sbr.rel (%p314) target = $region44
      $region43: #{quartznet_forward.8} parent=11 // pred_region
        _
      $region44: #{quartznet_forward.8} parent=11 // pred_fallthru
        _
    $region12: #{quartznet_forward.8} parent=5 // pred_fallthru
      _
    %p317 = scmp.lt.s32.totalorder %s16, 4
    // Predicated region
    $region45: #{quartznet_forward.8} parent=5 // pred_check
      %p318 = pneg %p317
    $region46: #{quartznet_forward.8} parent=5 // pred_check_branch
      %320 = sbr.rel (%p318) target = $region48
    $region47: #{quartznet_forward.8} parent=5 // pred_region
      // Predicated region
      $region49: #{quartznet_forward.8} parent=47 // pred_check
        %p321 = pneg %p48
      $region50: #{quartznet_forward.8} parent=47 // pred_check_branch
        %323 = sbr.rel (%p321) target = $region52
      $region51: #{quartznet_forward.8} parent=47 // pred_region
        %p324 = scmp.lt.s32.totalorder %s23, 1
        %s325 = scalar_select %p324, %s23, 1
        %s326 = smul.addr %s325, 5
        %s327 = smul.addr %s326, 8
        %s328 = scalar_lea.vmem %s0, %s327
      $region52: #{quartznet_forward.8} parent=47 // pred_fallthru
        _
      // Predicated region
      $region53: #{quartznet_forward.8} parent=47 // pred_check
        %p329 = pneg %p181
      $region54: #{quartznet_forward.8} parent=47 // pred_check_branch
        %331 = sbr.rel (%p329) target = $region56
      $region55: #{quartznet_forward.8} parent=47 // pred_region
        %s332 = smul.u32 2, %s24
        %p333 = scmp.lt.s32.totalorder %s23, 1
        %s334 = scalar_select %p333, %s23, 1
        %p335 = scmp.lt.s32.totalorder %s332, 3
        %s336 = scalar_select %p335, %s332, 3
        %s337 = smul.addr %s334, 4
        %s338 = sadd.s32 %s336, %s337
        %s339 = smul.addr %s338, 8
        %s340 = scalar_lea.vmem %s6, %s339
        %s341 = smul.u32 2, %s24
      $region56: #{quartznet_forward.8} parent=47 // pred_fallthru
        _
    $region48: #{quartznet_forward.8} parent=5 // pred_fallthru
      _
    %p342 = scmp.le.s32.totalorder 1, %s16
    %p343 = scmp.lt.s32.totalorder %s16, 5
    %p344 = pnand %p342, %p343
    %p345 = pneg %p344
    // Predicated region
    $region57: #{quartznet_forward.8} parent=5 // pred_check
      _
    $region58: #{quartznet_forward.8} parent=5 // pred_check_branch
      %347 = sbr.rel (%p344) target = $region60
    $region59: #{quartznet_forward.8} parent=5 // pred_region
      %s348 = ssub.s32 %s16, 1
      %p349 = scmp.lt.s32.totalorder %s25, 1
      %s350 = scalar_select %p349, %s25, 1
      %s351 = smul.addr %s350, 5
      %s352 = smul.addr %s351, 8
      %s353 = scalar_lea.vmem %s0, %s352
      %p354 = pneg %p54
      %p355 = pneg %p51
      %p356 = pneg %p75
      %p357 = pneg %p72
      %p358 = pneg %p96
      %p359 = pneg %p93
      %p360 = pneg %p117
      %p361 = pneg %p114
      %p362 = pneg %p138
      %p363 = pneg %p135
      %p364 = pneg %p159
      %p365 = pneg %p156
      %s366 = smul.u32 2, %s26
      %p367 = scmp.lt.s32.totalorder %s25, 1
      %s368 = scalar_select %p367, %s25, 1
      %p369 = scmp.lt.s32.totalorder %s366, 3
      %s370 = scalar_select %p369, %s366, 3
      %s371 = smul.addr %s368, 4
      %s372 = sadd.s32 %s370, %s371
      %s373 = smul.addr %s372, 8
      %s374 = scalar_lea.vmem %s6, %s373
      %p375 = pneg %p187
      %p376 = pneg %p184
      %p377 = pneg %p208
      %p378 = pneg %p205
      %p379 = pneg %p229
      %p380 = pneg %p226
      %p381 = pneg %p250
      %p382 = pneg %p247
      %p383 = pneg %p278
      %p384 = pneg %p275
      %s385 = smul.u32 2, %s26
      %p386 = scmp.lt.s32.totalorder %s25, 1
      %s387 = scalar_select %p386, %s25, 1
      %p388 = scmp.lt.s32.totalorder %s385, 3
      %s389 = scalar_select %p388, %s385, 3
      %s390 = smul.addr %s387, 4
      %s391 = sadd.s32 %s389, %s390
      %s392 = smul.addr %s391, 8
      %s393 = scalar_lea.vmem %s10, %s392
      %p394 = scmp.lt.s32.totalorder %s25, 1
      %s395 = scalar_select %p394, %s25, 1
      %s396 = smul.addr %s395, 5
      %s397 = smul.addr %s396, 8
      %s398 = scalar_lea.vmem %s0, %s397
      %s399 = smul.u32 2, %s26
      %p400 = scmp.lt.s32.totalorder %s25, 1
      %s401 = scalar_select %p400, %s25, 1
      %p402 = scmp.lt.s32.totalorder %s399, 3
      %s403 = scalar_select %p402, %s399, 3
      %s404 = smul.addr %s401, 4
      %s405 = sadd.s32 %s403, %s404
      %s406 = smul.addr %s405, 8
      %s407 = scalar_lea.vmem %s6, %s406
      %s408 = smul.u32 2, %s26
      %s409 = smul.u32 2, %s26
      %p410 = scmp.lt.s32.totalorder %s25, 1
      %s411 = scalar_select %p410, %s25, 1
      %p412 = scmp.lt.s32.totalorder %s409, 3
      %s413 = scalar_select %p412, %s409, 3
      %s414 = smul.addr %s411, 4
      %s415 = sadd.s32 %s413, %s414
      %s416 = smul.addr %s415, 8
      %s417 = scalar_lea.vmem %s10, %s416
      %s418 = smul.u32 2, %s26
      %s420 = smul.u32 %s26, 16
      %s421 = scalar_lea.vmem %s398, %s420
      %v422 = vld [vmem:[%s421] sm:$0xff]
      %v423 = vld [vmem:[%s421 + $0x8] sm:$0xff]
      %v424 = vld [vmem:[%s421 + $0x10] sm:$0xf]
      %v425 = vld [vmem:[%s1] sm:$0x7]
      %v426 = vperm.slane %v425, 0
      %v427 = vmul.f32 %v422, %v426
      %v428 = vmul.f32 %v423, %v426
      %v429 = vadd.f32 %v427, 0.0
      %v430 = vadd.f32 %v428, 0.0
      %v431 = vperm.slane %v425, 1
      %v432 = vmul.f32 %v422, %v431
      %v433 = vmul.f32 %v423, %v431
      %v434 = vmul.f32 %v424, %v431
      %vm438 = vcmask 1045504
      %v439 = vrot.slane %v432, 2
      %v440 = vrot.slane %v433, 2
      %v441 = vsel %vm438, %v439, %v440
      %v442 = vrot.slane %v434, 2
      %v443 = vsel %vm438, %v440, %v442
      %v446 = vadd.f32 %v429, %v441
      %v447 = vadd.f32 %v430, %v443
      %v448 = vperm.slane %v425, 2
      %v449 = vmul.f32 %v422, %v448
      %v450 = vmul.f32 %v423, %v448
      %v451 = vmul.f32 %v424, %v448
      %vm455 = vcmask 1043456
      %v456 = vrot.slane %v449, 4
      %v457 = vrot.slane %v450, 4
      %v458 = vsel %vm455, %v456, %v457
      %v459 = vrot.slane %v451, 4
      %v460 = vsel %vm455, %v457, %v459
      %v463 = vadd.f32 %v446, %v458
      %v464 = vadd.f32 %v447, %v460
      %v465 = vld [vmem:[%s2] sm:$0x1]
      %v467 = vperm.slane %v465, 0
      %v469 = vadd.f32 %v463, %v467
      %v470 = vadd.f32 %v464, %v467
      %v471 = vpack.c.bf16 %v470, %v469
      %v472 = vld [vmem:[%s3] sm:$0xf]
      %v473 = vld [vmem:[%s3 + $0x4] sm:$0xf]
      %v474 = vld [vmem:[%s3 + $0x8] sm:$0xf]
      %v475 = vld [vmem:[%s3 + $0xc] sm:$0xf]
      %v480 = vunpack.c.l.b16 %v472
      %v481 = vunpack.c.l.b16 %v473
      %v482 = vunpack.c.l.b16 %v474
      %v483 = vunpack.c.l.b16 %v475
      %v484 = vpack.c.b16 %v481, %v480
      %v485 = vpack.c.b16 %v483, %v482
      %vm488 = vcmask 261120
      %v490 = vsel %vm488, %v471, 0
      %492 = vmatpush.bf16.msra.mxu0 0
      %493 = vmatpush.bf16.msra.mxu0 0
      %494 = vmatpush.bf16.msra.mxu0 0
      %495 = vmatpush.bf16.msra.mxu0 0
      %496 = vmatpush.bf16.msra.mxu0 0
      %497 = vmatpush.bf16.msra.mxu0 0
      %498 = vmatpush.bf16.msra.mxu0 %v485
      %499 = vmatpush.bf16.msra.mxu0 %v484
      %500 = vmatmul.bf16.gmra.mxu0 %v490
      %v501 = vpop.f32.mrf.mxu0
      %v502 = vadd.f32 0.0, %v501
      %v503 = vpop.f32.mrf.mxu0
      %v504 = vadd.f32 0.0, %v503
      %505 = vdwg.mxu0
      %v506 = vld [vmem:[%s4] sm:$0x1]
      %v508 = vperm.slane %v506, 0
      %v510 = vmul.f32 %v502, %v508
      %v511 = vmul.f32 %v504, %v508
      %v512 = vld [vmem:[%s5] sm:$0x1]
      %v514 = vperm.slane %v512, 0
      %v516 = vadd.f32 %v510, %v514
      %v517 = vadd.f32 %v511, %v514
      %v518 = vld [vmem:[%s407] sm:$0xff]
      %v519 = vld [vmem:[%s407 + $0x8] sm:$0xff]
      %v520 = vpack.c.bf16 %v519, %v518
      %v521 = vld [vmem:[%s7] sm:$0xf]
      %v522 = vld [vmem:[%s7 + $0x4] sm:$0xf]
      %v523 = vld [vmem:[%s7 + $0x8] sm:$0xf]
      %v524 = vld [vmem:[%s7 + $0xc] sm:$0xf]
      %v529 = vunpack.c.l.b16 %v521
      %v530 = vunpack.c.l.b16 %v522
      %v531 = vunpack.c.l.b16 %v523
      %v532 = vunpack.c.l.b16 %v524
      %v533 = vpack.c.b16 %v530, %v529
      %v534 = vpack.c.b16 %v532, %v531
      %v538 = vsel %vm488, %v520, 0
      %540 = vmatpush.bf16.msra.mxu0 0
      %541 = vmatpush.bf16.msra.mxu0 0
      %542 = vmatpush.bf16.msra.mxu0 0
      %543 = vmatpush.bf16.msra.mxu0 0
      %544 = vmatpush.bf16.msra.mxu0 0
      %545 = vmatpush.bf16.msra.mxu0 0
      %546 = vmatpush.bf16.msra.mxu0 %v534
      %547 = vmatpush.bf16.msra.mxu0 %v533
      %548 = vmatmul.bf16.gmra.mxu0 %v538
      %v549 = vpop.f32.mrf.mxu0
      %v550 = vadd.f32 0.0, %v549
      %v551 = vpop.f32.mrf.mxu0
      %v552 = vadd.f32 0.0, %v551
      %553 = vdwg.mxu0
      %v554 = vld [vmem:[%s8] sm:$0x1]
      %v556 = vperm.slane %v554, 0
      %v558 = vmul.f32 %v550, %v556
      %v559 = vmul.f32 %v552, %v556
      %v560 = vadd.f32 %v516, %v558
      %v561 = vadd.f32 %v517, %v559
      %v562 = vld [vmem:[%s9] sm:$0x1]
      %v564 = vperm.slane %v562, 0
      %v566 = vadd.f32 %v560, %v564
      %v567 = vadd.f32 %v561, %v564
      %v568 = vmax.f32 %v566, 0.0
      %v569 = vmax.f32 %v567, 0.0
      %570 = vst.msk [vmem:[%s417] sm:$0xff] %vm488, %v568
      %571 = vst.msk [vmem:[%s417 + $0x8] sm:$0xff] %vm488, %v569
      %s572 = smul.u32 2, %s26
      %p573 = scmp.lt.s32.totalorder %s25, 1
      %s574 = scalar_select %p573, %s25, 1
      %p575 = scmp.lt.s32.totalorder %s572, 3
      %s576 = scalar_select %p575, %s572, 3
      %s577 = smul.addr %s574, 4
      %s578 = sadd.s32 %s576, %s577
      %s579 = smul.addr %s578, 8
      %s580 = scalar_lea.vmem %s10, %s579
      // Predicated region
      $region61: #{quartznet_forward.8} parent=59 // pred_check
        %p581 = pneg %p275
      $region62: #{quartznet_forward.8} parent=59 // pred_check_branch
        %583 = sbr.rel (%p581) target = $region64
      $region63: #{quartznet_forward.8} parent=59 // pred_region
        %s584 = smul.u32 2, %s26
      $region64: #{quartznet_forward.8} parent=59 // pred_fallthru
        _
    $region60: #{quartznet_forward.8} parent=5 // pred_fallthru
      _
    %p585 = scmp.le.s32.totalorder 2, %s16
    // Predicated region
    $region65: #{quartznet_forward.8} parent=5 // pred_check
      %p586 = pneg %p585
    $region66: #{quartznet_forward.8} parent=5 // pred_check_branch
      %588 = sbr.rel (%p586) target = $region68
    $region67: #{quartznet_forward.8} parent=5 // pred_region
      %s589 = ssub.s32 %s16, 2
      // Predicated region
      $region69: #{quartznet_forward.8} parent=67 // pred_check
        %p590 = pneg %p281
      $region70: #{quartznet_forward.8} parent=67 // pred_check_branch
        %592 = sbr.rel (%p590) target = $region72
      $region71: #{quartznet_forward.8} parent=67 // pred_region
        %s593 = smul.u32 2, %s28
        %p594 = scmp.lt.s32.totalorder %s27, 1
        %s595 = scalar_select %p594, %s27, 1
        %p596 = scmp.lt.s32.totalorder %s593, 3
        %s597 = scalar_select %p596, %s593, 3
        %s598 = smul.addr %s595, 4
        %s599 = sadd.s32 %s597, %s598
        %s600 = smul.addr %s599, 8
        %s601 = scalar_lea.vmem %s10, %s600
      $region72: #{quartznet_forward.8} parent=67 // pred_fallthru
        _
    $region68: #{quartznet_forward.8} parent=5 // pred_fallthru
      _
  $region6: #{quartznet_forward.8} parent=0 // loop_footer
    %s20 = sadd.s32 1, %s16
  $region7: #{quartznet_forward.8} parent=0 // loop_footer_branch
    %15 = sbr.rel target = $region3
  $region8: #{quartznet_forward.8} parent=0 // loop_exit
    _

// kernel: quartznet_forward.9
$region0: #{quartznet_forward.9}
  #allocation0 [shape = 'u32[]', space=smem, size = 0x4, offset = 0x4, fixed_abs, tag = 'smem constant byte address 0x4 - core index']
  #allocation1 [shape = 'u32[72,128]{1,0:T(1,128)}', space=vmem, size = 0x9000, scoped, tag = 'internal scratch']
  %s0 = inlined_call_operand.vmem [shape: f32[2,34,32], index: 0, kind: input, shape index: {}]
  %s1 = inlined_call_operand.vmem [shape: f32[3,32], index: 1, kind: input, shape index: {}]
  %s2 = inlined_call_operand.vmem [shape: f32[1,32], index: 2, kind: input, shape index: {}]
  %s3 = inlined_call_operand.vmem [shape: bf16[32,64], index: 3, kind: input, shape index: {}]
  %s4 = inlined_call_operand.vmem [shape: f32[1,64], index: 4, kind: input, shape index: {}]
  %s5 = inlined_call_operand.vmem [shape: f32[1,64], index: 5, kind: input, shape index: {}]
  %s6 = inlined_call_operand.hbm [shape: f32[2,32,64], index: 6, kind: output, shape index: {}]
  %s7 = sld [smem:[#allocation0]]
  $region57: #{quartznet_forward.9} parent=0
    _
  %s9 = ssub.s32 1, %s7
  %s10 = scalar_select 0, %s9, %s7
  $region1: #{quartznet_forward.9} parent=0
    #allocation2 [shape = 'u8[16384]{0}', space=vmem, size = 0x4000, scoped, tag = 'output window, operand 0']
    #allocation3 [shape = 's32[2]{0}', space=sflag, size = 0x8, scoped, tag = 'scoped memory for quartznet_forward.9']
    %11 = vsyncpa [#allocation3], 0
    %s12 = scalar_lea.sflag [#allocation3], 1
    %13 = vsyncpa %s12, 0
    loop: start=0, step=1, limit=6
    $region2: #{quartznet_forward.9} parent=1 // loop_pre_header
      _
    $region3: #{quartznet_forward.9} parent=1 // loop_header
      %s15 = sphi 0, %s19
      %p16 = scmp.ge.s32.totalorder %s15, 6
      %s22 = sphi 0, %s34
      %s23 = sphi 0, %s30
      %s24 = sphi 0, %s22
      %s25 = sphi 0, %s23
      %s26 = sphi 0, %s24
      %s27 = sphi 0, %s25
      %s37 = sphi 0, %s39
      %s40 = sphi 0, %s37
      %s41 = sphi 0, %s40
      %s57 = sphi 0, %s41
      %s61 = sphi 0, %s61
      %s63 = sphi 0, %s61
      %s64 = sphi 0, %s63
      %s78 = sphi 0, %s64
      %s82 = sphi 0, %s82
      %s84 = sphi 0, %s82
      %s85 = sphi 0, %s84
      %s99 = sphi 0, %s85
      %s103 = sphi 0, %s103
      %s105 = sphi 0, %s103
      %s106 = sphi 0, %s105
      %s120 = sphi 0, %s106
      %s124 = sphi 0, %s124
      %s126 = sphi 0, %s124
      %s127 = sphi 0, %s126
      %s141 = sphi 0, %s127
      %s145 = sphi 0, %s145
      %s147 = sphi 0, %s145
      %s148 = sphi 0, %s147
      %s162 = sphi 0, %s148
      %s170 = sphi 0, %s172
      %s173 = sphi 0, %s170
      %s174 = sphi 0, %s173
      %s190 = sphi 0, %s174
    $region4: #{quartznet_forward.9} parent=1 // loop_header_branch
      %18 = sbr.rel (%p16) target = $region8
    $region5: #{quartznet_forward.9} parent=1 // loop_body
      %s20 = ssub.s32 %s15, 1
      %s21 = ssub.s32 %s15, 2
      %s28 = sadd.s32 1, %s23
      %p29 = scmp.ge.s32.totalorder %s28, 2
      %s30 = scalar_select %p29, 0, %s28
      %s31 = sadd.s32 1, %s22
      %s32 = scalar_select %p29, %s31, %s22
      %p33 = scmp.ge.s32.totalorder %s32, 2
      %s34 = scalar_select %p33, 0, %s32
      %s35 = ssub.s32 %s22, %s34
      %p36 = scmp.eq.s32.totalorder %s35, 0
      %s38 = sadd.s32 %s37, 1
      %s39 = scalar_select %p36, %s37, %s38
      %p42 = pneg %p36
      %p43 = scmp.eq.s32.totalorder %s15, 3
      %p44 = por %p42, %p43
      %p45 = scmp.ne.s32.totalorder %s37, %s40
      %p46 = scmp.eq.s32.totalorder %s15, 0
      %p47 = por %p45, %p46
      %p48 = scmp.ne.s32.totalorder %s37, %s40
      %p49 = scmp.eq.s32.totalorder %s20, 3
      %p50 = por %p48, %p49
      %p51 = scmp.ne.s32.totalorder %s40, %s41
      %p52 = scmp.eq.s32.totalorder %s20, 0
      %p53 = por %p51, %p52
      %p54 = scmp.ne.s32.totalorder %s40, %s41
      %p55 = scmp.eq.s32.totalorder %s21, 3
      %p56 = por %p54, %p55
      %p58 = scmp.ne.s32.totalorder %s41, %s57
      %p59 = scmp.eq.s32.totalorder %s21, 0
      %p60 = por %p58, %p59
      %s62 = sadd.s32 %s61, 1
      %p65 = scmp.eq.s32.totalorder %s15, 3
      %p66 = scmp.ne.s32.totalorder %s61, %s63
      %p67 = scmp.eq.s32.totalorder %s15, 0
      %p68 = por %p66, %p67
      %p69 = scmp.ne.s32.totalorder %s61, %s63
      %p70 = scmp.eq.s32.totalorder %s20, 3
      %p71 = por %p69, %p70
      %p72 = scmp.ne.s32.totalorder %s63, %s64
      %p73 = scmp.eq.s32.totalorder %s20, 0
      %p74 = por %p72, %p73
      %p75 = scmp.ne.s32.totalorder %s63, %s64
      %p76 = scmp.eq.s32.totalorder %s21, 3
      %p77 = por %p75, %p76
      %p79 = scmp.ne.s32.totalorder %s64, %s78
      %p80 = scmp.eq.s32.totalorder %s21, 0
      %p81 = por %p79, %p80
      %s83 = sadd.s32 %s82, 1
      %p86 = scmp.eq.s32.totalorder %s15, 3
      %p87 = scmp.ne.s32.totalorder %s82, %s84
      %p88 = scmp.eq.s32.totalorder %s15, 0
      %p89 = por %p87, %p88
      %p90 = scmp.ne.s32.totalorder %s82, %s84
      %p91 = scmp.eq.s32.totalorder %s20, 3
      %p92 = por %p90, %p91
      %p93 = scmp.ne.s32.totalorder %s84, %s85
      %p94 = scmp.eq.s32.totalorder %s20, 0
      %p95 = por %p93, %p94
      %p96 = scmp.ne.s32.totalorder %s84, %s85
      %p97 = scmp.eq.s32.totalorder %s21, 3
      %p98 = por %p96, %p97
      %p100 = scmp.ne.s32.totalorder %s85, %s99
      %p101 = scmp.eq.s32.totalorder %s21, 0
      %p102 = por %p100, %p101
      %s104 = sadd.s32 %s103, 1
      %p107 = scmp.eq.s32.totalorder %s15, 3
      %p108 = scmp.ne.s32.totalorder %s103, %s105
      %p109 = scmp.eq.s32.totalorder %s15, 0
      %p110 = por %p108, %p109
      %p111 = scmp.ne.s32.totalorder %s103, %s105
      %p112 = scmp.eq.s32.totalorder %s20, 3
      %p113 = por %p111, %p112
      %p114 = scmp.ne.s32.totalorder %s105, %s106
      %p115 = scmp.eq.s32.totalorder %s20, 0
      %p116 = por %p114, %p115
      %p117 = scmp.ne.s32.totalorder %s105, %s106
      %p118 = scmp.eq.s32.totalorder %s21, 3
      %p119 = por %p117, %p118
      %p121 = scmp.ne.s32.totalorder %s106, %s120
      %p122 = scmp.eq.s32.totalorder %s21, 0
      %p123 = por %p121, %p122
      %s125 = sadd.s32 %s124, 1
      %p128 = scmp.eq.s32.totalorder %s15, 3
      %p129 = scmp.ne.s32.totalorder %s124, %s126
      %p130 = scmp.eq.s32.totalorder %s15, 0
      %p131 = por %p129, %p130
      %p132 = scmp.ne.s32.totalorder %s124, %s126
      %p133 = scmp.eq.s32.totalorder %s20, 3
      %p134 = por %p132, %p133
      %p135 = scmp.ne.s32.totalorder %s126, %s127
      %p136 = scmp.eq.s32.totalorder %s20, 0
      %p137 = por %p135, %p136
      %p138 = scmp.ne.s32.totalorder %s126, %s127
      %p139 = scmp.eq.s32.totalorder %s21, 3
      %p140 = por %p138, %p139
      %p142 = scmp.ne.s32.totalorder %s127, %s141
      %p143 = scmp.eq.s32.totalorder %s21, 0
      %p144 = por %p142, %p143
      %s146 = sadd.s32 %s145, 1
      %p149 = scmp.eq.s32.totalorder %s15, 3
      %p150 = scmp.ne.s32.totalorder %s145, %s147
      %p151 = scmp.eq.s32.totalorder %s15, 0
      %p152 = por %p150, %p151
      %p153 = scmp.ne.s32.totalorder %s145, %s147
      %p154 = scmp.eq.s32.totalorder %s20, 3
      %p155 = por %p153, %p154
      %p156 = scmp.ne.s32.totalorder %s147, %s148
      %p157 = scmp.eq.s32.totalorder %s20, 0
      %p158 = por %p156, %p157
      %p159 = scmp.ne.s32.totalorder %s147, %s148
      %p160 = scmp.eq.s32.totalorder %s21, 3
      %p161 = por %p159, %p160
      %p163 = scmp.ne.s32.totalorder %s148, %s162
      %p164 = scmp.eq.s32.totalorder %s21, 0
      %p165 = por %p163, %p164
      %s166 = ssub.s32 %s22, %s34
      %s167 = ssub.s32 %s23, %s30
      %s168 = sor.u32 %s166, %s167
      %p169 = scmp.eq.s32.totalorder %s168, 0
      %s171 = sadd.s32 %s170, 1
      %s172 = scalar_select %p169, %s170, %s171
      %p175 = pneg %p169
      %p176 = scmp.eq.s32.totalorder %s15, 3
      %p177 = por %p175, %p176
      %p178 = scmp.ne.s32.totalorder %s170, %s173
      %p179 = scmp.eq.s32.totalorder %s15, 0
      %p180 = por %p178, %p179
      %p181 = scmp.ne.s32.totalorder %s170, %s173
      %p182 = scmp.eq.s32.totalorder %s20, 3
      %p183 = por %p181, %p182
      %p184 = scmp.ne.s32.totalorder %s173, %s174
      %p185 = scmp.eq.s32.totalorder %s20, 0
      %p186 = por %p184, %p185
      %p187 = scmp.ne.s32.totalorder %s173, %s174
      %p188 = scmp.eq.s32.totalorder %s21, 3
      %p189 = por %p187, %p188
      %p191 = scmp.ne.s32.totalorder %s174, %s190
      %p192 = scmp.eq.s32.totalorder %s21, 0
      %p193 = por %p191, %p192
      %p194 = scmp.le.s32.totalorder 1, %s15
      %p195 = scmp.lt.s32.totalorder %s15, 5
      %p196 = pnand %p194, %p195
      %p197 = pneg %p196
      // Predicated region
      $region9: #{quartznet_forward.9} parent=5 // pred_check
        _
      $region10: #{quartznet_forward.9} parent=5 // pred_check_branch
        %199 = sbr.rel (%p196) target = $region12
      $region11: #{quartznet_forward.9} parent=5 // pred_region
        %s200 = ssub.s32 %s15, 1
        // Predicated region
        $region13: #{quartznet_forward.9} parent=11 // pred_check
          %p201 = pneg %p74
        $region14: #{quartznet_forward.9} parent=11 // pred_check_branch
          %203 = sbr.rel (%p201) target = $region16
        $region15: #{quartznet_forward.9} parent=11 // pred_region
          _
        $region16: #{quartznet_forward.9} parent=11 // pred_fallthru
          _
        // Predicated region
        $region17: #{quartznet_forward.9} parent=11 // pred_check
          %p204 = pneg %p95
        $region18: #{quartznet_forward.9} parent=11 // pred_check_branch
          %206 = sbr.rel (%p204) target = $region20
        $region19: #{quartznet_forward.9} parent=11 // pred_region
          _
        $region20: #{quartznet_forward.9} parent=11 // pred_fallthru
          _
        // Predicated region
        $region21: #{quartznet_forward.9} parent=11 // pred_check
          %p207 = pneg %p116
        $region22: #{quartznet_forward.9} parent=11 // pred_check_branch
          %209 = sbr.rel (%p207) target = $region24
        $region23: #{quartznet_forward.9} parent=11 // pred_region
          _
        $region24: #{quartznet_forward.9} parent=11 // pred_fallthru
          _
        // Predicated region
        $region25: #{quartznet_forward.9} parent=11 // pred_check
          %p210 = pneg %p137
        $region26: #{quartznet_forward.9} parent=11 // pred_check_branch
          %212 = sbr.rel (%p210) target = $region28
        $region27: #{quartznet_forward.9} parent=11 // pred_region
          _
        $region28: #{quartznet_forward.9} parent=11 // pred_fallthru
          _
        // Predicated region
        $region29: #{quartznet_forward.9} parent=11 // pred_check
          %p213 = pneg %p158
        $region30: #{quartznet_forward.9} parent=11 // pred_check_branch
          %215 = sbr.rel (%p213) target = $region32
        $region31: #{quartznet_forward.9} parent=11 // pred_region
          _
        $region32: #{quartznet_forward.9} parent=11 // pred_fallthru
          _
      $region12: #{quartznet_forward.9} parent=5 // pred_fallthru
        _
      %p216 = scmp.lt.s32.totalorder %s15, 4
      // Predicated region
      $region33: #{quartznet_forward.9} parent=5 // pred_check
        %p217 = pneg %p216
      $region34: #{quartznet_forward.9} parent=5 // pred_check_branch
        %219 = sbr.rel (%p217) target = $region36
      $region35: #{quartznet_forward.9} parent=5 // pred_region
        // Predicated region
        $region37: #{quartznet_forward.9} parent=35 // pred_check
          %p220 = pneg %p47
        $region38: #{quartznet_forward.9} parent=35 // pred_check_branch
          %222 = sbr.rel (%p220) target = $region40
        $region39: #{quartznet_forward.9} parent=35 // pred_region
          %p223 = scmp.lt.s32.totalorder %s22, 1
          %s224 = scalar_select %p223, %s22, 1
          %s225 = smul.addr %s224, 5
          %s226 = smul.addr %s225, 8
          %s227 = scalar_lea.vmem %s0, %s226
        $region40: #{quartznet_forward.9} parent=35 // pred_fallthru
          _
      $region36: #{quartznet_forward.9} parent=5 // pred_fallthru
        _
      %p228 = scmp.le.s32.totalorder 1, %s15
      %p229 = scmp.lt.s32.totalorder %s15, 5
      %p230 = pnand %p228, %p229
      %p231 = pneg %p230
      // Predicated region
      $region41: #{quartznet_forward.9} parent=5 // pred_check
        _
      $region42: #{quartznet_forward.9} parent=5 // pred_check_branch
        %233 = sbr.rel (%p230) target = $region44
      $region43: #{quartznet_forward.9} parent=5 // pred_region
        %s234 = ssub.s32 %s15, 1
        %p235 = scmp.lt.s32.totalorder %s24, 1
        %s236 = scalar_select %p235, %s24, 1
        %s237 = smul.addr %s236, 5
        %s238 = smul.addr %s237, 8
        %s239 = scalar_lea.vmem %s0, %s238
        %p240 = pneg %p53
        %p241 = pneg %p50
        %p242 = pneg %p74
        %p243 = pneg %p71
        %p244 = pneg %p95
        %p245 = pneg %p92
        %p246 = pneg %p116
        %p247 = pneg %p113
        %p248 = pneg %p137
        %p249 = pneg %p134
        %p250 = pneg %p158
        %p251 = pneg %p155
        %p252 = pneg %p186
        %p253 = pneg %p183
        %s254 = sand.u32 %s173, 1
        %s255 = scalar_lea.sflag [#allocation3], %s254
        %s256 = sand.u32 %s173, 1
        %s257 = smul.addr %s256, 16
        %s258 = scalar_lea.vmem [#allocation2], %s257
        %p259 = scmp.lt.s32.totalorder %s24, 1
        %s260 = scalar_select %p259, %s24, 1
        %s261 = smul.addr %s260, 5
        %s262 = smul.addr %s261, 8
        %s263 = scalar_lea.vmem %s0, %s262
        %s264 = smul.u32 2, %s25
        %s266 = smul.u32 %s25, 16
        %s267 = scalar_lea.vmem %s263, %s266
        %v268 = vld [vmem:[%s267] sm:$0xff]
        %v269 = vld [vmem:[%s267 + $0x8] sm:$0xff]
        %v270 = vld [vmem:[%s267 + $0x10] sm:$0x3]
        %v271 = vld [vmem:[%s1] sm:$0x7]
        %v272 = vperm.slane %v271, 0
        %v273 = vmul.f32 %v268, %v272
        %v274 = vmul.f32 %v269, %v272
        %v275 = vadd.f32 %v273, 0.0
        %v276 = vadd.f32 %v274, 0.0
        %v277 = vperm.slane %v271, 1
        %v278 = vmul.f32 %v268, %v277
        %v279 = vmul.f32 %v269, %v277
        %v280 = vmul.f32 %v270, %v277
        %vm284 = vcmask 1046528
        %v285 = vrot.slane %v278, 1
        %v286 = vrot.slane %v279, 1
        %v287 = vsel %vm284, %v285, %v286
        %v288 = vrot.slane %v280, 1
        %v289 = vsel %vm284, %v286, %v288
        %v292 = vadd.f32 %v275, %v287
        %v293 = vadd.f32 %v276, %v289
        %v294 = vperm.slane %v271, 2
        %v295 = vmul.f32 %v268, %v294
        %v296 = vmul.f32 %v269, %v294
        %v297 = vmul.f32 %v270, %v294
        %vm301 = vcmask 1045504
        %v302 = vrot.slane %v295, 2
        %v303 = vrot.slane %v296, 2
        %v304 = vsel %vm301, %v302, %v303
        %v305 = vrot.slane %v297, 2
        %v306 = vsel %vm301, %v303, %v305
        %v309 = vadd.f32 %v292, %v304
        %v310 = vadd.f32 %v293, %v306
        %v311 = vld [vmem:[%s2] sm:$0x1]
        %v313 = vperm.slane %v311, 0
        %v315 = vadd.f32 %v309, %v313
        %v316 = vadd.f32 %v310, %v313
        %v317 = vpack.c.bf16 %v316, %v315
        %v318 = vld [vmem:[%s3] sm:$0xf]
        %v319 = vld [vmem:[%s3 + $0x4] sm:$0xf]
        %v320 = vld [vmem:[%s3 + $0x8] sm:$0xf]
        %v321 = vld [vmem:[%s3 + $0xc] sm:$0xf]
        %v326 = vunpack.c.l.b16 %v318
        %v327 = vunpack.c.l.b16 %v319
        %v328 = vunpack.c.l.b16 %v320
        %v329 = vunpack.c.l.b16 %v321
        %v330 = vpack.c.b16 %v327, %v326
        %v331 = vpack.c.b16 %v329, %v328
        %vm334 = vcmask 261120
        %v336 = vsel %vm334, %v317, 0
        %338 = vmatpush.bf16.msra.mxu0 0
        %339 = vmatpush.bf16.msra.mxu0 0
        %340 = vmatpush.bf16.msra.mxu0 0
        %341 = vmatpush.bf16.msra.mxu0 0
        %342 = vmatpush.bf16.msra.mxu0 0
        %343 = vmatpush.bf16.msra.mxu0 0
        %344 = vmatpush.bf16.msra.mxu0 %v331
        %345 = vmatpush.bf16.msra.mxu0 %v330
        %346 = vmatmul.bf16.gmra.mxu0 %v336
        %v347 = vpop.f32.mrf.mxu0
        %v348 = vadd.f32 0.0, %v347
        %v349 = vpop.f32.mrf.mxu0
        %v350 = vadd.f32 0.0, %v349
        %351 = vdwg.mxu0
        %v352 = vld [vmem:[%s4] sm:$0x1]
        %v354 = vperm.slane %v352, 0
        %v356 = vmul.f32 %v348, %v354
        %v357 = vmul.f32 %v350, %v354
        %v358 = vld [vmem:[%s5] sm:$0x1]
        %v360 = vperm.slane %v358, 0
        %v362 = vadd.f32 %v356, %v360
        %v363 = vadd.f32 %v357, %v360
        %v364 = vmax.f32 %v362, 0.0
        %v365 = vmax.f32 %v363, 0.0
        %vm366 = vcmask 523264
        %367 = vst.msk [vmem:[%s258] sm:$0xff] %vm366, %v364
        %368 = vst.msk [vmem:[%s258 + $0x8] sm:$0xff] %vm366, %v365
        %s369 = sand.u32 %s173, 1
        %s370 = scalar_lea.sflag [#allocation3], %s369
        %s371 = sand.u32 %s173, 1
        %s372 = smul.addr %s371, 16
        %s373 = scalar_lea.vmem [#allocation2], %s372
        // Predicated region
        $region45: #{quartznet_forward.9} parent=43 // pred_check
          %p374 = pneg %p183
        $region46: #{quartznet_forward.9} parent=43 // pred_check_branch
          %376 = sbr.rel (%p374) target = $region48
        $region47: #{quartznet_forward.9} parent=43 // pred_region
          %s377 = smul.u32 2, %s25
          %379 = vsyncadd %s370, 0
          %s380 = smul.addr %s24, 4
          %s381 = sadd.s32 %s377, %s380
          %s382 = smul.addr %s381, 8
          %s383 = scalar_lea.hbm %s6, %s382
          %s384 = sshll.u32 %s373, 4
          %s385 = int_to_ptr.vmem [resolvable:$true] %s384
          %s386 = sshll.u32 %s383, 4
          %s387 = int_to_ptr.hbm [resolvable:$true] %s386
          %392 = dma.vmem_to_hbm [thread:$0]  %s385, 256, %s387, %s370, 128, 128, 8
        $region48: #{quartznet_forward.9} parent=43 // pred_fallthru
          _
      $region44: #{quartznet_forward.9} parent=5 // pred_fallthru
        _
      %p393 = scmp.le.s32.totalorder 2, %s15
      // Predicated region
      $region49: #{quartznet_forward.9} parent=5 // pred_check
        %p394 = pneg %p393
      $region50: #{quartznet_forward.9} parent=5 // pred_check_branch
        %396 = sbr.rel (%p394) target = $region52
      $region51: #{quartznet_forward.9} parent=5 // pred_region
        %s397 = ssub.s32 %s15, 2
        // Predicated region
        $region53: #{quartznet_forward.9} parent=51 // pred_check
          %p398 = pneg %p189
        $region54: #{quartznet_forward.9} parent=51 // pred_check_branch
          %400 = sbr.rel (%p398) target = $region56
        $region55: #{quartznet_forward.9} parent=51 // pred_region
          %s401 = sand.u32 %s174, 1
          %s402 = scalar_lea.sflag [#allocation3], %s401
          %s403 = sand.u32 %s174, 1
          %s404 = smul.addr %s403, 16
          %s405 = scalar_lea.vmem [#allocation2], %s404
          %407 = dma.done %s402, 256
        $region56: #{quartznet_forward.9} parent=51 // pred_fallthru
          _
      $region52: #{quartznet_forward.9} parent=5 // pred_fallthru
        _
    $region6: #{quartznet_forward.9} parent=1 // loop_footer
      %s19 = sadd.s32 1, %s15
    $region7: #{quartznet_forward.9} parent=1 // loop_footer_branch
      %14 = sbr.rel target = $region3
    $region8: #{quartznet_forward.9} parent=1 // loop_exit
      _
    %408 = vsyncpa [#allocation3], 1
    %s409 = scalar_lea.sflag [#allocation3], 1
    %410 = vsyncpa %s409, 1

</llo_original>
